<compile_context>
chip_gen: v5e
topology: v5e:2x2
jax: 0.10.0
libtpu: 0.0.40
codegen_flags: <defaults>
</compile_context>

<pallas_src>
from functools import partial

import jax
import jax.numpy as jnp
import numpy as np
from jax.experimental import pallas as pl
from jax.experimental.pallas import tpu as pltpu

# Target LHS row tile for the patch-embed matmul: 256 matches the 2x256x256 MXU on
# v6e/v7x (v5e's 4x128x128 would prefer 128).  The demo batch is far smaller, so a
# single tile holds the whole batch.
ROW_TILE_TARGET = 256


def _make_kernel(images_per_tile, s_per_img, num_tiles):
    """Build the fused KernelLearning kernel for a fixed tiling (static ints)."""

    def kernel(patches_ref, wb_ref, bb_ref, w1_ref, b1_ref, w2_ref, b2_ref,
               out_ref, pooled_ref):
        i = pl.program_id(0)

        @pl.when(i == 0)
        def _init():
            # Padded pooled rows (beyond the real batch) are never written below;
            # zero them so the (discarded) padded predictor rows stay finite.
            pooled_ref[...] = jnp.zeros_like(pooled_ref)

        # ---- backbone stand-in: patch-embedding "conv" (bf16 MXU matmul) + ReLU ----
        # TODO(synk): the pretrained ShuffleNetV2 backbone (torch.hub weight load) has
        # no in-script equivalent; it is replaced by this single Pallas patch-embed conv.
        feat = jnp.dot(patches_ref[...], wb_ref[...],
                       preferred_element_type=jnp.float32)
        feat = jnp.maximum(feat + bb_ref[...], 0.0)        # (imgs*S, n_dims) f32

        # ---- self.gap = AdaptiveMaxPool2d(1); x.view(B, -1) ----
        # Per-image global max over the S spatial rows of this tile.
        if s_per_img % 8 == 0:
            # Tile-aligned sublane split -> free reshape + one XLU reduce.
            pooled = jnp.max(
                feat.reshape(images_per_tile, s_per_img, feat.shape[-1]), axis=1)
        else:
            # Fallback for spatial sizes that are not sublane-aligned.
            parts = [jnp.max(feat[j * s_per_img:(j + 1) * s_per_img, :],
                             axis=0, keepdims=True)
                     for j in range(images_per_tile)]
            pooled = parts[0] if len(parts) == 1 else jnp.concatenate(parts, axis=0)

        if num_tiles == 1:
            pooled_ref[0:images_per_tile, :] = pooled       # static sublane store
        else:
            # images_per_tile is a multiple of 8 when num_tiles > 1 -> aligned store.
            start = pl.multiple_of(i * images_per_tile, 8)
            pooled_ref[pl.ds(start, images_per_tile), :] = pooled

        # ---- kernel_predicter: Linear -> ReLU -> Linear, batched ONCE over all rows ----
        # (bf16 matmul inputs are an approximation vs. the all-f32 PyTorch module; the
        #  pure-JAX reference below mirrors the same rounding.)
        @pl.when(i == num_tiles - 1)
        def _predict():
            pooled_all = pooled_ref[...].astype(jnp.bfloat16)           # (b_out, n_dims)
            h = jnp.dot(pooled_all, w1_ref[...],
                        preferred_element_type=jnp.float32) + b1_ref[...]
            h = jnp.maximum(h, 0.0)                                     # (b_out, n_hid)
            out_ref[...] = (jnp.dot(h.astype(jnp.bfloat16), w2_ref[...],
                                    preferred_element_type=jnp.float32)
                            + b2_ref[...])                              # (b_out, out_pad)

    return kernel


def _im2col(x_nchw, patch):
    """NCHW -> (B, S, patch*patch*C) non-overlapping patches (plain-JAX glue)."""
    B, C, H, W = x_nchw.shape
    assert H % patch == 0 and W % patch == 0
    s_h, s_w = H // patch, W // patch
    x = jnp.transpose(x_nchw, (0, 2, 3, 1))                     # NHWC
    x = x.reshape(B, s_h, patch, s_w, patch, C)
    x = jnp.transpose(x, (0, 1, 3, 2, 4, 5))                    # (B, sh, sw, p, p, C)
    return x.reshape(B, s_h * s_w, patch * patch * C)


def prepare_params(params):
    """One-time weight preprocessing, hoisted OUT of the forward path:
    bf16 casts for the MXU inputs, lane-pad w2/b2 (240 -> 256) so the final store
    is lane-dense.  Do this at parameter-setup time, not per call.
    (v6e: int8 weights + per-tensor scale, v7x: fp8 weights, would halve the
     dominant weight DMA again; kept bf16 here for accuracy/portability.)"""
    wb, bb, w1, b1, w2, b2 = params
    out_dim = w2.shape[1]
    out_pad = ((out_dim + 127) // 128) * 128
    prep = dict(
        wb=wb.astype(jnp.bfloat16),
        bb=bb.astype(jnp.float32),
        w1=w1.astype(jnp.bfloat16),
        b1=b1.astype(jnp.float32),
        w2=jnp.pad(w2, ((0, 0), (0, out_pad - out_dim))).astype(jnp.bfloat16),
        b2=jnp.pad(b2, ((0, 0), (0, out_pad - out_dim))).astype(jnp.float32),
    )
    return prep, out_dim


@partial(jax.jit, static_argnames=("patch", "out_dim"))
def kernel_learning_forward(x_nchw, prep, *, patch, out_dim):
    """Pallas forward of KernelLearning (backbone stand-in + gap + kernel_predicter)."""
    B = x_nchw.shape[0]
    patches = _im2col(x_nchw, patch)                             # (B, S, P) f32
    _, S, P = patches.shape
    wb, bb, w1, b1, w2, b2 = (prep[k] for k in ("wb", "bb", "w1", "b1", "w2", "b2"))
    n_dims, n_hid, out_pad = wb.shape[1], w1.shape[1], w2.shape[1]

    # Row tiling: pack whole images (S rows each) into MXU-sized LHS tiles.
    ipt_raw = max(1, ROW_TILE_TARGET // S)
    if ipt_raw >= B:
        images_per_tile, num_tiles = B, 1                        # tiny batch: one tile
    else:
        images_per_tile = max(8, (ipt_raw // 8) * 8)             # sublane-aligned pooled stores
        num_tiles = -(-B // images_per_tile)
    images_pad = num_tiles * images_per_tile
    rows_per_tile = images_per_tile * S
    b_out = ((images_pad + 7) // 8) * 8                          # sublane-dense pooled/out rows

    patches = patches.astype(jnp.bfloat16)
    if images_pad > B:
        patches = jnp.pad(patches, ((0, images_pad - B), (0, 0), (0, 0)))
    patches2d = patches.reshape(images_pad * S, P)

    flops = (2 * images_pad * S * P * n_dims
             + 2 * b_out * n_dims * n_hid
             + 2 * b_out * n_hid * out_pad)
    bytes_accessed = (patches2d.size * 2 + wb.size * 2 + bb.size * 4
                      + w1.size * 2 + b1.size * 4 + w2.size * 2 + b2.size * 4
                      + b_out * out_pad * 4)

    # Weights/biases have constant block indices -> DMA'd once, VMEM-resident.
    # (They could additionally be single-buffered with pipeline_mode=pl.Buffered(1)
    #  to free ~2.75 MB of VMEM once patch tiles are enlarged.)
    out = pl.pallas_call(
        _make_kernel(images_per_tile, S, num_tiles),
        out_shape=jax.ShapeDtypeStruct((b_out, out_pad), jnp.float32),
        grid_spec=pltpu.PrefetchScalarGridSpec(
            num_scalar_prefetch=0,
            grid=(num_tiles,),
            in_specs=[
                pl.BlockSpec((rows_per_tile, P), lambda i: (i, 0)),   # patch rows (streamed)
                pl.BlockSpec((P, n_dims), lambda i: (0, 0)),          # wb (resident)
                pl.BlockSpec((1, n_dims), lambda i: (0, 0)),          # bb
                pl.BlockSpec((n_dims, n_hid), lambda i: (0, 0)),      # w1 (resident)
                pl.BlockSpec((1, n_hid), lambda i: (0, 0)),           # b1
                pl.BlockSpec((n_hid, out_pad), lambda i: (0, 0)),     # w2 (resident)
                pl.BlockSpec((1, out_pad), lambda i: (0, 0)),         # b2
            ],
            out_specs=pl.BlockSpec((b_out, out_pad), lambda i: (0, 0)),   # resident, one dense store
            scratch_shapes=[pltpu.VMEM((b_out, n_dims), jnp.float32)],    # pooled features
        ),
        compiler_params=pltpu.CompilerParams(
            # Output/pooled scratch are carried across the grid -> "arbitrary".
            # This also keeps a tiny batch on one TensorCore (no duplicated weight DMA on v7x).
            dimension_semantics=("arbitrary",),
            vmem_limit_bytes=32 << 20,      # actual footprint ~6 MB; safe on v7x's 64 MiB VMEM
        ),
        cost_estimate=pl.CostEstimate(flops=flops, transcendentals=0,
                                      bytes_accessed=bytes_accessed),
    )(patches2d, wb, bb, w1, b1, w2, b2)

    return out[:B, :out_dim]


def reference_forward(x_nchw, params, *, patch):
    """Pure-JAX reference (same math; mirrors the kernel's bf16 matmul-input casts,
    f32 accumulation at HIGHEST precision) for validation."""
    patches = _im2col(x_nchw, patch)                             # (B, S, P)
    wb, bb, w1, b1, w2, b2 = params
    hi = jax.lax.Precision.HIGHEST
    bf = lambda a: a.astype(jnp.bfloat16).astype(jnp.float32)
    feat = jnp.maximum(
        jnp.einsum("bsp,pn->bsn", bf(patches), bf(wb), precision=hi) + bb, 0.0)
    pooled = jnp.max(feat, axis=1)                               # (B, n_dims)
    h = jnp.maximum(jnp.dot(bf(pooled), bf(w1), precision=hi) + b1, 0.0)
    return jnp.dot(bf(h), bf(w2), precision=hi) + b2


if __name__ == "__main__":
    # Module hyper-parameters (shufflenet_v2 branch, groups=3).
    n_kernel, groups = 8, 3
    n_dims = 1024                                   # shufflenet_v2_x0_5 fc.in_features
    out_dim_cfg = n_kernel * (3 * 3 * 3 + 3)        # 240

    # Small, forward-consistent shapes (S = 16 spatial patches per image).
    B, Cin, H, W = 2, 3, 64, 64
    patch = 16
    P = patch * patch * Cin                         # im2col patch length (768)

    key = jax.random.PRNGKey(0)
    ks = jax.random.split(key, 6)
    x = jax.random.normal(ks[0], (B, Cin, H, W), jnp.float32)

    # Deterministic synthetic parameters (no checkpoint loading).
    wb = 0.02 * jax.random.normal(ks[1], (P, n_dims), jnp.float32)      # backbone stand-in
    bb = jnp.zeros((1, n_dims), jnp.float32)
    w1 = 0.02 * jax.random.normal(ks[2], (n_dims, n_dims // 2), jnp.float32)
    b1 = 0.01 * jax.random.normal(ks[3], (1, n_dims // 2), jnp.float32)
    w2 = 0.02 * jax.random.normal(ks[4], (n_dims // 2, out_dim_cfg), jnp.float32)
    b2 = 0.01 * jax.random.normal(ks[5], (1, out_dim_cfg), jnp.float32)
    params = (wb, bb, w1, b1, w2, b2)

    # One-time weight preprocessing (hoisted out of the per-call forward path).
    prep, out_dim = prepare_params(params)

    out = kernel_learning_forward(x, prep, patch=patch, out_dim=out_dim)
    out = jax.block_until_ready(out)

    ref = reference_forward(x, params, patch=patch)
    assert out.shape == (B, out_dim), out.shape
    np.testing.assert_allclose(np.asarray(out), np.asarray(ref), rtol=2e-2, atol=2e-3)

    print("KERNEL_OK")
</pallas_src>

<mosaic_0001>
module attributes {stable_mosaic.version = 11 : i64} {
  func.func @kernel(%arg0: i32, %arg1: memref<32x768xbf16, #tpu.memory_space<vmem>>, %arg2: memref<768x1024xbf16, #tpu.memory_space<vmem>>, %arg3: memref<1x1024xf32, #tpu.memory_space<vmem>>, %arg4: memref<1024x512xbf16, #tpu.memory_space<vmem>>, %arg5: memref<1x512xf32, #tpu.memory_space<vmem>>, %arg6: memref<512x256xbf16, #tpu.memory_space<vmem>>, %arg7: memref<1x256xf32, #tpu.memory_space<vmem>>, %arg8: memref<8x256xf32, #tpu.memory_space<vmem>>, %arg9: memref<8x1024xf32, #tpu.memory_space<vmem>>) attributes {dimension_semantics = [#tpu.dimension_semantics<arbitrary>], iteration_bounds = array<i64: 1>, scalar_prefetch = 0 : i64, scratch_operands = 1 : i64, tpu.core_type = #tpu.core_type<tc>, window_params = [{transform_indices = @transform_0, window_bounds = array<i64: 32, 768>}, {pipeline_mode = #tpu.pipeline_mode<synchronous>, transform_indices = @transform_1, window_bounds = array<i64: 768, 1024>}, {pipeline_mode = #tpu.pipeline_mode<synchronous>, transform_indices = @transform_2, window_bounds = array<i64: 1, 1024>}, {pipeline_mode = #tpu.pipeline_mode<synchronous>, transform_indices = @transform_3, window_bounds = array<i64: 1024, 512>}, {pipeline_mode = #tpu.pipeline_mode<synchronous>, transform_indices = @transform_4, window_bounds = array<i64: 1, 512>}, {pipeline_mode = #tpu.pipeline_mode<synchronous>, transform_indices = @transform_5, window_bounds = array<i64: 512, 256>}, {pipeline_mode = #tpu.pipeline_mode<synchronous>, transform_indices = @transform_6, window_bounds = array<i64: 1, 256>}, {pipeline_mode = #tpu.pipeline_mode<synchronous>, transform_indices = @transform_7, window_bounds = array<i64: 8, 256>}]} {
    %c0_i32 = arith.constant 0 : i32
    %0 = arith.cmpi eq, %arg0, %c0_i32 : i32
    %1 = arith.extui %0 : i1 to i32
    %c0_i32_0 = arith.constant 0 : i32
    %2 = arith.cmpi ne, %1, %c0_i32_0 : i32
    scf.if %2 {
      %cst_12 = arith.constant 0.000000e+00 : f32
      %17 = vector.broadcast %cst_12 : f32 to vector<8x1024xf32>
      %c0_13 = arith.constant 0 : index
      %c0_14 = arith.constant 0 : index
      %18 = vector.load %arg9[%c0_13, %c0_14] : memref<8x1024xf32, #tpu.memory_space<vmem>>, vector<8x1024xf32>
      tpu.vector_store %arg9[%c0_13, %c0_14], %17 {strides = array<i32>} : memref<8x1024xf32, #tpu.memory_space<vmem>>, vector<8x1024xf32>,
    } else {
    }
    %c0 = arith.constant 0 : index
    %c0_1 = arith.constant 0 : index
    %3 = vector.load %arg1[%c0, %c0_1] : memref<32x768xbf16, #tpu.memory_space<vmem>>, vector<32x768xbf16>
    %c0_2 = arith.constant 0 : index
    %c0_3 = arith.constant 0 : index
    %4 = vector.load %arg2[%c0_2, %c0_3] : memref<768x1024xbf16, #tpu.memory_space<vmem>>, vector<768x1024xbf16>
    %cst = arith.constant dense<0.000000e+00> : vector<32x1024xf32>
    %5 = tpu.matmul %3, %4, %cst {dimension_numbers = #tpu.dot_dimension_numbers<[1], [0], [0], [1], [0, 0, 1, 1], [], []>} : vector<32x768xbf16>, vector<768x1024xbf16>, vector<32x1024xf32> -> vector<32x1024xf32>
    %c0_4 = arith.constant 0 : index
    %c0_5 = arith.constant 0 : index
    %6 = vector.load %arg3[%c0_4, %c0_5] : memref<1x1024xf32, #tpu.memory_space<vmem>>, vector<1x1024xf32>
    %7 = vector.broadcast %6 : vector<1x1024xf32> to vector<32x1024xf32>
    %8 = arith.addf %5, %7 : vector<32x1024xf32>
    %cst_6 = arith.constant 0.000000e+00 : f32
    %9 = vector.broadcast %cst_6 : f32 to vector<32x1024xf32>
    %10 = arith.maximumf %8, %9 : vector<32x1024xf32>
    %11 = vector.shape_cast %10 : vector<32x1024xf32> to vector<2x16x1024xf32>
    %cst_7 = arith.constant dense<0xFF800000> : vector<2x1024xf32>
    %12 = vector.multi_reduction <maximumf>, %11, %cst_7 [1] : vector<2x16x1024xf32> to vector<2x1024xf32>
    %c0_8 = arith.constant 0 : index
    %c0_9 = arith.constant 0 : index
    %13 = vector.load %arg9[%c0_8, %c0_9] : memref<8x1024xf32, #tpu.memory_space<vmem>>, vector<2x1024xf32>
    tpu.vector_store %arg9[%c0_8, %c0_9], %12 {strides = array<i32>} : memref<8x1024xf32, #tpu.memory_space<vmem>>, vector<2x1024xf32>,
    %c0_i32_10 = arith.constant 0 : i32
    %14 = arith.cmpi eq, %arg0, %c0_i32_10 : i32
    %15 = arith.extui %14 : i1 to i32
    %c0_i32_11 = arith.constant 0 : i32
    %16 = arith.cmpi ne, %15, %c0_i32_11 : i32
    scf.if %16 {
      %c0_12 = arith.constant 0 : index
      %c0_13 = arith.constant 0 : index
      %17 = vector.load %arg9[%c0_12, %c0_13] : memref<8x1024xf32, #tpu.memory_space<vmem>>, vector<8x1024xf32>
      %18 = arith.truncf %17 : vector<8x1024xf32> to vector<8x1024xbf16>
      %c0_14 = arith.constant 0 : index
      %c0_15 = arith.constant 0 : index
      %19 = vector.load %arg4[%c0_14, %c0_15] : memref<1024x512xbf16, #tpu.memory_space<vmem>>, vector<1024x512xbf16>
      %cst_16 = arith.constant dense<0.000000e+00> : vector<8x512xf32>
      %20 = tpu.matmul %18, %19, %cst_16 {dimension_numbers = #tpu.dot_dimension_numbers<[1], [0], [0], [1], [0, 0, 1, 1], [], []>} : vector<8x1024xbf16>, vector<1024x512xbf16>, vector<8x512xf32> -> vector<8x512xf32>
      %c0_17 = arith.constant 0 : index
      %c0_18 = arith.constant 0 : index
      %21 = vector.load %arg5[%c0_17, %c0_18] : memref<1x512xf32, #tpu.memory_space<vmem>>, vector<1x512xf32>
      %22 = vector.broadcast %21 : vector<1x512xf32> to vector<8x512xf32>
      %23 = arith.addf %20, %22 : vector<8x512xf32>
      %cst_19 = arith.constant 0.000000e+00 : f32
      %24 = vector.broadcast %cst_19 : f32 to vector<8x512xf32>
      %25 = arith.maximumf %23, %24 : vector<8x512xf32>
      %26 = arith.truncf %25 : vector<8x512xf32> to vector<8x512xbf16>
      %c0_20 = arith.constant 0 : index
      %c0_21 = arith.constant 0 : index
      %27 = vector.load %arg6[%c0_20, %c0_21] : memref<512x256xbf16, #tpu.memory_space<vmem>>, vector<512x256xbf16>
      %cst_22 = arith.constant dense<0.000000e+00> : vector<8x256xf32>
      %28 = tpu.matmul %26, %27, %cst_22 {dimension_numbers = #tpu.dot_dimension_numbers<[1], [0], [0], [1], [0, 0, 1, 1], [], []>} : vector<8x512xbf16>, vector<512x256xbf16>, vector<8x256xf32> -> vector<8x256xf32>
      %c0_23 = arith.constant 0 : index
      %c0_24 = arith.constant 0 : index
      %29 = vector.load %arg7[%c0_23, %c0_24] : memref<1x256xf32, #tpu.memory_space<vmem>>, vector<1x256xf32>
      %30 = vector.broadcast %29 : vector<1x256xf32> to vector<8x256xf32>
      %31 = arith.addf %28, %30 : vector<8x256xf32>
      %c0_25 = arith.constant 0 : index
      %c0_26 = arith.constant 0 : index
      %32 = vector.load %arg8[%c0_25, %c0_26] : memref<8x256xf32, #tpu.memory_space<vmem>>, vector<8x256xf32>
      tpu.vector_store %arg8[%c0_25, %c0_26], %31 {strides = array<i32>} : memref<8x256xf32, #tpu.memory_space<vmem>>, vector<8x256xf32>,
    } else {
    }
    return
  }
  func.func @transform_0(%arg0: i32) -> (i32, i32) {
    %c0_i32 = arith.constant 0 : i32
    %c0_i32_0 = arith.constant 0 : i32
    return %arg0, %c0_i32 : i32, i32
  }
  func.func @transform_1(%arg0: i32) -> (i32, i32) {
    %c0_i32 = arith.constant 0 : i32
    %c0_i32_0 = arith.constant 0 : i32
    %c0_i32_1 = arith.constant 0 : i32
    return %c0_i32, %c0_i32_0 : i32, i32
  }
  func.func @transform_2(%arg0: i32) -> (i32, i32) {
    %c0_i32 = arith.constant 0 : i32
    %c0_i32_0 = arith.constant 0 : i32
    %c0_i32_1 = arith.constant 0 : i32
    return %c0_i32, %c0_i32_0 : i32, i32
  }
  func.func @transform_3(%arg0: i32) -> (i32, i32) {
    %c0_i32 = arith.constant 0 : i32
    %c0_i32_0 = arith.constant 0 : i32
    %c0_i32_1 = arith.constant 0 : i32
    return %c0_i32, %c0_i32_0 : i32, i32
  }
  func.func @transform_4(%arg0: i32) -> (i32, i32) {
    %c0_i32 = arith.constant 0 : i32
    %c0_i32_0 = arith.constant 0 : i32
    %c0_i32_1 = arith.constant 0 : i32
    return %c0_i32, %c0_i32_0 : i32, i32
  }
  func.func @transform_5(%arg0: i32) -> (i32, i32) {
    %c0_i32 = arith.constant 0 : i32
    %c0_i32_0 = arith.constant 0 : i32
    %c0_i32_1 = arith.constant 0 : i32
    return %c0_i32, %c0_i32_0 : i32, i32
  }
  func.func @transform_6(%arg0: i32) -> (i32, i32) {
    %c0_i32 = arith.constant 0 : i32
    %c0_i32_0 = arith.constant 0 : i32
    %c0_i32_1 = arith.constant 0 : i32
    return %c0_i32, %c0_i32_0 : i32, i32
  }
  func.func @transform_7(%arg0: i32) -> (i32, i32) {
    %c0_i32 = arith.constant 0 : i32
    %c0_i32_0 = arith.constant 0 : i32
    %c0_i32_1 = arith.constant 0 : i32
    return %c0_i32, %c0_i32_0 : i32, i32
  }
}

</mosaic_0001>

<llo_original>
// kernel: kernel_learning_forward.1
$region0: #{kernel_learning_forward.1}
  #allocation0 [shape = 'u32[]', space=smem, size = 0x4, offset = 0x4, fixed_abs, tag = 'smem constant byte address 0x4 - core index']
  #allocation1 [shape = 'u32[72,128]{1,0:T(1,128)}', space=vmem, size = 0x9000, scoped, tag = 'internal scratch']
  #allocation2 [shape = 'f32[8,1024]{1,0:T(8,128)}', space=vmem, size = 0x8000, scoped, tag = 'scratch operand']
  %s0 = inlined_call_operand.vmem [shape: bf16[32,768], index: 0, kind: input, shape index: {}]
  %s1 = inlined_call_operand.vmem [shape: bf16[768,1024], index: 1, kind: input, shape index: {}]
  %s2 = inlined_call_operand.vmem [shape: f32[1,1024], index: 2, kind: input, shape index: {}]
  %s3 = inlined_call_operand.vmem [shape: bf16[1024,512], index: 3, kind: input, shape index: {}]
  %s4 = inlined_call_operand.vmem [shape: f32[1,512], index: 4, kind: input, shape index: {}]
  %s5 = inlined_call_operand.vmem [shape: bf16[512,256], index: 5, kind: input, shape index: {}]
  %s6 = inlined_call_operand.vmem [shape: f32[1,256], index: 6, kind: input, shape index: {}]
  %s7 = inlined_call_operand.vmem [shape: f32[8,256], index: 7, kind: output, shape index: {}]
  %s8 = sld [smem:[#allocation0]]
  $region46: #{kernel_learning_forward.1} parent=0
    _
  %s10 = ssub.s32 1, %s8
  %s11 = scalar_select 0, %s10, %s8
  // Predicated region
  $region2: #{kernel_learning_forward.1} parent=0 // pred_check
    _
  $region3: #{kernel_learning_forward.1} parent=0 // pred_check_branch
    %13 = sbr.rel (0) target = $region5
  $region4: #{kernel_learning_forward.1} parent=0 // pred_region
    _
  $region5: #{kernel_learning_forward.1} parent=0 // pred_fallthru
    _
  // Predicated region
  $region6: #{kernel_learning_forward.1} parent=0 // pred_check
    _
  $region7: #{kernel_learning_forward.1} parent=0 // pred_check_branch
    %15 = sbr.rel (0) target = $region9
  $region8: #{kernel_learning_forward.1} parent=0 // pred_region
    _
  $region9: #{kernel_learning_forward.1} parent=0 // pred_fallthru
    _
  // Predicated region
  $region10: #{kernel_learning_forward.1} parent=0 // pred_check
    _
  $region11: #{kernel_learning_forward.1} parent=0 // pred_check_branch
    %17 = sbr.rel (0) target = $region13
  $region12: #{kernel_learning_forward.1} parent=0 // pred_region
    _
  $region13: #{kernel_learning_forward.1} parent=0 // pred_fallthru
    _
  // Predicated region
  $region14: #{kernel_learning_forward.1} parent=0 // pred_check
    _
  $region15: #{kernel_learning_forward.1} parent=0 // pred_check_branch
    %19 = sbr.rel (0) target = $region17
  $region16: #{kernel_learning_forward.1} parent=0 // pred_region
    _
  $region17: #{kernel_learning_forward.1} parent=0 // pred_fallthru
    _
  // Predicated region
  $region18: #{kernel_learning_forward.1} parent=0 // pred_check
    _
  $region19: #{kernel_learning_forward.1} parent=0 // pred_check_branch
    %21 = sbr.rel (0) target = $region21
  $region20: #{kernel_learning_forward.1} parent=0 // pred_region
    _
  $region21: #{kernel_learning_forward.1} parent=0 // pred_fallthru
    _
  // Predicated region
  $region22: #{kernel_learning_forward.1} parent=0 // pred_check
    _
  $region23: #{kernel_learning_forward.1} parent=0 // pred_check_branch
    %23 = sbr.rel (0) target = $region25
  $region24: #{kernel_learning_forward.1} parent=0 // pred_region
    _
  $region25: #{kernel_learning_forward.1} parent=0 // pred_fallthru
    _
  // Predicated region
  $region26: #{kernel_learning_forward.1} parent=0 // pred_check
    _
  $region27: #{kernel_learning_forward.1} parent=0 // pred_check_branch
    %25 = sbr.rel (0) target = $region29
  $region28: #{kernel_learning_forward.1} parent=0 // pred_region
    _
  $region29: #{kernel_learning_forward.1} parent=0 // pred_fallthru
    _
  %p26 = scmp.eq.s32.totalorder 0, 0
  // Predicated region
  $region30: #{kernel_learning_forward.1} parent=0 // pred_check
    %p27 = pneg %p26
  $region31: #{kernel_learning_forward.1} parent=0 // pred_check_branch
    %29 = sbr.rel (%p27) target = $region33
  $region32: #{kernel_learning_forward.1} parent=0 // pred_region
    %30 = vst [vmem:[#allocation2] sm:$0xff] 0.0
    %31 = vst [vmem:[#allocation2 + $0x8] sm:$0xff] 0.0
    %32 = vst [vmem:[#allocation2 + $0x10] sm:$0xff] 0.0
    %33 = vst [vmem:[#allocation2 + $0x18] sm:$0xff] 0.0
    %34 = vst [vmem:[#allocation2 + $0x20] sm:$0xff] 0.0
    %35 = vst [vmem:[#allocation2 + $0x28] sm:$0xff] 0.0
    %36 = vst [vmem:[#allocation2 + $0x30] sm:$0xff] 0.0
    %37 = vst [vmem:[#allocation2 + $0x38] sm:$0xff] 0.0
  $region33: #{kernel_learning_forward.1} parent=0 // pred_fallthru
    _
  %v38 = vld [vmem:[%s0] sm:$0xff]
  %v39 = vld [vmem:[%s0 + $0x8] sm:$0xff]
  %v40 = vld [vmem:[%s0 + $0x10] sm:$0xff]
  %v41 = vld [vmem:[%s0 + $0x18] sm:$0xff]
  %v42 = vld [vmem:[%s0 + $0x20] sm:$0xff]
  %v43 = vld [vmem:[%s0 + $0x28] sm:$0xff]
  %v44 = vld [vmem:[%s0 + $0x30] sm:$0xff]
  %v45 = vld [vmem:[%s0 + $0x38] sm:$0xff]
  %v46 = vld [vmem:[%s0 + $0x40] sm:$0xff]
  %v47 = vld [vmem:[%s0 + $0x48] sm:$0xff]
  %v48 = vld [vmem:[%s0 + $0x50] sm:$0xff]
  %v49 = vld [vmem:[%s0 + $0x58] sm:$0xff]
  %v50 = vld [vmem:[%s1] sm:$0xff]
  %v51 = vld [vmem:[%s1 + $0x8] sm:$0xff]
  %v52 = vld [vmem:[%s1 + $0x10] sm:$0xff]
  %v53 = vld [vmem:[%s1 + $0x18] sm:$0xff]
  %v54 = vld [vmem:[%s1 + $0x20] sm:$0xff]
  %v55 = vld [vmem:[%s1 + $0x28] sm:$0xff]
  %v56 = vld [vmem:[%s1 + $0x30] sm:$0xff]
  %v57 = vld [vmem:[%s1 + $0x38] sm:$0xff]
  %v58 = vld [vmem:[%s1 + $0x40] sm:$0xff]
  %v59 = vld [vmem:[%s1 + $0x48] sm:$0xff]
  %v60 = vld [vmem:[%s1 + $0x50] sm:$0xff]
  %v61 = vld [vmem:[%s1 + $0x58] sm:$0xff]
  %v62 = vld [vmem:[%s1 + $0x60] sm:$0xff]
  %v63 = vld [vmem:[%s1 + $0x68] sm:$0xff]
  %v64 = vld [vmem:[%s1 + $0x70] sm:$0xff]
  %v65 = vld [vmem:[%s1 + $0x78] sm:$0xff]
  %v66 = vld [vmem:[%s1 + $0x80] sm:$0xff]
  %v67 = vld [vmem:[%s1 + $0x88] sm:$0xff]
  %v68 = vld [vmem:[%s1 + $0x90] sm:$0xff]
  %v69 = vld [vmem:[%s1 + $0x98] sm:$0xff]
  %v70 = vld [vmem:[%s1 + $0xa0] sm:$0xff]
  %v71 = vld [vmem:[%s1 + $0xa8] sm:$0xff]
  %v72 = vld [vmem:[%s1 + $0xb0] sm:$0xff]
  %v73 = vld [vmem:[%s1 + $0xb8] sm:$0xff]
  %v74 = vld [vmem:[%s1 + $0xc0] sm:$0xff]
  %v75 = vld [vmem:[%s1 + $0xc8] sm:$0xff]
  %v76 = vld [vmem:[%s1 + $0xd0] sm:$0xff]
  %v77 = vld [vmem:[%s1 + $0xd8] sm:$0xff]
  %v78 = vld [vmem:[%s1 + $0xe0] sm:$0xff]
  %v79 = vld [vmem:[%s1 + $0xe8] sm:$0xff]
  %v80 = vld [vmem:[%s1 + $0xf0] sm:$0xff]
  %v81 = vld [vmem:[%s1 + $0xf8] sm:$0xff]
  %v82 = vld [vmem:[%s1 + $0x100] sm:$0xff]
  %v83 = vld [vmem:[%s1 + $0x108] sm:$0xff]
  %v84 = vld [vmem:[%s1 + $0x110] sm:$0xff]
  %v85 = vld [vmem:[%s1 + $0x118] sm:$0xff]
  %v86 = vld [vmem:[%s1 + $0x120] sm:$0xff]
  %v87 = vld [vmem:[%s1 + $0x128] sm:$0xff]
  %v88 = vld [vmem:[%s1 + $0x130] sm:$0xff]
  %v89 = vld [vmem:[%s1 + $0x138] sm:$0xff]
  %v90 = vld [vmem:[%s1 + $0x140] sm:$0xff]
  %v91 = vld [vmem:[%s1 + $0x148] sm:$0xff]
  %v92 = vld [vmem:[%s1 + $0x150] sm:$0xff]
  %v93 = vld [vmem:[%s1 + $0x158] sm:$0xff]
  %v94 = vld [vmem:[%s1 + $0x160] sm:$0xff]
  %v95 = vld [vmem:[%s1 + $0x168] sm:$0xff]
  %v96 = vld [vmem:[%s1 + $0x170] sm:$0xff]
  %v97 = vld [vmem:[%s1 + $0x178] sm:$0xff]
  %v98 = vld [vmem:[%s1 + $0x180] sm:$0xff]
  %v99 = vld [vmem:[%s1 + $0x188] sm:$0xff]
  %v100 = vld [vmem:[%s1 + $0x190] sm:$0xff]
  %v101 = vld [vmem:[%s1 + $0x198] sm:$0xff]
  %v102 = vld [vmem:[%s1 + $0x1a0] sm:$0xff]
  %v103 = vld [vmem:[%s1 + $0x1a8] sm:$0xff]
  %v104 = vld [vmem:[%s1 + $0x1b0] sm:$0xff]
  %v105 = vld [vmem:[%s1 + $0x1b8] sm:$0xff]
  %v106 = vld [vmem:[%s1 + $0x1c0] sm:$0xff]
  %v107 = vld [vmem:[%s1 + $0x1c8] sm:$0xff]
  %v108 = vld [vmem:[%s1 + $0x1d0] sm:$0xff]
  %v109 = vld [vmem:[%s1 + $0x1d8] sm:$0xff]
  %v110 = vld [vmem:[%s1 + $0x1e0] sm:$0xff]
  %v111 = vld [vmem:[%s1 + $0x1e8] sm:$0xff]
  %v112 = vld [vmem:[%s1 + $0x1f0] sm:$0xff]
  %v113 = vld [vmem:[%s1 + $0x1f8] sm:$0xff]
  %v114 = vld [vmem:[%s1 + $0x200] sm:$0xff]
  %v115 = vld [vmem:[%s1 + $0x208] sm:$0xff]
  %v116 = vld [vmem:[%s1 + $0x210] sm:$0xff]
  %v117 = vld [vmem:[%s1 + $0x218] sm:$0xff]
  %v118 = vld [vmem:[%s1 + $0x220] sm:$0xff]
  %v119 = vld [vmem:[%s1 + $0x228] sm:$0xff]
  %v120 = vld [vmem:[%s1 + $0x230] sm:$0xff]
  %v121 = vld [vmem:[%s1 + $0x238] sm:$0xff]
  %v122 = vld [vmem:[%s1 + $0x240] sm:$0xff]
  %v123 = vld [vmem:[%s1 + $0x248] sm:$0xff]
  %v124 = vld [vmem:[%s1 + $0x250] sm:$0xff]
  %v125 = vld [vmem:[%s1 + $0x258] sm:$0xff]
  %v126 = vld [vmem:[%s1 + $0x260] sm:$0xff]
  %v127 = vld [vmem:[%s1 + $0x268] sm:$0xff]
  %v128 = vld [vmem:[%s1 + $0x270] sm:$0xff]
  %v129 = vld [vmem:[%s1 + $0x278] sm:$0xff]
  %v130 = vld [vmem:[%s1 + $0x280] sm:$0xff]
  %v131 = vld [vmem:[%s1 + $0x288] sm:$0xff]
  %v132 = vld [vmem:[%s1 + $0x290] sm:$0xff]
  %v133 = vld [vmem:[%s1 + $0x298] sm:$0xff]
  %v134 = vld [vmem:[%s1 + $0x2a0] sm:$0xff]
  %v135 = vld [vmem:[%s1 + $0x2a8] sm:$0xff]
  %v136 = vld [vmem:[%s1 + $0x2b0] sm:$0xff]
  %v137 = vld [vmem:[%s1 + $0x2b8] sm:$0xff]
  %v138 = vld [vmem:[%s1 + $0x2c0] sm:$0xff]
  %v139 = vld [vmem:[%s1 + $0x2c8] sm:$0xff]
  %v140 = vld [vmem:[%s1 + $0x2d0] sm:$0xff]
  %v141 = vld [vmem:[%s1 + $0x2d8] sm:$0xff]
  %v142 = vld [vmem:[%s1 + $0x2e0] sm:$0xff]
  %v143 = vld [vmem:[%s1 + $0x2e8] sm:$0xff]
  %v144 = vld [vmem:[%s1 + $0x2f0] sm:$0xff]
  %v145 = vld [vmem:[%s1 + $0x2f8] sm:$0xff]
  %v146 = vld [vmem:[%s1 + $0x300] sm:$0xff]
  %v147 = vld [vmem:[%s1 + $0x308] sm:$0xff]
  %v148 = vld [vmem:[%s1 + $0x310] sm:$0xff]
  %v149 = vld [vmem:[%s1 + $0x318] sm:$0xff]
  %v150 = vld [vmem:[%s1 + $0x320] sm:$0xff]
  %v151 = vld [vmem:[%s1 + $0x328] sm:$0xff]
  %v152 = vld [vmem:[%s1 + $0x330] sm:$0xff]
  %v153 = vld [vmem:[%s1 + $0x338] sm:$0xff]
  %v154 = vld [vmem:[%s1 + $0x340] sm:$0xff]
  %v155 = vld [vmem:[%s1 + $0x348] sm:$0xff]
  %v156 = vld [vmem:[%s1 + $0x350] sm:$0xff]
  %v157 = vld [vmem:[%s1 + $0x358] sm:$0xff]
  %v158 = vld [vmem:[%s1 + $0x360] sm:$0xff]
  %v159 = vld [vmem:[%s1 + $0x368] sm:$0xff]
  %v160 = vld [vmem:[%s1 + $0x370] sm:$0xff]
  %v161 = vld [vmem:[%s1 + $0x378] sm:$0xff]
  %v162 = vld [vmem:[%s1 + $0x380] sm:$0xff]
  %v163 = vld [vmem:[%s1 + $0x388] sm:$0xff]
  %v164 = vld [vmem:[%s1 + $0x390] sm:$0xff]
  %v165 = vld [vmem:[%s1 + $0x398] sm:$0xff]
  %v166 = vld [vmem:[%s1 + $0x3a0] sm:$0xff]
  %v167 = vld [vmem:[%s1 + $0x3a8] sm:$0xff]
  %v168 = vld [vmem:[%s1 + $0x3b0] sm:$0xff]
  %v169 = vld [vmem:[%s1 + $0x3b8] sm:$0xff]
  %v170 = vld [vmem:[%s1 + $0x3c0] sm:$0xff]
  %v171 = vld [vmem:[%s1 + $0x3c8] sm:$0xff]
  %v172 = vld [vmem:[%s1 + $0x3d0] sm:$0xff]
  %v173 = vld [vmem:[%s1 + $0x3d8] sm:$0xff]
  %v174 = vld [vmem:[%s1 + $0x3e0] sm:$0xff]
  %v175 = vld [vmem:[%s1 + $0x3e8] sm:$0xff]
  %v176 = vld [vmem:[%s1 + $0x3f0] sm:$0xff]
  %v177 = vld [vmem:[%s1 + $0x3f8] sm:$0xff]
  %v178 = vld [vmem:[%s1 + $0x400] sm:$0xff]
  %v179 = vld [vmem:[%s1 + $0x408] sm:$0xff]
  %v180 = vld [vmem:[%s1 + $0x410] sm:$0xff]
  %v181 = vld [vmem:[%s1 + $0x418] sm:$0xff]
  %v182 = vld [vmem:[%s1 + $0x420] sm:$0xff]
  %v183 = vld [vmem:[%s1 + $0x428] sm:$0xff]
  %v184 = vld [vmem:[%s1 + $0x430] sm:$0xff]
  %v185 = vld [vmem:[%s1 + $0x438] sm:$0xff]
  %v186 = vld [vmem:[%s1 + $0x440] sm:$0xff]
  %v187 = vld [vmem:[%s1 + $0x448] sm:$0xff]
  %v188 = vld [vmem:[%s1 + $0x450] sm:$0xff]
  %v189 = vld [vmem:[%s1 + $0x458] sm:$0xff]
  %v190 = vld [vmem:[%s1 + $0x460] sm:$0xff]
  %v191 = vld [vmem:[%s1 + $0x468] sm:$0xff]
  %v192 = vld [vmem:[%s1 + $0x470] sm:$0xff]
  %v193 = vld [vmem:[%s1 + $0x478] sm:$0xff]
  %v194 = vld [vmem:[%s1 + $0x480] sm:$0xff]
  %v195 = vld [vmem:[%s1 + $0x488] sm:$0xff]
  %v196 = vld [vmem:[%s1 + $0x490] sm:$0xff]
  %v197 = vld [vmem:[%s1 + $0x498] sm:$0xff]
  %v198 = vld [vmem:[%s1 + $0x4a0] sm:$0xff]
  %v199 = vld [vmem:[%s1 + $0x4a8] sm:$0xff]
  %v200 = vld [vmem:[%s1 + $0x4b0] sm:$0xff]
  %v201 = vld [vmem:[%s1 + $0x4b8] sm:$0xff]
  %v202 = vld [vmem:[%s1 + $0x4c0] sm:$0xff]
  %v203 = vld [vmem:[%s1 + $0x4c8] sm:$0xff]
  %v204 = vld [vmem:[%s1 + $0x4d0] sm:$0xff]
  %v205 = vld [vmem:[%s1 + $0x4d8] sm:$0xff]
  %v206 = vld [vmem:[%s1 + $0x4e0] sm:$0xff]
  %v207 = vld [vmem:[%s1 + $0x4e8] sm:$0xff]
  %v208 = vld [vmem:[%s1 + $0x4f0] sm:$0xff]
  %v209 = vld [vmem:[%s1 + $0x4f8] sm:$0xff]
  %v210 = vld [vmem:[%s1 + $0x500] sm:$0xff]
  %v211 = vld [vmem:[%s1 + $0x508] sm:$0xff]
  %v212 = vld [vmem:[%s1 + $0x510] sm:$0xff]
  %v213 = vld [vmem:[%s1 + $0x518] sm:$0xff]
  %v214 = vld [vmem:[%s1 + $0x520] sm:$0xff]
  %v215 = vld [vmem:[%s1 + $0x528] sm:$0xff]
  %v216 = vld [vmem:[%s1 + $0x530] sm:$0xff]
  %v217 = vld [vmem:[%s1 + $0x538] sm:$0xff]
  %v218 = vld [vmem:[%s1 + $0x540] sm:$0xff]
  %v219 = vld [vmem:[%s1 + $0x548] sm:$0xff]
  %v220 = vld [vmem:[%s1 + $0x550] sm:$0xff]
  %v221 = vld [vmem:[%s1 + $0x558] sm:$0xff]
  %v222 = vld [vmem:[%s1 + $0x560] sm:$0xff]
  %v223 = vld [vmem:[%s1 + $0x568] sm:$0xff]
  %v224 = vld [vmem:[%s1 + $0x570] sm:$0xff]
  %v225 = vld [vmem:[%s1 + $0x578] sm:$0xff]
  %v226 = vld [vmem:[%s1 + $0x580] sm:$0xff]
  %v227 = vld [vmem:[%s1 + $0x588] sm:$0xff]
  %v228 = vld [vmem:[%s1 + $0x590] sm:$0xff]
  %v229 = vld [vmem:[%s1 + $0x598] sm:$0xff]
  %v230 = vld [vmem:[%s1 + $0x5a0] sm:$0xff]
  %v231 = vld [vmem:[%s1 + $0x5a8] sm:$0xff]
  %v232 = vld [vmem:[%s1 + $0x5b0] sm:$0xff]
  %v233 = vld [vmem:[%s1 + $0x5b8] sm:$0xff]
  %v234 = vld [vmem:[%s1 + $0x5c0] sm:$0xff]
  %v235 = vld [vmem:[%s1 + $0x5c8] sm:$0xff]
  %v236 = vld [vmem:[%s1 + $0x5d0] sm:$0xff]
  %v237 = vld [vmem:[%s1 + $0x5d8] sm:$0xff]
  %v238 = vld [vmem:[%s1 + $0x5e0] sm:$0xff]
  %v239 = vld [vmem:[%s1 + $0x5e8] sm:$0xff]
  %v240 = vld [vmem:[%s1 + $0x5f0] sm:$0xff]
  %v241 = vld [vmem:[%s1 + $0x5f8] sm:$0xff]
  %v242 = vld [vmem:[%s1 + $0x600] sm:$0xff]
  %v243 = vld [vmem:[%s1 + $0x608] sm:$0xff]
  %v244 = vld [vmem:[%s1 + $0x610] sm:$0xff]
  %v245 = vld [vmem:[%s1 + $0x618] sm:$0xff]
  %v246 = vld [vmem:[%s1 + $0x620] sm:$0xff]
  %v247 = vld [vmem:[%s1 + $0x628] sm:$0xff]
  %v248 = vld [vmem:[%s1 + $0x630] sm:$0xff]
  %v249 = vld [vmem:[%s1 + $0x638] sm:$0xff]
  %v250 = vld [vmem:[%s1 + $0x640] sm:$0xff]
  %v251 = vld [vmem:[%s1 + $0x648] sm:$0xff]
  %v252 = vld [vmem:[%s1 + $0x650] sm:$0xff]
  %v253 = vld [vmem:[%s1 + $0x658] sm:$0xff]
  %v254 = vld [vmem:[%s1 + $0x660] sm:$0xff]
  %v255 = vld [vmem:[%s1 + $0x668] sm:$0xff]
  %v256 = vld [vmem:[%s1 + $0x670] sm:$0xff]
  %v257 = vld [vmem:[%s1 + $0x678] sm:$0xff]
  %v258 = vld [vmem:[%s1 + $0x680] sm:$0xff]
  %v259 = vld [vmem:[%s1 + $0x688] sm:$0xff]
  %v260 = vld [vmem:[%s1 + $0x690] sm:$0xff]
  %v261 = vld [vmem:[%s1 + $0x698] sm:$0xff]
  %v262 = vld [vmem:[%s1 + $0x6a0] sm:$0xff]
  %v263 = vld [vmem:[%s1 + $0x6a8] sm:$0xff]
  %v264 = vld [vmem:[%s1 + $0x6b0] sm:$0xff]
  %v265 = vld [vmem:[%s1 + $0x6b8] sm:$0xff]
  %v266 = vld [vmem:[%s1 + $0x6c0] sm:$0xff]
  %v267 = vld [vmem:[%s1 + $0x6c8] sm:$0xff]
  %v268 = vld [vmem:[%s1 + $0x6d0] sm:$0xff]
  %v269 = vld [vmem:[%s1 + $0x6d8] sm:$0xff]
  %v270 = vld [vmem:[%s1 + $0x6e0] sm:$0xff]
  %v271 = vld [vmem:[%s1 + $0x6e8] sm:$0xff]
  %v272 = vld [vmem:[%s1 + $0x6f0] sm:$0xff]
  %v273 = vld [vmem:[%s1 + $0x6f8] sm:$0xff]
  %v274 = vld [vmem:[%s1 + $0x700] sm:$0xff]
  %v275 = vld [vmem:[%s1 + $0x708] sm:$0xff]
  %v276 = vld [vmem:[%s1 + $0x710] sm:$0xff]
  %v277 = vld [vmem:[%s1 + $0x718] sm:$0xff]
  %v278 = vld [vmem:[%s1 + $0x720] sm:$0xff]
  %v279 = vld [vmem:[%s1 + $0x728] sm:$0xff]
  %v280 = vld [vmem:[%s1 + $0x730] sm:$0xff]
  %v281 = vld [vmem:[%s1 + $0x738] sm:$0xff]
  %v282 = vld [vmem:[%s1 + $0x740] sm:$0xff]
  %v283 = vld [vmem:[%s1 + $0x748] sm:$0xff]
  %v284 = vld [vmem:[%s1 + $0x750] sm:$0xff]
  %v285 = vld [vmem:[%s1 + $0x758] sm:$0xff]
  %v286 = vld [vmem:[%s1 + $0x760] sm:$0xff]
  %v287 = vld [vmem:[%s1 + $0x768] sm:$0xff]
  %v288 = vld [vmem:[%s1 + $0x770] sm:$0xff]
  %v289 = vld [vmem:[%s1 + $0x778] sm:$0xff]
  %v290 = vld [vmem:[%s1 + $0x780] sm:$0xff]
  %v291 = vld [vmem:[%s1 + $0x788] sm:$0xff]
  %v292 = vld [vmem:[%s1 + $0x790] sm:$0xff]
  %v293 = vld [vmem:[%s1 + $0x798] sm:$0xff]
  %v294 = vld [vmem:[%s1 + $0x7a0] sm:$0xff]
  %v295 = vld [vmem:[%s1 + $0x7a8] sm:$0xff]
  %v296 = vld [vmem:[%s1 + $0x7b0] sm:$0xff]
  %v297 = vld [vmem:[%s1 + $0x7b8] sm:$0xff]
  %v298 = vld [vmem:[%s1 + $0x7c0] sm:$0xff]
  %v299 = vld [vmem:[%s1 + $0x7c8] sm:$0xff]
  %v300 = vld [vmem:[%s1 + $0x7d0] sm:$0xff]
  %v301 = vld [vmem:[%s1 + $0x7d8] sm:$0xff]
  %v302 = vld [vmem:[%s1 + $0x7e0] sm:$0xff]
  %v303 = vld [vmem:[%s1 + $0x7e8] sm:$0xff]
  %v304 = vld [vmem:[%s1 + $0x7f0] sm:$0xff]
  %v305 = vld [vmem:[%s1 + $0x7f8] sm:$0xff]
  %v306 = vld [vmem:[%s1 + $0x800] sm:$0xff]
  %v307 = vld [vmem:[%s1 + $0x808] sm:$0xff]
  %v308 = vld [vmem:[%s1 + $0x810] sm:$0xff]
  %v309 = vld [vmem:[%s1 + $0x818] sm:$0xff]
  %v310 = vld [vmem:[%s1 + $0x820] sm:$0xff]
  %v311 = vld [vmem:[%s1 + $0x828] sm:$0xff]
  %v312 = vld [vmem:[%s1 + $0x830] sm:$0xff]
  %v313 = vld [vmem:[%s1 + $0x838] sm:$0xff]
  %v314 = vld [vmem:[%s1 + $0x840] sm:$0xff]
  %v315 = vld [vmem:[%s1 + $0x848] sm:$0xff]
  %v316 = vld [vmem:[%s1 + $0x850] sm:$0xff]
  %v317 = vld [vmem:[%s1 + $0x858] sm:$0xff]
  %v318 = vld [vmem:[%s1 + $0x860] sm:$0xff]
  %v319 = vld [vmem:[%s1 + $0x868] sm:$0xff]
  %v320 = vld [vmem:[%s1 + $0x870] sm:$0xff]
  %v321 = vld [vmem:[%s1 + $0x878] sm:$0xff]
  %v322 = vld [vmem:[%s1 + $0x880] sm:$0xff]
  %v323 = vld [vmem:[%s1 + $0x888] sm:$0xff]
  %v324 = vld [vmem:[%s1 + $0x890] sm:$0xff]
  %v325 = vld [vmem:[%s1 + $0x898] sm:$0xff]
  %v326 = vld [vmem:[%s1 + $0x8a0] sm:$0xff]
  %v327 = vld [vmem:[%s1 + $0x8a8] sm:$0xff]
  %v328 = vld [vmem:[%s1 + $0x8b0] sm:$0xff]
  %v329 = vld [vmem:[%s1 + $0x8b8] sm:$0xff]
  %v330 = vld [vmem:[%s1 + $0x8c0] sm:$0xff]
  %v331 = vld [vmem:[%s1 + $0x8c8] sm:$0xff]
  %v332 = vld [vmem:[%s1 + $0x8d0] sm:$0xff]
  %v333 = vld [vmem:[%s1 + $0x8d8] sm:$0xff]
  %v334 = vld [vmem:[%s1 + $0x8e0] sm:$0xff]
  %v335 = vld [vmem:[%s1 + $0x8e8] sm:$0xff]
  %v336 = vld [vmem:[%s1 + $0x8f0] sm:$0xff]
  %v337 = vld [vmem:[%s1 + $0x8f8] sm:$0xff]
  %v338 = vld [vmem:[%s1 + $0x900] sm:$0xff]
  %v339 = vld [vmem:[%s1 + $0x908] sm:$0xff]
  %v340 = vld [vmem:[%s1 + $0x910] sm:$0xff]
  %v341 = vld [vmem:[%s1 + $0x918] sm:$0xff]
  %v342 = vld [vmem:[%s1 + $0x920] sm:$0xff]
  %v343 = vld [vmem:[%s1 + $0x928] sm:$0xff]
  %v344 = vld [vmem:[%s1 + $0x930] sm:$0xff]
  %v345 = vld [vmem:[%s1 + $0x938] sm:$0xff]
  %v346 = vld [vmem:[%s1 + $0x940] sm:$0xff]
  %v347 = vld [vmem:[%s1 + $0x948] sm:$0xff]
  %v348 = vld [vmem:[%s1 + $0x950] sm:$0xff]
  %v349 = vld [vmem:[%s1 + $0x958] sm:$0xff]
  %v350 = vld [vmem:[%s1 + $0x960] sm:$0xff]
  %v351 = vld [vmem:[%s1 + $0x968] sm:$0xff]
  %v352 = vld [vmem:[%s1 + $0x970] sm:$0xff]
  %v353 = vld [vmem:[%s1 + $0x978] sm:$0xff]
  %v354 = vld [vmem:[%s1 + $0x980] sm:$0xff]
  %v355 = vld [vmem:[%s1 + $0x988] sm:$0xff]
  %v356 = vld [vmem:[%s1 + $0x990] sm:$0xff]
  %v357 = vld [vmem:[%s1 + $0x998] sm:$0xff]
  %v358 = vld [vmem:[%s1 + $0x9a0] sm:$0xff]
  %v359 = vld [vmem:[%s1 + $0x9a8] sm:$0xff]
  %v360 = vld [vmem:[%s1 + $0x9b0] sm:$0xff]
  %v361 = vld [vmem:[%s1 + $0x9b8] sm:$0xff]
  %v362 = vld [vmem:[%s1 + $0x9c0] sm:$0xff]
  %v363 = vld [vmem:[%s1 + $0x9c8] sm:$0xff]
  %v364 = vld [vmem:[%s1 + $0x9d0] sm:$0xff]
  %v365 = vld [vmem:[%s1 + $0x9d8] sm:$0xff]
  %v366 = vld [vmem:[%s1 + $0x9e0] sm:$0xff]
  %v367 = vld [vmem:[%s1 + $0x9e8] sm:$0xff]
  %v368 = vld [vmem:[%s1 + $0x9f0] sm:$0xff]
  %v369 = vld [vmem:[%s1 + $0x9f8] sm:$0xff]
  %v370 = vld [vmem:[%s1 + $0xa00] sm:$0xff]
  %v371 = vld [vmem:[%s1 + $0xa08] sm:$0xff]
  %v372 = vld [vmem:[%s1 + $0xa10] sm:$0xff]
  %v373 = vld [vmem:[%s1 + $0xa18] sm:$0xff]
  %v374 = vld [vmem:[%s1 + $0xa20] sm:$0xff]
  %v375 = vld [vmem:[%s1 + $0xa28] sm:$0xff]
  %v376 = vld [vmem:[%s1 + $0xa30] sm:$0xff]
  %v377 = vld [vmem:[%s1 + $0xa38] sm:$0xff]
  %v378 = vld [vmem:[%s1 + $0xa40] sm:$0xff]
  %v379 = vld [vmem:[%s1 + $0xa48] sm:$0xff]
  %v380 = vld [vmem:[%s1 + $0xa50] sm:$0xff]
  %v381 = vld [vmem:[%s1 + $0xa58] sm:$0xff]
  %v382 = vld [vmem:[%s1 + $0xa60] sm:$0xff]
  %v383 = vld [vmem:[%s1 + $0xa68] sm:$0xff]
  %v384 = vld [vmem:[%s1 + $0xa70] sm:$0xff]
  %v385 = vld [vmem:[%s1 + $0xa78] sm:$0xff]
  %v386 = vld [vmem:[%s1 + $0xa80] sm:$0xff]
  %v387 = vld [vmem:[%s1 + $0xa88] sm:$0xff]
  %v388 = vld [vmem:[%s1 + $0xa90] sm:$0xff]
  %v389 = vld [vmem:[%s1 + $0xa98] sm:$0xff]
  %v390 = vld [vmem:[%s1 + $0xaa0] sm:$0xff]
  %v391 = vld [vmem:[%s1 + $0xaa8] sm:$0xff]
  %v392 = vld [vmem:[%s1 + $0xab0] sm:$0xff]
  %v393 = vld [vmem:[%s1 + $0xab8] sm:$0xff]
  %v394 = vld [vmem:[%s1 + $0xac0] sm:$0xff]
  %v395 = vld [vmem:[%s1 + $0xac8] sm:$0xff]
  %v396 = vld [vmem:[%s1 + $0xad0] sm:$0xff]
  %v397 = vld [vmem:[%s1 + $0xad8] sm:$0xff]
  %v398 = vld [vmem:[%s1 + $0xae0] sm:$0xff]
  %v399 = vld [vmem:[%s1 + $0xae8] sm:$0xff]
  %v400 = vld [vmem:[%s1 + $0xaf0] sm:$0xff]
  %v401 = vld [vmem:[%s1 + $0xaf8] sm:$0xff]
  %v402 = vld [vmem:[%s1 + $0xb00] sm:$0xff]
  %v403 = vld [vmem:[%s1 + $0xb08] sm:$0xff]
  %v404 = vld [vmem:[%s1 + $0xb10] sm:$0xff]
  %v405 = vld [vmem:[%s1 + $0xb18] sm:$0xff]
  %v406 = vld [vmem:[%s1 + $0xb20] sm:$0xff]
  %v407 = vld [vmem:[%s1 + $0xb28] sm:$0xff]
  %v408 = vld [vmem:[%s1 + $0xb30] sm:$0xff]
  %v409 = vld [vmem:[%s1 + $0xb38] sm:$0xff]
  %v410 = vld [vmem:[%s1 + $0xb40] sm:$0xff]
  %v411 = vld [vmem:[%s1 + $0xb48] sm:$0xff]
  %v412 = vld [vmem:[%s1 + $0xb50] sm:$0xff]
  %v413 = vld [vmem:[%s1 + $0xb58] sm:$0xff]
  %v414 = vld [vmem:[%s1 + $0xb60] sm:$0xff]
  %v415 = vld [vmem:[%s1 + $0xb68] sm:$0xff]
  %v416 = vld [vmem:[%s1 + $0xb70] sm:$0xff]
  %v417 = vld [vmem:[%s1 + $0xb78] sm:$0xff]
  %v418 = vld [vmem:[%s1 + $0xb80] sm:$0xff]
  %v419 = vld [vmem:[%s1 + $0xb88] sm:$0xff]
  %v420 = vld [vmem:[%s1 + $0xb90] sm:$0xff]
  %v421 = vld [vmem:[%s1 + $0xb98] sm:$0xff]
  %v422 = vld [vmem:[%s1 + $0xba0] sm:$0xff]
  %v423 = vld [vmem:[%s1 + $0xba8] sm:$0xff]
  %v424 = vld [vmem:[%s1 + $0xbb0] sm:$0xff]
  %v425 = vld [vmem:[%s1 + $0xbb8] sm:$0xff]
  %v426 = vld [vmem:[%s1 + $0xbc0] sm:$0xff]
  %v427 = vld [vmem:[%s1 + $0xbc8] sm:$0xff]
  %v428 = vld [vmem:[%s1 + $0xbd0] sm:$0xff]
  %v429 = vld [vmem:[%s1 + $0xbd8] sm:$0xff]
  %v430 = vld [vmem:[%s1 + $0xbe0] sm:$0xff]
  %v431 = vld [vmem:[%s1 + $0xbe8] sm:$0xff]
  %v432 = vld [vmem:[%s1 + $0xbf0] sm:$0xff]
  %v433 = vld [vmem:[%s1 + $0xbf8] sm:$0xff]
  %v434 = vld [vmem:[%s2] sm:$0xff]
  %v436 = vperm.slane %v434, 0
  %v437 = vperm.slane %v434, 1
  %v438 = vperm.slane %v434, 2
  %v439 = vperm.slane %v434, 3
  %v440 = vperm.slane %v434, 4
  %v441 = vperm.slane %v434, 5
  %v442 = vperm.slane %v434, 6
  %v443 = vperm.slane %v434, 7
  %v464 = vunpack.c.l.b16 %v38
  %v465 = vunpack.c.h.b16 %v38
  %v466 = vunpack.c.l.b16 %v39
  %v467 = vunpack.c.h.b16 %v39
  %v468 = vunpack.c.l.b16 %v40
  %v469 = vunpack.c.h.b16 %v40
  %v470 = vunpack.c.l.b16 %v41
  %v471 = vunpack.c.h.b16 %v41
  %v472 = vunpack.c.l.b16 %v42
  %v473 = vunpack.c.h.b16 %v42
  %v474 = vunpack.c.l.b16 %v43
  %v475 = vunpack.c.h.b16 %v43
  %v476 = vunpack.c.l.b16 %v44
  %v477 = vunpack.c.h.b16 %v44
  %v478 = vunpack.c.l.b16 %v45
  %v479 = vunpack.c.h.b16 %v45
  %v480 = vunpack.c.l.b16 %v46
  %v481 = vunpack.c.h.b16 %v46
  %v482 = vunpack.c.l.b16 %v47
  %v483 = vunpack.c.h.b16 %v47
  %v484 = vunpack.c.l.b16 %v48
  %v485 = vunpack.c.h.b16 %v48
  %v486 = vunpack.c.l.b16 %v49
  %v487 = vunpack.c.h.b16 %v49
  %v488 = vpack.c.b16 %v470, %v464
  %v489 = vpack.c.b16 %v471, %v465
  %v490 = vpack.c.b16 %v472, %v466
  %v491 = vpack.c.b16 %v473, %v467
  %v492 = vpack.c.b16 %v474, %v468
  %v493 = vpack.c.b16 %v475, %v469
  %v494 = vpack.c.b16 %v482, %v476
  %v495 = vpack.c.b16 %v483, %v477
  %v496 = vpack.c.b16 %v484, %v478
  %v497 = vpack.c.b16 %v485, %v479
  %v498 = vpack.c.b16 %v486, %v480
  %v499 = vpack.c.b16 %v487, %v481
  %v896 = vunpack.c.l.b16 %v50
  %v897 = vunpack.c.h.b16 %v50
  %v898 = vunpack.c.l.b16 %v51
  %v899 = vunpack.c.h.b16 %v51
  %v900 = vunpack.c.l.b16 %v52
  %v901 = vunpack.c.h.b16 %v52
  %v902 = vunpack.c.l.b16 %v53
  %v903 = vunpack.c.h.b16 %v53
  %v904 = vunpack.c.l.b16 %v54
  %v905 = vunpack.c.h.b16 %v54
  %v906 = vunpack.c.l.b16 %v55
  %v907 = vunpack.c.h.b16 %v55
  %v908 = vunpack.c.l.b16 %v56
  %v909 = vunpack.c.h.b16 %v56
  %v910 = vunpack.c.l.b16 %v57
  %v911 = vunpack.c.h.b16 %v57
  %v912 = vunpack.c.l.b16 %v58
  %v913 = vunpack.c.h.b16 %v58
  %v914 = vunpack.c.l.b16 %v59
  %v915 = vunpack.c.h.b16 %v59
  %v916 = vunpack.c.l.b16 %v60
  %v917 = vunpack.c.h.b16 %v60
  %v918 = vunpack.c.l.b16 %v61
  %v919 = vunpack.c.h.b16 %v61
  %v920 = vunpack.c.l.b16 %v62
  %v921 = vunpack.c.h.b16 %v62
  %v922 = vunpack.c.l.b16 %v63
  %v923 = vunpack.c.h.b16 %v63
  %v924 = vunpack.c.l.b16 %v64
  %v925 = vunpack.c.h.b16 %v64
  %v926 = vunpack.c.l.b16 %v65
  %v927 = vunpack.c.h.b16 %v65
  %v928 = vunpack.c.l.b16 %v66
  %v929 = vunpack.c.h.b16 %v66
  %v930 = vunpack.c.l.b16 %v67
  %v931 = vunpack.c.h.b16 %v67
  %v932 = vunpack.c.l.b16 %v68
  %v933 = vunpack.c.h.b16 %v68
  %v934 = vunpack.c.l.b16 %v69
  %v935 = vunpack.c.h.b16 %v69
  %v936 = vunpack.c.l.b16 %v70
  %v937 = vunpack.c.h.b16 %v70
  %v938 = vunpack.c.l.b16 %v71
  %v939 = vunpack.c.h.b16 %v71
  %v940 = vunpack.c.l.b16 %v72
  %v941 = vunpack.c.h.b16 %v72
  %v942 = vunpack.c.l.b16 %v73
  %v943 = vunpack.c.h.b16 %v73
  %v944 = vunpack.c.l.b16 %v74
  %v945 = vunpack.c.h.b16 %v74
  %v946 = vunpack.c.l.b16 %v75
  %v947 = vunpack.c.h.b16 %v75
  %v948 = vunpack.c.l.b16 %v76
  %v949 = vunpack.c.h.b16 %v76
  %v950 = vunpack.c.l.b16 %v77
  %v951 = vunpack.c.h.b16 %v77
  %v952 = vunpack.c.l.b16 %v78
  %v953 = vunpack.c.h.b16 %v78
  %v954 = vunpack.c.l.b16 %v79
  %v955 = vunpack.c.h.b16 %v79
  %v956 = vunpack.c.l.b16 %v80
  %v957 = vunpack.c.h.b16 %v80
  %v958 = vunpack.c.l.b16 %v81
  %v959 = vunpack.c.h.b16 %v81
  %v960 = vunpack.c.l.b16 %v82
  %v961 = vunpack.c.h.b16 %v82
  %v962 = vunpack.c.l.b16 %v83
  %v963 = vunpack.c.h.b16 %v83
  %v964 = vunpack.c.l.b16 %v84
  %v965 = vunpack.c.h.b16 %v84
  %v966 = vunpack.c.l.b16 %v85
  %v967 = vunpack.c.h.b16 %v85
  %v968 = vunpack.c.l.b16 %v86
  %v969 = vunpack.c.h.b16 %v86
  %v970 = vunpack.c.l.b16 %v87
  %v971 = vunpack.c.h.b16 %v87
  %v972 = vunpack.c.l.b16 %v88
  %v973 = vunpack.c.h.b16 %v88
  %v974 = vunpack.c.l.b16 %v89
  %v975 = vunpack.c.h.b16 %v89
  %v976 = vunpack.c.l.b16 %v90
  %v977 = vunpack.c.h.b16 %v90
  %v978 = vunpack.c.l.b16 %v91
  %v979 = vunpack.c.h.b16 %v91
  %v980 = vunpack.c.l.b16 %v92
  %v981 = vunpack.c.h.b16 %v92
  %v982 = vunpack.c.l.b16 %v93
  %v983 = vunpack.c.h.b16 %v93
  %v984 = vunpack.c.l.b16 %v94
  %v985 = vunpack.c.h.b16 %v94
  %v986 = vunpack.c.l.b16 %v95
  %v987 = vunpack.c.h.b16 %v95
  %v988 = vunpack.c.l.b16 %v96
  %v989 = vunpack.c.h.b16 %v96
  %v990 = vunpack.c.l.b16 %v97
  %v991 = vunpack.c.h.b16 %v97
  %v992 = vunpack.c.l.b16 %v98
  %v993 = vunpack.c.h.b16 %v98
  %v994 = vunpack.c.l.b16 %v99
  %v995 = vunpack.c.h.b16 %v99
  %v996 = vunpack.c.l.b16 %v100
  %v997 = vunpack.c.h.b16 %v100
  %v998 = vunpack.c.l.b16 %v101
  %v999 = vunpack.c.h.b16 %v101
  %v1000 = vunpack.c.l.b16 %v102
  %v1001 = vunpack.c.h.b16 %v102
  %v1002 = vunpack.c.l.b16 %v103
  %v1003 = vunpack.c.h.b16 %v103
  %v1004 = vunpack.c.l.b16 %v104
  %v1005 = vunpack.c.h.b16 %v104
  %v1006 = vunpack.c.l.b16 %v105
  %v1007 = vunpack.c.h.b16 %v105
  %v1008 = vunpack.c.l.b16 %v106
  %v1009 = vunpack.c.h.b16 %v106
  %v1010 = vunpack.c.l.b16 %v107
  %v1011 = vunpack.c.h.b16 %v107
  %v1012 = vunpack.c.l.b16 %v108
  %v1013 = vunpack.c.h.b16 %v108
  %v1014 = vunpack.c.l.b16 %v109
  %v1015 = vunpack.c.h.b16 %v109
  %v1016 = vunpack.c.l.b16 %v110
  %v1017 = vunpack.c.h.b16 %v110
  %v1018 = vunpack.c.l.b16 %v111
  %v1019 = vunpack.c.h.b16 %v111
  %v1020 = vunpack.c.l.b16 %v112
  %v1021 = vunpack.c.h.b16 %v112
  %v1022 = vunpack.c.l.b16 %v113
  %v1023 = vunpack.c.h.b16 %v113
  %v1024 = vunpack.c.l.b16 %v114
  %v1025 = vunpack.c.h.b16 %v114
  %v1026 = vunpack.c.l.b16 %v115
  %v1027 = vunpack.c.h.b16 %v115
  %v1028 = vunpack.c.l.b16 %v116
  %v1029 = vunpack.c.h.b16 %v116
  %v1030 = vunpack.c.l.b16 %v117
  %v1031 = vunpack.c.h.b16 %v117
  %v1032 = vunpack.c.l.b16 %v118
  %v1033 = vunpack.c.h.b16 %v118
  %v1034 = vunpack.c.l.b16 %v119
  %v1035 = vunpack.c.h.b16 %v119
  %v1036 = vunpack.c.l.b16 %v120
  %v1037 = vunpack.c.h.b16 %v120
  %v1038 = vunpack.c.l.b16 %v121
  %v1039 = vunpack.c.h.b16 %v121
  %v1040 = vunpack.c.l.b16 %v122
  %v1041 = vunpack.c.h.b16 %v122
  %v1042 = vunpack.c.l.b16 %v123
  %v1043 = vunpack.c.h.b16 %v123
  %v1044 = vunpack.c.l.b16 %v124
  %v1045 = vunpack.c.h.b16 %v124
  %v1046 = vunpack.c.l.b16 %v125
  %v1047 = vunpack.c.h.b16 %v125
  %v1048 = vunpack.c.l.b16 %v126
  %v1049 = vunpack.c.h.b16 %v126
  %v1050 = vunpack.c.l.b16 %v127
  %v1051 = vunpack.c.h.b16 %v127
  %v1052 = vunpack.c.l.b16 %v128
  %v1053 = vunpack.c.h.b16 %v128
  %v1054 = vunpack.c.l.b16 %v129
  %v1055 = vunpack.c.h.b16 %v129
  %v1056 = vunpack.c.l.b16 %v130
  %v1057 = vunpack.c.h.b16 %v130
  %v1058 = vunpack.c.l.b16 %v131
  %v1059 = vunpack.c.h.b16 %v131
  %v1060 = vunpack.c.l.b16 %v132
  %v1061 = vunpack.c.h.b16 %v132
  %v1062 = vunpack.c.l.b16 %v133
  %v1063 = vunpack.c.h.b16 %v133
  %v1064 = vunpack.c.l.b16 %v134
  %v1065 = vunpack.c.h.b16 %v134
  %v1066 = vunpack.c.l.b16 %v135
  %v1067 = vunpack.c.h.b16 %v135
  %v1068 = vunpack.c.l.b16 %v136
  %v1069 = vunpack.c.h.b16 %v136
  %v1070 = vunpack.c.l.b16 %v137
  %v1071 = vunpack.c.h.b16 %v137
  %v1072 = vunpack.c.l.b16 %v138
  %v1073 = vunpack.c.h.b16 %v138
  %v1074 = vunpack.c.l.b16 %v139
  %v1075 = vunpack.c.h.b16 %v139
  %v1076 = vunpack.c.l.b16 %v140
  %v1077 = vunpack.c.h.b16 %v140
  %v1078 = vunpack.c.l.b16 %v141
  %v1079 = vunpack.c.h.b16 %v141
  %v1080 = vunpack.c.l.b16 %v142
  %v1081 = vunpack.c.h.b16 %v142
  %v1082 = vunpack.c.l.b16 %v143
  %v1083 = vunpack.c.h.b16 %v143
  %v1084 = vunpack.c.l.b16 %v144
  %v1085 = vunpack.c.h.b16 %v144
  %v1086 = vunpack.c.l.b16 %v145
  %v1087 = vunpack.c.h.b16 %v145
  %v1088 = vunpack.c.l.b16 %v146
  %v1089 = vunpack.c.h.b16 %v146
  %v1090 = vunpack.c.l.b16 %v147
  %v1091 = vunpack.c.h.b16 %v147
  %v1092 = vunpack.c.l.b16 %v148
  %v1093 = vunpack.c.h.b16 %v148
  %v1094 = vunpack.c.l.b16 %v149
  %v1095 = vunpack.c.h.b16 %v149
  %v1096 = vunpack.c.l.b16 %v150
  %v1097 = vunpack.c.h.b16 %v150
  %v1098 = vunpack.c.l.b16 %v151
  %v1099 = vunpack.c.h.b16 %v151
  %v1100 = vunpack.c.l.b16 %v152
  %v1101 = vunpack.c.h.b16 %v152
  %v1102 = vunpack.c.l.b16 %v153
  %v1103 = vunpack.c.h.b16 %v153
  %v1104 = vunpack.c.l.b16 %v154
  %v1105 = vunpack.c.h.b16 %v154
  %v1106 = vunpack.c.l.b16 %v155
  %v1107 = vunpack.c.h.b16 %v155
  %v1108 = vunpack.c.l.b16 %v156
  %v1109 = vunpack.c.h.b16 %v156
  %v1110 = vunpack.c.l.b16 %v157
  %v1111 = vunpack.c.h.b16 %v157
  %v1112 = vunpack.c.l.b16 %v158
  %v1113 = vunpack.c.h.b16 %v158
  %v1114 = vunpack.c.l.b16 %v159
  %v1115 = vunpack.c.h.b16 %v159
  %v1116 = vunpack.c.l.b16 %v160
  %v1117 = vunpack.c.h.b16 %v160
  %v1118 = vunpack.c.l.b16 %v161
  %v1119 = vunpack.c.h.b16 %v161
  %v1120 = vunpack.c.l.b16 %v162
  %v1121 = vunpack.c.h.b16 %v162
  %v1122 = vunpack.c.l.b16 %v163
  %v1123 = vunpack.c.h.b16 %v163
  %v1124 = vunpack.c.l.b16 %v164
  %v1125 = vunpack.c.h.b16 %v164
  %v1126 = vunpack.c.l.b16 %v165
  %v1127 = vunpack.c.h.b16 %v165
  %v1128 = vunpack.c.l.b16 %v166
  %v1129 = vunpack.c.h.b16 %v166
  %v1130 = vunpack.c.l.b16 %v167
  %v1131 = vunpack.c.h.b16 %v167
  %v1132 = vunpack.c.l.b16 %v168
  %v1133 = vunpack.c.h.b16 %v168
  %v1134 = vunpack.c.l.b16 %v169
  %v1135 = vunpack.c.h.b16 %v169
  %v1136 = vunpack.c.l.b16 %v170
  %v1137 = vunpack.c.h.b16 %v170
  %v1138 = vunpack.c.l.b16 %v171
  %v1139 = vunpack.c.h.b16 %v171
  %v1140 = vunpack.c.l.b16 %v172
  %v1141 = vunpack.c.h.b16 %v172
  %v1142 = vunpack.c.l.b16 %v173
  %v1143 = vunpack.c.h.b16 %v173
  %v1144 = vunpack.c.l.b16 %v174
  %v1145 = vunpack.c.h.b16 %v174
  %v1146 = vunpack.c.l.b16 %v175
  %v1147 = vunpack.c.h.b16 %v175
  %v1148 = vunpack.c.l.b16 %v176
  %v1149 = vunpack.c.h.b16 %v176
  %v1150 = vunpack.c.l.b16 %v177
  %v1151 = vunpack.c.h.b16 %v177
  %v1152 = vunpack.c.l.b16 %v178
  %v1153 = vunpack.c.h.b16 %v178
  %v1154 = vunpack.c.l.b16 %v179
  %v1155 = vunpack.c.h.b16 %v179
  %v1156 = vunpack.c.l.b16 %v180
  %v1157 = vunpack.c.h.b16 %v180
  %v1158 = vunpack.c.l.b16 %v181
  %v1159 = vunpack.c.h.b16 %v181
  %v1160 = vunpack.c.l.b16 %v182
  %v1161 = vunpack.c.h.b16 %v182
  %v1162 = vunpack.c.l.b16 %v183
  %v1163 = vunpack.c.h.b16 %v183
  %v1164 = vunpack.c.l.b16 %v184
  %v1165 = vunpack.c.h.b16 %v184
  %v1166 = vunpack.c.l.b16 %v185
  %v1167 = vunpack.c.h.b16 %v185
  %v1168 = vunpack.c.l.b16 %v186
  %v1169 = vunpack.c.h.b16 %v186
  %v1170 = vunpack.c.l.b16 %v187
  %v1171 = vunpack.c.h.b16 %v187
  %v1172 = vunpack.c.l.b16 %v188
  %v1173 = vunpack.c.h.b16 %v188
  %v1174 = vunpack.c.l.b16 %v189
  %v1175 = vunpack.c.h.b16 %v189
  %v1176 = vunpack.c.l.b16 %v190
  %v1177 = vunpack.c.h.b16 %v190
  %v1178 = vunpack.c.l.b16 %v191
  %v1179 = vunpack.c.h.b16 %v191
  %v1180 = vunpack.c.l.b16 %v192
  %v1181 = vunpack.c.h.b16 %v192
  %v1182 = vunpack.c.l.b16 %v193
  %v1183 = vunpack.c.h.b16 %v193
  %v1184 = vunpack.c.l.b16 %v194
  %v1185 = vunpack.c.h.b16 %v194
  %v1186 = vunpack.c.l.b16 %v195
  %v1187 = vunpack.c.h.b16 %v195
  %v1188 = vunpack.c.l.b16 %v196
  %v1189 = vunpack.c.h.b16 %v196
  %v1190 = vunpack.c.l.b16 %v197
  %v1191 = vunpack.c.h.b16 %v197
  %v1192 = vunpack.c.l.b16 %v198
  %v1193 = vunpack.c.h.b16 %v198
  %v1194 = vunpack.c.l.b16 %v199
  %v1195 = vunpack.c.h.b16 %v199
  %v1196 = vunpack.c.l.b16 %v200
  %v1197 = vunpack.c.h.b16 %v200
  %v1198 = vunpack.c.l.b16 %v201
  %v1199 = vunpack.c.h.b16 %v201
  %v1200 = vunpack.c.l.b16 %v202
  %v1201 = vunpack.c.h.b16 %v202
  %v1202 = vunpack.c.l.b16 %v203
  %v1203 = vunpack.c.h.b16 %v203
  %v1204 = vunpack.c.l.b16 %v204
  %v1205 = vunpack.c.h.b16 %v204
  %v1206 = vunpack.c.l.b16 %v205
  %v1207 = vunpack.c.h.b16 %v205
  %v1208 = vunpack.c.l.b16 %v206
  %v1209 = vunpack.c.h.b16 %v206
  %v1210 = vunpack.c.l.b16 %v207
  %v1211 = vunpack.c.h.b16 %v207
  %v1212 = vunpack.c.l.b16 %v208
  %v1213 = vunpack.c.h.b16 %v208
  %v1214 = vunpack.c.l.b16 %v209
  %v1215 = vunpack.c.h.b16 %v209
  %v1216 = vunpack.c.l.b16 %v210
  %v1217 = vunpack.c.h.b16 %v210
  %v1218 = vunpack.c.l.b16 %v211
  %v1219 = vunpack.c.h.b16 %v211
  %v1220 = vunpack.c.l.b16 %v212
  %v1221 = vunpack.c.h.b16 %v212
  %v1222 = vunpack.c.l.b16 %v213
  %v1223 = vunpack.c.h.b16 %v213
  %v1224 = vunpack.c.l.b16 %v214
  %v1225 = vunpack.c.h.b16 %v214
  %v1226 = vunpack.c.l.b16 %v215
  %v1227 = vunpack.c.h.b16 %v215
  %v1228 = vunpack.c.l.b16 %v216
  %v1229 = vunpack.c.h.b16 %v216
  %v1230 = vunpack.c.l.b16 %v217
  %v1231 = vunpack.c.h.b16 %v217
  %v1232 = vunpack.c.l.b16 %v218
  %v1233 = vunpack.c.h.b16 %v218
  %v1234 = vunpack.c.l.b16 %v219
  %v1235 = vunpack.c.h.b16 %v219
  %v1236 = vunpack.c.l.b16 %v220
  %v1237 = vunpack.c.h.b16 %v220
  %v1238 = vunpack.c.l.b16 %v221
  %v1239 = vunpack.c.h.b16 %v221
  %v1240 = vunpack.c.l.b16 %v222
  %v1241 = vunpack.c.h.b16 %v222
  %v1242 = vunpack.c.l.b16 %v223
  %v1243 = vunpack.c.h.b16 %v223
  %v1244 = vunpack.c.l.b16 %v224
  %v1245 = vunpack.c.h.b16 %v224
  %v1246 = vunpack.c.l.b16 %v225
  %v1247 = vunpack.c.h.b16 %v225
  %v1248 = vunpack.c.l.b16 %v226
  %v1249 = vunpack.c.h.b16 %v226
  %v1250 = vunpack.c.l.b16 %v227
  %v1251 = vunpack.c.h.b16 %v227
  %v1252 = vunpack.c.l.b16 %v228
  %v1253 = vunpack.c.h.b16 %v228
  %v1254 = vunpack.c.l.b16 %v229
  %v1255 = vunpack.c.h.b16 %v229
  %v1256 = vunpack.c.l.b16 %v230
  %v1257 = vunpack.c.h.b16 %v230
  %v1258 = vunpack.c.l.b16 %v231
  %v1259 = vunpack.c.h.b16 %v231
  %v1260 = vunpack.c.l.b16 %v232
  %v1261 = vunpack.c.h.b16 %v232
  %v1262 = vunpack.c.l.b16 %v233
  %v1263 = vunpack.c.h.b16 %v233
  %v1264 = vunpack.c.l.b16 %v234
  %v1265 = vunpack.c.h.b16 %v234
  %v1266 = vunpack.c.l.b16 %v235
  %v1267 = vunpack.c.h.b16 %v235
  %v1268 = vunpack.c.l.b16 %v236
  %v1269 = vunpack.c.h.b16 %v236
  %v1270 = vunpack.c.l.b16 %v237
  %v1271 = vunpack.c.h.b16 %v237
  %v1272 = vunpack.c.l.b16 %v238
  %v1273 = vunpack.c.h.b16 %v238
  %v1274 = vunpack.c.l.b16 %v239
  %v1275 = vunpack.c.h.b16 %v239
  %v1276 = vunpack.c.l.b16 %v240
  %v1277 = vunpack.c.h.b16 %v240
  %v1278 = vunpack.c.l.b16 %v241
  %v1279 = vunpack.c.h.b16 %v241
  %v1280 = vunpack.c.l.b16 %v242
  %v1281 = vunpack.c.h.b16 %v242
  %v1282 = vunpack.c.l.b16 %v243
  %v1283 = vunpack.c.h.b16 %v243
  %v1284 = vunpack.c.l.b16 %v244
  %v1285 = vunpack.c.h.b16 %v244
  %v1286 = vunpack.c.l.b16 %v245
  %v1287 = vunpack.c.h.b16 %v245
  %v1288 = vunpack.c.l.b16 %v246
  %v1289 = vunpack.c.h.b16 %v246
  %v1290 = vunpack.c.l.b16 %v247
  %v1291 = vunpack.c.h.b16 %v247
  %v1292 = vunpack.c.l.b16 %v248
  %v1293 = vunpack.c.h.b16 %v248
  %v1294 = vunpack.c.l.b16 %v249
  %v1295 = vunpack.c.h.b16 %v249
  %v1296 = vunpack.c.l.b16 %v250
  %v1297 = vunpack.c.h.b16 %v250
  %v1298 = vunpack.c.l.b16 %v251
  %v1299 = vunpack.c.h.b16 %v251
  %v1300 = vunpack.c.l.b16 %v252
  %v1301 = vunpack.c.h.b16 %v252
  %v1302 = vunpack.c.l.b16 %v253
  %v1303 = vunpack.c.h.b16 %v253
  %v1304 = vunpack.c.l.b16 %v254
  %v1305 = vunpack.c.h.b16 %v254
  %v1306 = vunpack.c.l.b16 %v255
  %v1307 = vunpack.c.h.b16 %v255
  %v1308 = vunpack.c.l.b16 %v256
  %v1309 = vunpack.c.h.b16 %v256
  %v1310 = vunpack.c.l.b16 %v257
  %v1311 = vunpack.c.h.b16 %v257
  %v1312 = vunpack.c.l.b16 %v258
  %v1313 = vunpack.c.h.b16 %v258
  %v1314 = vunpack.c.l.b16 %v259
  %v1315 = vunpack.c.h.b16 %v259
  %v1316 = vunpack.c.l.b16 %v260
  %v1317 = vunpack.c.h.b16 %v260
  %v1318 = vunpack.c.l.b16 %v261
  %v1319 = vunpack.c.h.b16 %v261
  %v1320 = vunpack.c.l.b16 %v262
  %v1321 = vunpack.c.h.b16 %v262
  %v1322 = vunpack.c.l.b16 %v263
  %v1323 = vunpack.c.h.b16 %v263
  %v1324 = vunpack.c.l.b16 %v264
  %v1325 = vunpack.c.h.b16 %v264
  %v1326 = vunpack.c.l.b16 %v265
  %v1327 = vunpack.c.h.b16 %v265
  %v1328 = vunpack.c.l.b16 %v266
  %v1329 = vunpack.c.h.b16 %v266
  %v1330 = vunpack.c.l.b16 %v267
  %v1331 = vunpack.c.h.b16 %v267
  %v1332 = vunpack.c.l.b16 %v268
  %v1333 = vunpack.c.h.b16 %v268
  %v1334 = vunpack.c.l.b16 %v269
  %v1335 = vunpack.c.h.b16 %v269
  %v1336 = vunpack.c.l.b16 %v270
  %v1337 = vunpack.c.h.b16 %v270
  %v1338 = vunpack.c.l.b16 %v271
  %v1339 = vunpack.c.h.b16 %v271
  %v1340 = vunpack.c.l.b16 %v272
  %v1341 = vunpack.c.h.b16 %v272
  %v1342 = vunpack.c.l.b16 %v273
  %v1343 = vunpack.c.h.b16 %v273
  %v1344 = vunpack.c.l.b16 %v274
  %v1345 = vunpack.c.h.b16 %v274
  %v1346 = vunpack.c.l.b16 %v275
  %v1347 = vunpack.c.h.b16 %v275
  %v1348 = vunpack.c.l.b16 %v276
  %v1349 = vunpack.c.h.b16 %v276
  %v1350 = vunpack.c.l.b16 %v277
  %v1351 = vunpack.c.h.b16 %v277
  %v1352 = vunpack.c.l.b16 %v278
  %v1353 = vunpack.c.h.b16 %v278
  %v1354 = vunpack.c.l.b16 %v279
  %v1355 = vunpack.c.h.b16 %v279
  %v1356 = vunpack.c.l.b16 %v280
  %v1357 = vunpack.c.h.b16 %v280
  %v1358 = vunpack.c.l.b16 %v281
  %v1359 = vunpack.c.h.b16 %v281
  %v1360 = vunpack.c.l.b16 %v282
  %v1361 = vunpack.c.h.b16 %v282
  %v1362 = vunpack.c.l.b16 %v283
  %v1363 = vunpack.c.h.b16 %v283
  %v1364 = vunpack.c.l.b16 %v284
  %v1365 = vunpack.c.h.b16 %v284
  %v1366 = vunpack.c.l.b16 %v285
  %v1367 = vunpack.c.h.b16 %v285
  %v1368 = vunpack.c.l.b16 %v286
  %v1369 = vunpack.c.h.b16 %v286
  %v1370 = vunpack.c.l.b16 %v287
  %v1371 = vunpack.c.h.b16 %v287
  %v1372 = vunpack.c.l.b16 %v288
  %v1373 = vunpack.c.h.b16 %v288
  %v1374 = vunpack.c.l.b16 %v289
  %v1375 = vunpack.c.h.b16 %v289
  %v1376 = vunpack.c.l.b16 %v290
  %v1377 = vunpack.c.h.b16 %v290
  %v1378 = vunpack.c.l.b16 %v291
  %v1379 = vunpack.c.h.b16 %v291
  %v1380 = vunpack.c.l.b16 %v292
  %v1381 = vunpack.c.h.b16 %v292
  %v1382 = vunpack.c.l.b16 %v293
  %v1383 = vunpack.c.h.b16 %v293
  %v1384 = vunpack.c.l.b16 %v294
  %v1385 = vunpack.c.h.b16 %v294
  %v1386 = vunpack.c.l.b16 %v295
  %v1387 = vunpack.c.h.b16 %v295
  %v1388 = vunpack.c.l.b16 %v296
  %v1389 = vunpack.c.h.b16 %v296
  %v1390 = vunpack.c.l.b16 %v297
  %v1391 = vunpack.c.h.b16 %v297
  %v1392 = vunpack.c.l.b16 %v298
  %v1393 = vunpack.c.h.b16 %v298
  %v1394 = vunpack.c.l.b16 %v299
  %v1395 = vunpack.c.h.b16 %v299
  %v1396 = vunpack.c.l.b16 %v300
  %v1397 = vunpack.c.h.b16 %v300
  %v1398 = vunpack.c.l.b16 %v301
  %v1399 = vunpack.c.h.b16 %v301
  %v1400 = vunpack.c.l.b16 %v302
  %v1401 = vunpack.c.h.b16 %v302
  %v1402 = vunpack.c.l.b16 %v303
  %v1403 = vunpack.c.h.b16 %v303
  %v1404 = vunpack.c.l.b16 %v304
  %v1405 = vunpack.c.h.b16 %v304
  %v1406 = vunpack.c.l.b16 %v305
  %v1407 = vunpack.c.h.b16 %v305
  %v1408 = vunpack.c.l.b16 %v306
  %v1409 = vunpack.c.h.b16 %v306
  %v1410 = vunpack.c.l.b16 %v307
  %v1411 = vunpack.c.h.b16 %v307
  %v1412 = vunpack.c.l.b16 %v308
  %v1413 = vunpack.c.h.b16 %v308
  %v1414 = vunpack.c.l.b16 %v309
  %v1415 = vunpack.c.h.b16 %v309
  %v1416 = vunpack.c.l.b16 %v310
  %v1417 = vunpack.c.h.b16 %v310
  %v1418 = vunpack.c.l.b16 %v311
  %v1419 = vunpack.c.h.b16 %v311
  %v1420 = vunpack.c.l.b16 %v312
  %v1421 = vunpack.c.h.b16 %v312
  %v1422 = vunpack.c.l.b16 %v313
  %v1423 = vunpack.c.h.b16 %v313
  %v1424 = vunpack.c.l.b16 %v314
  %v1425 = vunpack.c.h.b16 %v314
  %v1426 = vunpack.c.l.b16 %v315
  %v1427 = vunpack.c.h.b16 %v315
  %v1428 = vunpack.c.l.b16 %v316
  %v1429 = vunpack.c.h.b16 %v316
  %v1430 = vunpack.c.l.b16 %v317
  %v1431 = vunpack.c.h.b16 %v317
  %v1432 = vunpack.c.l.b16 %v318
  %v1433 = vunpack.c.h.b16 %v318
  %v1434 = vunpack.c.l.b16 %v319
  %v1435 = vunpack.c.h.b16 %v319
  %v1436 = vunpack.c.l.b16 %v320
  %v1437 = vunpack.c.h.b16 %v320
  %v1438 = vunpack.c.l.b16 %v321
  %v1439 = vunpack.c.h.b16 %v321
  %v1440 = vunpack.c.l.b16 %v322
  %v1441 = vunpack.c.h.b16 %v322
  %v1442 = vunpack.c.l.b16 %v323
  %v1443 = vunpack.c.h.b16 %v323
  %v1444 = vunpack.c.l.b16 %v324
  %v1445 = vunpack.c.h.b16 %v324
  %v1446 = vunpack.c.l.b16 %v325
  %v1447 = vunpack.c.h.b16 %v325
  %v1448 = vunpack.c.l.b16 %v326
  %v1449 = vunpack.c.h.b16 %v326
  %v1450 = vunpack.c.l.b16 %v327
  %v1451 = vunpack.c.h.b16 %v327
  %v1452 = vunpack.c.l.b16 %v328
  %v1453 = vunpack.c.h.b16 %v328
  %v1454 = vunpack.c.l.b16 %v329
  %v1455 = vunpack.c.h.b16 %v329
  %v1456 = vunpack.c.l.b16 %v330
  %v1457 = vunpack.c.h.b16 %v330
  %v1458 = vunpack.c.l.b16 %v331
  %v1459 = vunpack.c.h.b16 %v331
  %v1460 = vunpack.c.l.b16 %v332
  %v1461 = vunpack.c.h.b16 %v332
  %v1462 = vunpack.c.l.b16 %v333
  %v1463 = vunpack.c.h.b16 %v333
  %v1464 = vunpack.c.l.b16 %v334
  %v1465 = vunpack.c.h.b16 %v334
  %v1466 = vunpack.c.l.b16 %v335
  %v1467 = vunpack.c.h.b16 %v335
  %v1468 = vunpack.c.l.b16 %v336
  %v1469 = vunpack.c.h.b16 %v336
  %v1470 = vunpack.c.l.b16 %v337
  %v1471 = vunpack.c.h.b16 %v337
  %v1472 = vunpack.c.l.b16 %v338
  %v1473 = vunpack.c.h.b16 %v338
  %v1474 = vunpack.c.l.b16 %v339
  %v1475 = vunpack.c.h.b16 %v339
  %v1476 = vunpack.c.l.b16 %v340
  %v1477 = vunpack.c.h.b16 %v340
  %v1478 = vunpack.c.l.b16 %v341
  %v1479 = vunpack.c.h.b16 %v341
  %v1480 = vunpack.c.l.b16 %v342
  %v1481 = vunpack.c.h.b16 %v342
  %v1482 = vunpack.c.l.b16 %v343
  %v1483 = vunpack.c.h.b16 %v343
  %v1484 = vunpack.c.l.b16 %v344
  %v1485 = vunpack.c.h.b16 %v344
  %v1486 = vunpack.c.l.b16 %v345
  %v1487 = vunpack.c.h.b16 %v345
  %v1488 = vunpack.c.l.b16 %v346
  %v1489 = vunpack.c.h.b16 %v346
  %v1490 = vunpack.c.l.b16 %v347
  %v1491 = vunpack.c.h.b16 %v347
  %v1492 = vunpack.c.l.b16 %v348
  %v1493 = vunpack.c.h.b16 %v348
  %v1494 = vunpack.c.l.b16 %v349
  %v1495 = vunpack.c.h.b16 %v349
  %v1496 = vunpack.c.l.b16 %v350
  %v1497 = vunpack.c.h.b16 %v350
  %v1498 = vunpack.c.l.b16 %v351
  %v1499 = vunpack.c.h.b16 %v351
  %v1500 = vunpack.c.l.b16 %v352
  %v1501 = vunpack.c.h.b16 %v352
  %v1502 = vunpack.c.l.b16 %v353
  %v1503 = vunpack.c.h.b16 %v353
  %v1504 = vunpack.c.l.b16 %v354
  %v1505 = vunpack.c.h.b16 %v354
  %v1506 = vunpack.c.l.b16 %v355
  %v1507 = vunpack.c.h.b16 %v355
  %v1508 = vunpack.c.l.b16 %v356
  %v1509 = vunpack.c.h.b16 %v356
  %v1510 = vunpack.c.l.b16 %v357
  %v1511 = vunpack.c.h.b16 %v357
  %v1512 = vunpack.c.l.b16 %v358
  %v1513 = vunpack.c.h.b16 %v358
  %v1514 = vunpack.c.l.b16 %v359
  %v1515 = vunpack.c.h.b16 %v359
  %v1516 = vunpack.c.l.b16 %v360
  %v1517 = vunpack.c.h.b16 %v360
  %v1518 = vunpack.c.l.b16 %v361
  %v1519 = vunpack.c.h.b16 %v361
  %v1520 = vunpack.c.l.b16 %v362
  %v1521 = vunpack.c.h.b16 %v362
  %v1522 = vunpack.c.l.b16 %v363
  %v1523 = vunpack.c.h.b16 %v363
  %v1524 = vunpack.c.l.b16 %v364
  %v1525 = vunpack.c.h.b16 %v364
  %v1526 = vunpack.c.l.b16 %v365
  %v1527 = vunpack.c.h.b16 %v365
  %v1528 = vunpack.c.l.b16 %v366
  %v1529 = vunpack.c.h.b16 %v366
  %v1530 = vunpack.c.l.b16 %v367
  %v1531 = vunpack.c.h.b16 %v367
  %v1532 = vunpack.c.l.b16 %v368
  %v1533 = vunpack.c.h.b16 %v368
  %v1534 = vunpack.c.l.b16 %v369
  %v1535 = vunpack.c.h.b16 %v369
  %v1536 = vunpack.c.l.b16 %v370
  %v1537 = vunpack.c.h.b16 %v370
  %v1538 = vunpack.c.l.b16 %v371
  %v1539 = vunpack.c.h.b16 %v371
  %v1540 = vunpack.c.l.b16 %v372
  %v1541 = vunpack.c.h.b16 %v372
  %v1542 = vunpack.c.l.b16 %v373
  %v1543 = vunpack.c.h.b16 %v373
  %v1544 = vunpack.c.l.b16 %v374
  %v1545 = vunpack.c.h.b16 %v374
  %v1546 = vunpack.c.l.b16 %v375
  %v1547 = vunpack.c.h.b16 %v375
  %v1548 = vunpack.c.l.b16 %v376
  %v1549 = vunpack.c.h.b16 %v376
  %v1550 = vunpack.c.l.b16 %v377
  %v1551 = vunpack.c.h.b16 %v377
  %v1552 = vunpack.c.l.b16 %v378
  %v1553 = vunpack.c.h.b16 %v378
  %v1554 = vunpack.c.l.b16 %v379
  %v1555 = vunpack.c.h.b16 %v379
  %v1556 = vunpack.c.l.b16 %v380
  %v1557 = vunpack.c.h.b16 %v380
  %v1558 = vunpack.c.l.b16 %v381
  %v1559 = vunpack.c.h.b16 %v381
  %v1560 = vunpack.c.l.b16 %v382
  %v1561 = vunpack.c.h.b16 %v382
  %v1562 = vunpack.c.l.b16 %v383
  %v1563 = vunpack.c.h.b16 %v383
  %v1564 = vunpack.c.l.b16 %v384
  %v1565 = vunpack.c.h.b16 %v384
  %v1566 = vunpack.c.l.b16 %v385
  %v1567 = vunpack.c.h.b16 %v385
  %v1568 = vunpack.c.l.b16 %v386
  %v1569 = vunpack.c.h.b16 %v386
  %v1570 = vunpack.c.l.b16 %v387
  %v1571 = vunpack.c.h.b16 %v387
  %v1572 = vunpack.c.l.b16 %v388
  %v1573 = vunpack.c.h.b16 %v388
  %v1574 = vunpack.c.l.b16 %v389
  %v1575 = vunpack.c.h.b16 %v389
  %v1576 = vunpack.c.l.b16 %v390
  %v1577 = vunpack.c.h.b16 %v390
  %v1578 = vunpack.c.l.b16 %v391
  %v1579 = vunpack.c.h.b16 %v391
  %v1580 = vunpack.c.l.b16 %v392
  %v1581 = vunpack.c.h.b16 %v392
  %v1582 = vunpack.c.l.b16 %v393
  %v1583 = vunpack.c.h.b16 %v393
  %v1584 = vunpack.c.l.b16 %v394
  %v1585 = vunpack.c.h.b16 %v394
  %v1586 = vunpack.c.l.b16 %v395
  %v1587 = vunpack.c.h.b16 %v395
  %v1588 = vunpack.c.l.b16 %v396
  %v1589 = vunpack.c.h.b16 %v396
  %v1590 = vunpack.c.l.b16 %v397
  %v1591 = vunpack.c.h.b16 %v397
  %v1592 = vunpack.c.l.b16 %v398
  %v1593 = vunpack.c.h.b16 %v398
  %v1594 = vunpack.c.l.b16 %v399
  %v1595 = vunpack.c.h.b16 %v399
  %v1596 = vunpack.c.l.b16 %v400
  %v1597 = vunpack.c.h.b16 %v400
  %v1598 = vunpack.c.l.b16 %v401
  %v1599 = vunpack.c.h.b16 %v401
  %v1600 = vunpack.c.l.b16 %v402
  %v1601 = vunpack.c.h.b16 %v402
  %v1602 = vunpack.c.l.b16 %v403
  %v1603 = vunpack.c.h.b16 %v403
  %v1604 = vunpack.c.l.b16 %v404
  %v1605 = vunpack.c.h.b16 %v404
  %v1606 = vunpack.c.l.b16 %v405
  %v1607 = vunpack.c.h.b16 %v405
  %v1608 = vunpack.c.l.b16 %v406
  %v1609 = vunpack.c.h.b16 %v406
  %v1610 = vunpack.c.l.b16 %v407
  %v1611 = vunpack.c.h.b16 %v407
  %v1612 = vunpack.c.l.b16 %v408
  %v1613 = vunpack.c.h.b16 %v408
  %v1614 = vunpack.c.l.b16 %v409
  %v1615 = vunpack.c.h.b16 %v409
  %v1616 = vunpack.c.l.b16 %v410
  %v1617 = vunpack.c.h.b16 %v410
  %v1618 = vunpack.c.l.b16 %v411
  %v1619 = vunpack.c.h.b16 %v411
  %v1620 = vunpack.c.l.b16 %v412
  %v1621 = vunpack.c.h.b16 %v412
  %v1622 = vunpack.c.l.b16 %v413
  %v1623 = vunpack.c.h.b16 %v413
  %v1624 = vunpack.c.l.b16 %v414
  %v1625 = vunpack.c.h.b16 %v414
  %v1626 = vunpack.c.l.b16 %v415
  %v1627 = vunpack.c.h.b16 %v415
  %v1628 = vunpack.c.l.b16 %v416
  %v1629 = vunpack.c.h.b16 %v416
  %v1630 = vunpack.c.l.b16 %v417
  %v1631 = vunpack.c.h.b16 %v417
  %v1632 = vunpack.c.l.b16 %v418
  %v1633 = vunpack.c.h.b16 %v418
  %v1634 = vunpack.c.l.b16 %v419
  %v1635 = vunpack.c.h.b16 %v419
  %v1636 = vunpack.c.l.b16 %v420
  %v1637 = vunpack.c.h.b16 %v420
  %v1638 = vunpack.c.l.b16 %v421
  %v1639 = vunpack.c.h.b16 %v421
  %v1640 = vunpack.c.l.b16 %v422
  %v1641 = vunpack.c.h.b16 %v422
  %v1642 = vunpack.c.l.b16 %v423
  %v1643 = vunpack.c.h.b16 %v423
  %v1644 = vunpack.c.l.b16 %v424
  %v1645 = vunpack.c.h.b16 %v424
  %v1646 = vunpack.c.l.b16 %v425
  %v1647 = vunpack.c.h.b16 %v425
  %v1648 = vunpack.c.l.b16 %v426
  %v1649 = vunpack.c.h.b16 %v426
  %v1650 = vunpack.c.l.b16 %v427
  %v1651 = vunpack.c.h.b16 %v427
  %v1652 = vunpack.c.l.b16 %v428
  %v1653 = vunpack.c.h.b16 %v428
  %v1654 = vunpack.c.l.b16 %v429
  %v1655 = vunpack.c.h.b16 %v429
  %v1656 = vunpack.c.l.b16 %v430
  %v1657 = vunpack.c.h.b16 %v430
  %v1658 = vunpack.c.l.b16 %v431
  %v1659 = vunpack.c.h.b16 %v431
  %v1660 = vunpack.c.l.b16 %v432
  %v1661 = vunpack.c.h.b16 %v432
  %v1662 = vunpack.c.l.b16 %v433
  %v1663 = vunpack.c.h.b16 %v433
  %v1664 = vpack.c.b16 %v904, %v896
  %v1665 = vpack.c.b16 %v905, %v897
  %v1666 = vpack.c.b16 %v906, %v898
  %v1667 = vpack.c.b16 %v907, %v899
  %v1668 = vpack.c.b16 %v908, %v900
  %v1669 = vpack.c.b16 %v909, %v901
  %v1670 = vpack.c.b16 %v910, %v902
  %v1671 = vpack.c.b16 %v911, %v903
  %v1672 = vpack.c.b16 %v920, %v912
  %v1673 = vpack.c.b16 %v921, %v913
  %v1674 = vpack.c.b16 %v922, %v914
  %v1675 = vpack.c.b16 %v923, %v915
  %v1676 = vpack.c.b16 %v924, %v916
  %v1677 = vpack.c.b16 %v925, %v917
  %v1678 = vpack.c.b16 %v926, %v918
  %v1679 = vpack.c.b16 %v927, %v919
  %v1680 = vpack.c.b16 %v936, %v928
  %v1681 = vpack.c.b16 %v937, %v929
  %v1682 = vpack.c.b16 %v938, %v930
  %v1683 = vpack.c.b16 %v939, %v931
  %v1684 = vpack.c.b16 %v940, %v932
  %v1685 = vpack.c.b16 %v941, %v933
  %v1686 = vpack.c.b16 %v942, %v934
  %v1687 = vpack.c.b16 %v943, %v935
  %v1688 = vpack.c.b16 %v952, %v944
  %v1689 = vpack.c.b16 %v953, %v945
  %v1690 = vpack.c.b16 %v954, %v946
  %v1691 = vpack.c.b16 %v955, %v947
  %v1692 = vpack.c.b16 %v956, %v948
  %v1693 = vpack.c.b16 %v957, %v949
  %v1694 = vpack.c.b16 %v958, %v950
  %v1695 = vpack.c.b16 %v959, %v951
  %v1696 = vpack.c.b16 %v968, %v960
  %v1697 = vpack.c.b16 %v969, %v961
  %v1698 = vpack.c.b16 %v970, %v962
  %v1699 = vpack.c.b16 %v971, %v963
  %v1700 = vpack.c.b16 %v972, %v964
  %v1701 = vpack.c.b16 %v973, %v965
  %v1702 = vpack.c.b16 %v974, %v966
  %v1703 = vpack.c.b16 %v975, %v967
  %v1704 = vpack.c.b16 %v984, %v976
  %v1705 = vpack.c.b16 %v985, %v977
  %v1706 = vpack.c.b16 %v986, %v978
  %v1707 = vpack.c.b16 %v987, %v979
  %v1708 = vpack.c.b16 %v988, %v980
  %v1709 = vpack.c.b16 %v989, %v981
  %v1710 = vpack.c.b16 %v990, %v982
  %v1711 = vpack.c.b16 %v991, %v983
  %v1712 = vpack.c.b16 %v1000, %v992
  %v1713 = vpack.c.b16 %v1001, %v993
  %v1714 = vpack.c.b16 %v1002, %v994
  %v1715 = vpack.c.b16 %v1003, %v995
  %v1716 = vpack.c.b16 %v1004, %v996
  %v1717 = vpack.c.b16 %v1005, %v997
  %v1718 = vpack.c.b16 %v1006, %v998
  %v1719 = vpack.c.b16 %v1007, %v999
  %v1720 = vpack.c.b16 %v1016, %v1008
  %v1721 = vpack.c.b16 %v1017, %v1009
  %v1722 = vpack.c.b16 %v1018, %v1010
  %v1723 = vpack.c.b16 %v1019, %v1011
  %v1724 = vpack.c.b16 %v1020, %v1012
  %v1725 = vpack.c.b16 %v1021, %v1013
  %v1726 = vpack.c.b16 %v1022, %v1014
  %v1727 = vpack.c.b16 %v1023, %v1015
  %v1728 = vpack.c.b16 %v1032, %v1024
  %v1729 = vpack.c.b16 %v1033, %v1025
  %v1730 = vpack.c.b16 %v1034, %v1026
  %v1731 = vpack.c.b16 %v1035, %v1027
  %v1732 = vpack.c.b16 %v1036, %v1028
  %v1733 = vpack.c.b16 %v1037, %v1029
  %v1734 = vpack.c.b16 %v1038, %v1030
  %v1735 = vpack.c.b16 %v1039, %v1031
  %v1736 = vpack.c.b16 %v1048, %v1040
  %v1737 = vpack.c.b16 %v1049, %v1041
  %v1738 = vpack.c.b16 %v1050, %v1042
  %v1739 = vpack.c.b16 %v1051, %v1043
  %v1740 = vpack.c.b16 %v1052, %v1044
  %v1741 = vpack.c.b16 %v1053, %v1045
  %v1742 = vpack.c.b16 %v1054, %v1046
  %v1743 = vpack.c.b16 %v1055, %v1047
  %v1744 = vpack.c.b16 %v1064, %v1056
  %v1745 = vpack.c.b16 %v1065, %v1057
  %v1746 = vpack.c.b16 %v1066, %v1058
  %v1747 = vpack.c.b16 %v1067, %v1059
  %v1748 = vpack.c.b16 %v1068, %v1060
  %v1749 = vpack.c.b16 %v1069, %v1061
  %v1750 = vpack.c.b16 %v1070, %v1062
  %v1751 = vpack.c.b16 %v1071, %v1063
  %v1752 = vpack.c.b16 %v1080, %v1072
  %v1753 = vpack.c.b16 %v1081, %v1073
  %v1754 = vpack.c.b16 %v1082, %v1074
  %v1755 = vpack.c.b16 %v1083, %v1075
  %v1756 = vpack.c.b16 %v1084, %v1076
  %v1757 = vpack.c.b16 %v1085, %v1077
  %v1758 = vpack.c.b16 %v1086, %v1078
  %v1759 = vpack.c.b16 %v1087, %v1079
  %v1760 = vpack.c.b16 %v1096, %v1088
  %v1761 = vpack.c.b16 %v1097, %v1089
  %v1762 = vpack.c.b16 %v1098, %v1090
  %v1763 = vpack.c.b16 %v1099, %v1091
  %v1764 = vpack.c.b16 %v1100, %v1092
  %v1765 = vpack.c.b16 %v1101, %v1093
  %v1766 = vpack.c.b16 %v1102, %v1094
  %v1767 = vpack.c.b16 %v1103, %v1095
  %v1768 = vpack.c.b16 %v1112, %v1104
  %v1769 = vpack.c.b16 %v1113, %v1105
  %v1770 = vpack.c.b16 %v1114, %v1106
  %v1771 = vpack.c.b16 %v1115, %v1107
  %v1772 = vpack.c.b16 %v1116, %v1108
  %v1773 = vpack.c.b16 %v1117, %v1109
  %v1774 = vpack.c.b16 %v1118, %v1110
  %v1775 = vpack.c.b16 %v1119, %v1111
  %v1776 = vpack.c.b16 %v1128, %v1120
  %v1777 = vpack.c.b16 %v1129, %v1121
  %v1778 = vpack.c.b16 %v1130, %v1122
  %v1779 = vpack.c.b16 %v1131, %v1123
  %v1780 = vpack.c.b16 %v1132, %v1124
  %v1781 = vpack.c.b16 %v1133, %v1125
  %v1782 = vpack.c.b16 %v1134, %v1126
  %v1783 = vpack.c.b16 %v1135, %v1127
  %v1784 = vpack.c.b16 %v1144, %v1136
  %v1785 = vpack.c.b16 %v1145, %v1137
  %v1786 = vpack.c.b16 %v1146, %v1138
  %v1787 = vpack.c.b16 %v1147, %v1139
  %v1788 = vpack.c.b16 %v1148, %v1140
  %v1789 = vpack.c.b16 %v1149, %v1141
  %v1790 = vpack.c.b16 %v1150, %v1142
  %v1791 = vpack.c.b16 %v1151, %v1143
  %v1792 = vpack.c.b16 %v1160, %v1152
  %v1793 = vpack.c.b16 %v1161, %v1153
  %v1794 = vpack.c.b16 %v1162, %v1154
  %v1795 = vpack.c.b16 %v1163, %v1155
  %v1796 = vpack.c.b16 %v1164, %v1156
  %v1797 = vpack.c.b16 %v1165, %v1157
  %v1798 = vpack.c.b16 %v1166, %v1158
  %v1799 = vpack.c.b16 %v1167, %v1159
  %v1800 = vpack.c.b16 %v1176, %v1168
  %v1801 = vpack.c.b16 %v1177, %v1169
  %v1802 = vpack.c.b16 %v1178, %v1170
  %v1803 = vpack.c.b16 %v1179, %v1171
  %v1804 = vpack.c.b16 %v1180, %v1172
  %v1805 = vpack.c.b16 %v1181, %v1173
  %v1806 = vpack.c.b16 %v1182, %v1174
  %v1807 = vpack.c.b16 %v1183, %v1175
  %v1808 = vpack.c.b16 %v1192, %v1184
  %v1809 = vpack.c.b16 %v1193, %v1185
  %v1810 = vpack.c.b16 %v1194, %v1186
  %v1811 = vpack.c.b16 %v1195, %v1187
  %v1812 = vpack.c.b16 %v1196, %v1188
  %v1813 = vpack.c.b16 %v1197, %v1189
  %v1814 = vpack.c.b16 %v1198, %v1190
  %v1815 = vpack.c.b16 %v1199, %v1191
  %v1816 = vpack.c.b16 %v1208, %v1200
  %v1817 = vpack.c.b16 %v1209, %v1201
  %v1818 = vpack.c.b16 %v1210, %v1202
  %v1819 = vpack.c.b16 %v1211, %v1203
  %v1820 = vpack.c.b16 %v1212, %v1204
  %v1821 = vpack.c.b16 %v1213, %v1205
  %v1822 = vpack.c.b16 %v1214, %v1206
  %v1823 = vpack.c.b16 %v1215, %v1207
  %v1824 = vpack.c.b16 %v1224, %v1216
  %v1825 = vpack.c.b16 %v1225, %v1217
  %v1826 = vpack.c.b16 %v1226, %v1218
  %v1827 = vpack.c.b16 %v1227, %v1219
  %v1828 = vpack.c.b16 %v1228, %v1220
  %v1829 = vpack.c.b16 %v1229, %v1221
  %v1830 = vpack.c.b16 %v1230, %v1222
  %v1831 = vpack.c.b16 %v1231, %v1223
  %v1832 = vpack.c.b16 %v1240, %v1232
  %v1833 = vpack.c.b16 %v1241, %v1233
  %v1834 = vpack.c.b16 %v1242, %v1234
  %v1835 = vpack.c.b16 %v1243, %v1235
  %v1836 = vpack.c.b16 %v1244, %v1236
  %v1837 = vpack.c.b16 %v1245, %v1237
  %v1838 = vpack.c.b16 %v1246, %v1238
  %v1839 = vpack.c.b16 %v1247, %v1239
  %v1840 = vpack.c.b16 %v1256, %v1248
  %v1841 = vpack.c.b16 %v1257, %v1249
  %v1842 = vpack.c.b16 %v1258, %v1250
  %v1843 = vpack.c.b16 %v1259, %v1251
  %v1844 = vpack.c.b16 %v1260, %v1252
  %v1845 = vpack.c.b16 %v1261, %v1253
  %v1846 = vpack.c.b16 %v1262, %v1254
  %v1847 = vpack.c.b16 %v1263, %v1255
  %v1848 = vpack.c.b16 %v1272, %v1264
  %v1849 = vpack.c.b16 %v1273, %v1265
  %v1850 = vpack.c.b16 %v1274, %v1266
  %v1851 = vpack.c.b16 %v1275, %v1267
  %v1852 = vpack.c.b16 %v1276, %v1268
  %v1853 = vpack.c.b16 %v1277, %v1269
  %v1854 = vpack.c.b16 %v1278, %v1270
  %v1855 = vpack.c.b16 %v1279, %v1271
  %v1856 = vpack.c.b16 %v1288, %v1280
  %v1857 = vpack.c.b16 %v1289, %v1281
  %v1858 = vpack.c.b16 %v1290, %v1282
  %v1859 = vpack.c.b16 %v1291, %v1283
  %v1860 = vpack.c.b16 %v1292, %v1284
  %v1861 = vpack.c.b16 %v1293, %v1285
  %v1862 = vpack.c.b16 %v1294, %v1286
  %v1863 = vpack.c.b16 %v1295, %v1287
  %v1864 = vpack.c.b16 %v1304, %v1296
  %v1865 = vpack.c.b16 %v1305, %v1297
  %v1866 = vpack.c.b16 %v1306, %v1298
  %v1867 = vpack.c.b16 %v1307, %v1299
  %v1868 = vpack.c.b16 %v1308, %v1300
  %v1869 = vpack.c.b16 %v1309, %v1301
  %v1870 = vpack.c.b16 %v1310, %v1302
  %v1871 = vpack.c.b16 %v1311, %v1303
  %v1872 = vpack.c.b16 %v1320, %v1312
  %v1873 = vpack.c.b16 %v1321, %v1313
  %v1874 = vpack.c.b16 %v1322, %v1314
  %v1875 = vpack.c.b16 %v1323, %v1315
  %v1876 = vpack.c.b16 %v1324, %v1316
  %v1877 = vpack.c.b16 %v1325, %v1317
  %v1878 = vpack.c.b16 %v1326, %v1318
  %v1879 = vpack.c.b16 %v1327, %v1319
  %v1880 = vpack.c.b16 %v1336, %v1328
  %v1881 = vpack.c.b16 %v1337, %v1329
  %v1882 = vpack.c.b16 %v1338, %v1330
  %v1883 = vpack.c.b16 %v1339, %v1331
  %v1884 = vpack.c.b16 %v1340, %v1332
  %v1885 = vpack.c.b16 %v1341, %v1333
  %v1886 = vpack.c.b16 %v1342, %v1334
  %v1887 = vpack.c.b16 %v1343, %v1335
  %v1888 = vpack.c.b16 %v1352, %v1344
  %v1889 = vpack.c.b16 %v1353, %v1345
  %v1890 = vpack.c.b16 %v1354, %v1346
  %v1891 = vpack.c.b16 %v1355, %v1347
  %v1892 = vpack.c.b16 %v1356, %v1348
  %v1893 = vpack.c.b16 %v1357, %v1349
  %v1894 = vpack.c.b16 %v1358, %v1350
  %v1895 = vpack.c.b16 %v1359, %v1351
  %v1896 = vpack.c.b16 %v1368, %v1360
  %v1897 = vpack.c.b16 %v1369, %v1361
  %v1898 = vpack.c.b16 %v1370, %v1362
  %v1899 = vpack.c.b16 %v1371, %v1363
  %v1900 = vpack.c.b16 %v1372, %v1364
  %v1901 = vpack.c.b16 %v1373, %v1365
  %v1902 = vpack.c.b16 %v1374, %v1366
  %v1903 = vpack.c.b16 %v1375, %v1367
  %v1904 = vpack.c.b16 %v1384, %v1376
  %v1905 = vpack.c.b16 %v1385, %v1377
  %v1906 = vpack.c.b16 %v1386, %v1378
  %v1907 = vpack.c.b16 %v1387, %v1379
  %v1908 = vpack.c.b16 %v1388, %v1380
  %v1909 = vpack.c.b16 %v1389, %v1381
  %v1910 = vpack.c.b16 %v1390, %v1382
  %v1911 = vpack.c.b16 %v1391, %v1383
  %v1912 = vpack.c.b16 %v1400, %v1392
  %v1913 = vpack.c.b16 %v1401, %v1393
  %v1914 = vpack.c.b16 %v1402, %v1394
  %v1915 = vpack.c.b16 %v1403, %v1395
  %v1916 = vpack.c.b16 %v1404, %v1396
  %v1917 = vpack.c.b16 %v1405, %v1397
  %v1918 = vpack.c.b16 %v1406, %v1398
  %v1919 = vpack.c.b16 %v1407, %v1399
  %v1920 = vpack.c.b16 %v1416, %v1408
  %v1921 = vpack.c.b16 %v1417, %v1409
  %v1922 = vpack.c.b16 %v1418, %v1410
  %v1923 = vpack.c.b16 %v1419, %v1411
  %v1924 = vpack.c.b16 %v1420, %v1412
  %v1925 = vpack.c.b16 %v1421, %v1413
  %v1926 = vpack.c.b16 %v1422, %v1414
  %v1927 = vpack.c.b16 %v1423, %v1415
  %v1928 = vpack.c.b16 %v1432, %v1424
  %v1929 = vpack.c.b16 %v1433, %v1425
  %v1930 = vpack.c.b16 %v1434, %v1426
  %v1931 = vpack.c.b16 %v1435, %v1427
  %v1932 = vpack.c.b16 %v1436, %v1428
  %v1933 = vpack.c.b16 %v1437, %v1429
  %v1934 = vpack.c.b16 %v1438, %v1430
  %v1935 = vpack.c.b16 %v1439, %v1431
  %v1936 = vpack.c.b16 %v1448, %v1440
  %v1937 = vpack.c.b16 %v1449, %v1441
  %v1938 = vpack.c.b16 %v1450, %v1442
  %v1939 = vpack.c.b16 %v1451, %v1443
  %v1940 = vpack.c.b16 %v1452, %v1444
  %v1941 = vpack.c.b16 %v1453, %v1445
  %v1942 = vpack.c.b16 %v1454, %v1446
  %v1943 = vpack.c.b16 %v1455, %v1447
  %v1944 = vpack.c.b16 %v1464, %v1456
  %v1945 = vpack.c.b16 %v1465, %v1457
  %v1946 = vpack.c.b16 %v1466, %v1458
  %v1947 = vpack.c.b16 %v1467, %v1459
  %v1948 = vpack.c.b16 %v1468, %v1460
  %v1949 = vpack.c.b16 %v1469, %v1461
  %v1950 = vpack.c.b16 %v1470, %v1462
  %v1951 = vpack.c.b16 %v1471, %v1463
  %v1952 = vpack.c.b16 %v1480, %v1472
  %v1953 = vpack.c.b16 %v1481, %v1473
  %v1954 = vpack.c.b16 %v1482, %v1474
  %v1955 = vpack.c.b16 %v1483, %v1475
  %v1956 = vpack.c.b16 %v1484, %v1476
  %v1957 = vpack.c.b16 %v1485, %v1477
  %v1958 = vpack.c.b16 %v1486, %v1478
  %v1959 = vpack.c.b16 %v1487, %v1479
  %v1960 = vpack.c.b16 %v1496, %v1488
  %v1961 = vpack.c.b16 %v1497, %v1489
  %v1962 = vpack.c.b16 %v1498, %v1490
  %v1963 = vpack.c.b16 %v1499, %v1491
  %v1964 = vpack.c.b16 %v1500, %v1492
  %v1965 = vpack.c.b16 %v1501, %v1493
  %v1966 = vpack.c.b16 %v1502, %v1494
  %v1967 = vpack.c.b16 %v1503, %v1495
  %v1968 = vpack.c.b16 %v1512, %v1504
  %v1969 = vpack.c.b16 %v1513, %v1505
  %v1970 = vpack.c.b16 %v1514, %v1506
  %v1971 = vpack.c.b16 %v1515, %v1507
  %v1972 = vpack.c.b16 %v1516, %v1508
  %v1973 = vpack.c.b16 %v1517, %v1509
  %v1974 = vpack.c.b16 %v1518, %v1510
  %v1975 = vpack.c.b16 %v1519, %v1511
  %v1976 = vpack.c.b16 %v1528, %v1520
  %v1977 = vpack.c.b16 %v1529, %v1521
  %v1978 = vpack.c.b16 %v1530, %v1522
  %v1979 = vpack.c.b16 %v1531, %v1523
  %v1980 = vpack.c.b16 %v1532, %v1524
  %v1981 = vpack.c.b16 %v1533, %v1525
  %v1982 = vpack.c.b16 %v1534, %v1526
  %v1983 = vpack.c.b16 %v1535, %v1527
  %v1984 = vpack.c.b16 %v1544, %v1536
  %v1985 = vpack.c.b16 %v1545, %v1537
  %v1986 = vpack.c.b16 %v1546, %v1538
  %v1987 = vpack.c.b16 %v1547, %v1539
  %v1988 = vpack.c.b16 %v1548, %v1540
  %v1989 = vpack.c.b16 %v1549, %v1541
  %v1990 = vpack.c.b16 %v1550, %v1542
  %v1991 = vpack.c.b16 %v1551, %v1543
  %v1992 = vpack.c.b16 %v1560, %v1552
  %v1993 = vpack.c.b16 %v1561, %v1553
  %v1994 = vpack.c.b16 %v1562, %v1554
  %v1995 = vpack.c.b16 %v1563, %v1555
  %v1996 = vpack.c.b16 %v1564, %v1556
  %v1997 = vpack.c.b16 %v1565, %v1557
  %v1998 = vpack.c.b16 %v1566, %v1558
  %v1999 = vpack.c.b16 %v1567, %v1559
  %v2000 = vpack.c.b16 %v1576, %v1568
  %v2001 = vpack.c.b16 %v1577, %v1569
  %v2002 = vpack.c.b16 %v1578, %v1570
  %v2003 = vpack.c.b16 %v1579, %v1571
  %v2004 = vpack.c.b16 %v1580, %v1572
  %v2005 = vpack.c.b16 %v1581, %v1573
  %v2006 = vpack.c.b16 %v1582, %v1574
  %v2007 = vpack.c.b16 %v1583, %v1575
  %v2008 = vpack.c.b16 %v1592, %v1584
  %v2009 = vpack.c.b16 %v1593, %v1585
  %v2010 = vpack.c.b16 %v1594, %v1586
  %v2011 = vpack.c.b16 %v1595, %v1587
  %v2012 = vpack.c.b16 %v1596, %v1588
  %v2013 = vpack.c.b16 %v1597, %v1589
  %v2014 = vpack.c.b16 %v1598, %v1590
  %v2015 = vpack.c.b16 %v1599, %v1591
  %v2016 = vpack.c.b16 %v1608, %v1600
  %v2017 = vpack.c.b16 %v1609, %v1601
  %v2018 = vpack.c.b16 %v1610, %v1602
  %v2019 = vpack.c.b16 %v1611, %v1603
  %v2020 = vpack.c.b16 %v1612, %v1604
  %v2021 = vpack.c.b16 %v1613, %v1605
  %v2022 = vpack.c.b16 %v1614, %v1606
  %v2023 = vpack.c.b16 %v1615, %v1607
  %v2024 = vpack.c.b16 %v1624, %v1616
  %v2025 = vpack.c.b16 %v1625, %v1617
  %v2026 = vpack.c.b16 %v1626, %v1618
  %v2027 = vpack.c.b16 %v1627, %v1619
  %v2028 = vpack.c.b16 %v1628, %v1620
  %v2029 = vpack.c.b16 %v1629, %v1621
  %v2030 = vpack.c.b16 %v1630, %v1622
  %v2031 = vpack.c.b16 %v1631, %v1623
  %v2032 = vpack.c.b16 %v1640, %v1632
  %v2033 = vpack.c.b16 %v1641, %v1633
  %v2034 = vpack.c.b16 %v1642, %v1634
  %v2035 = vpack.c.b16 %v1643, %v1635
  %v2036 = vpack.c.b16 %v1644, %v1636
  %v2037 = vpack.c.b16 %v1645, %v1637
  %v2038 = vpack.c.b16 %v1646, %v1638
  %v2039 = vpack.c.b16 %v1647, %v1639
  %v2040 = vpack.c.b16 %v1656, %v1648
  %v2041 = vpack.c.b16 %v1657, %v1649
  %v2042 = vpack.c.b16 %v1658, %v1650
  %v2043 = vpack.c.b16 %v1659, %v1651
  %v2044 = vpack.c.b16 %v1660, %v1652
  %v2045 = vpack.c.b16 %v1661, %v1653
  %v2046 = vpack.c.b16 %v1662, %v1654
  %v2047 = vpack.c.b16 %v1663, %v1655
  %2432 = vmatpush.bf16.msra.mxu0 %v1720
  %2433 = vmatpush.bf16.msra.mxu0 %v1712
  %2434 = vmatpush.bf16.msra.mxu0 %v1704
  %2435 = vmatpush.bf16.msra.mxu0 %v1696
  %2436 = vmatpush.bf16.msra.mxu0 %v1688
  %2437 = vmatpush.bf16.msra.mxu0 %v1680
  %2438 = vmatpush.bf16.msra.mxu0 %v1672
  %2439 = vmatpush.bf16.msra.mxu0 %v1664
  %2440 = vmatmul.bf16.gmra.mxu0 %v488
  %v2441 = vpop.f32.mrf.mxu0
  %v2442 = vadd.f32 %v436, %v2441
  %v2443 = vpop.f32.mrf.mxu0
  %v2444 = vadd.f32 %v436, %v2443
  %2445 = vmatmul.bf16.gmra.mxu0 %v494
  %v2446 = vpop.f32.mrf.mxu0
  %v2447 = vadd.f32 %v436, %v2446
  %v2448 = vpop.f32.mrf.mxu0
  %v2449 = vadd.f32 %v436, %v2448
  %2450 = vdwg.mxu0
  %2451 = vmatpush.bf16.msra.mxu0 %v1784
  %2452 = vmatpush.bf16.msra.mxu0 %v1776
  %2453 = vmatpush.bf16.msra.mxu0 %v1768
  %2454 = vmatpush.bf16.msra.mxu0 %v1760
  %2455 = vmatpush.bf16.msra.mxu0 %v1752
  %2456 = vmatpush.bf16.msra.mxu0 %v1744
  %2457 = vmatpush.bf16.msra.mxu0 %v1736
  %2458 = vmatpush.bf16.msra.mxu0 %v1728
  %2459 = vmatmul.bf16.gmra.mxu0 %v489
  %v2460 = vpop.f32.mrf.mxu0
  %v2461 = vadd.f32 %v2442, %v2460
  %v2462 = vpop.f32.mrf.mxu0
  %v2463 = vadd.f32 %v2444, %v2462
  %2464 = vmatmul.bf16.gmra.mxu0 %v495
  %v2465 = vpop.f32.mrf.mxu0
  %v2466 = vadd.f32 %v2447, %v2465
  %v2467 = vpop.f32.mrf.mxu0
  %v2468 = vadd.f32 %v2449, %v2467
  %2469 = vdwg.mxu0
  %2470 = vmatpush.bf16.msra.mxu0 %v1848
  %2471 = vmatpush.bf16.msra.mxu0 %v1840
  %2472 = vmatpush.bf16.msra.mxu0 %v1832
  %2473 = vmatpush.bf16.msra.mxu0 %v1824
  %2474 = vmatpush.bf16.msra.mxu0 %v1816
  %2475 = vmatpush.bf16.msra.mxu0 %v1808
  %2476 = vmatpush.bf16.msra.mxu0 %v1800
  %2477 = vmatpush.bf16.msra.mxu0 %v1792
  %2478 = vmatmul.bf16.gmra.mxu0 %v490
  %v2479 = vpop.f32.mrf.mxu0
  %v2480 = vadd.f32 %v2461, %v2479
  %v2481 = vpop.f32.mrf.mxu0
  %v2482 = vadd.f32 %v2463, %v2481
  %2483 = vmatmul.bf16.gmra.mxu0 %v496
  %v2484 = vpop.f32.mrf.mxu0
  %v2485 = vadd.f32 %v2466, %v2484
  %v2486 = vpop.f32.mrf.mxu0
  %v2487 = vadd.f32 %v2468, %v2486
  %2488 = vdwg.mxu0
  %2489 = vmatpush.bf16.msra.mxu0 %v1912
  %2490 = vmatpush.bf16.msra.mxu0 %v1904
  %2491 = vmatpush.bf16.msra.mxu0 %v1896
  %2492 = vmatpush.bf16.msra.mxu0 %v1888
  %2493 = vmatpush.bf16.msra.mxu0 %v1880
  %2494 = vmatpush.bf16.msra.mxu0 %v1872
  %2495 = vmatpush.bf16.msra.mxu0 %v1864
  %2496 = vmatpush.bf16.msra.mxu0 %v1856
  %2497 = vmatmul.bf16.gmra.mxu0 %v491
  %v2498 = vpop.f32.mrf.mxu0
  %v2499 = vadd.f32 %v2480, %v2498
  %v2500 = vpop.f32.mrf.mxu0
  %v2501 = vadd.f32 %v2482, %v2500
  %2502 = vmatmul.bf16.gmra.mxu0 %v497
  %v2503 = vpop.f32.mrf.mxu0
  %v2504 = vadd.f32 %v2485, %v2503
  %v2505 = vpop.f32.mrf.mxu0
  %v2506 = vadd.f32 %v2487, %v2505
  %2507 = vdwg.mxu0
  %2508 = vmatpush.bf16.msra.mxu0 %v1976
  %2509 = vmatpush.bf16.msra.mxu0 %v1968
  %2510 = vmatpush.bf16.msra.mxu0 %v1960
  %2511 = vmatpush.bf16.msra.mxu0 %v1952
  %2512 = vmatpush.bf16.msra.mxu0 %v1944
  %2513 = vmatpush.bf16.msra.mxu0 %v1936
  %2514 = vmatpush.bf16.msra.mxu0 %v1928
  %2515 = vmatpush.bf16.msra.mxu0 %v1920
  %2516 = vmatmul.bf16.gmra.mxu0 %v492
  %v2517 = vpop.f32.mrf.mxu0
  %v2518 = vadd.f32 %v2499, %v2517
  %v2519 = vpop.f32.mrf.mxu0
  %v2520 = vadd.f32 %v2501, %v2519
  %2521 = vmatmul.bf16.gmra.mxu0 %v498
  %v2522 = vpop.f32.mrf.mxu0
  %v2523 = vadd.f32 %v2504, %v2522
  %v2524 = vpop.f32.mrf.mxu0
  %v2525 = vadd.f32 %v2506, %v2524
  %2526 = vdwg.mxu0
  %2527 = vmatpush.bf16.msra.mxu0 %v2040
  %2528 = vmatpush.bf16.msra.mxu0 %v2032
  %2529 = vmatpush.bf16.msra.mxu0 %v2024
  %2530 = vmatpush.bf16.msra.mxu0 %v2016
  %2531 = vmatpush.bf16.msra.mxu0 %v2008
  %2532 = vmatpush.bf16.msra.mxu0 %v2000
  %2533 = vmatpush.bf16.msra.mxu0 %v1992
  %2534 = vmatpush.bf16.msra.mxu0 %v1984
  %2535 = vmatmul.bf16.gmra.mxu0 %v493
  %v2536 = vpop.f32.mrf.mxu0
  %v2537 = vadd.f32 %v2518, %v2536
  %v2538 = vpop.f32.mrf.mxu0
  %v2539 = vadd.f32 %v2520, %v2538
  %2540 = vmatmul.bf16.gmra.mxu0 %v499
  %v2541 = vpop.f32.mrf.mxu0
  %v2542 = vadd.f32 %v2523, %v2541
  %v2543 = vpop.f32.mrf.mxu0
  %v2544 = vadd.f32 %v2525, %v2543
  %2545 = vdwg.mxu0
  %2546 = vmatpush.bf16.msra.mxu0 %v1721
  %2547 = vmatpush.bf16.msra.mxu0 %v1713
  %2548 = vmatpush.bf16.msra.mxu0 %v1705
  %2549 = vmatpush.bf16.msra.mxu0 %v1697
  %2550 = vmatpush.bf16.msra.mxu0 %v1689
  %2551 = vmatpush.bf16.msra.mxu0 %v1681
  %2552 = vmatpush.bf16.msra.mxu0 %v1673
  %2553 = vmatpush.bf16.msra.mxu0 %v1665
  %2554 = vmatmul.bf16.gmra.mxu0 %v488
  %v2555 = vpop.f32.mrf.mxu0
  %v2556 = vadd.f32 %v437, %v2555
  %v2557 = vpop.f32.mrf.mxu0
  %v2558 = vadd.f32 %v437, %v2557
  %2559 = vmatmul.bf16.gmra.mxu0 %v494
  %v2560 = vpop.f32.mrf.mxu0
  %v2561 = vadd.f32 %v437, %v2560
  %v2562 = vpop.f32.mrf.mxu0
  %v2563 = vadd.f32 %v437, %v2562
  %2564 = vdwg.mxu0
  %2565 = vmatpush.bf16.msra.mxu0 %v1785
  %2566 = vmatpush.bf16.msra.mxu0 %v1777
  %2567 = vmatpush.bf16.msra.mxu0 %v1769
  %2568 = vmatpush.bf16.msra.mxu0 %v1761
  %2569 = vmatpush.bf16.msra.mxu0 %v1753
  %2570 = vmatpush.bf16.msra.mxu0 %v1745
  %2571 = vmatpush.bf16.msra.mxu0 %v1737
  %2572 = vmatpush.bf16.msra.mxu0 %v1729
  %2573 = vmatmul.bf16.gmra.mxu0 %v489
  %v2574 = vpop.f32.mrf.mxu0
  %v2575 = vadd.f32 %v2556, %v2574
  %v2576 = vpop.f32.mrf.mxu0
  %v2577 = vadd.f32 %v2558, %v2576
  %2578 = vmatmul.bf16.gmra.mxu0 %v495
  %v2579 = vpop.f32.mrf.mxu0
  %v2580 = vadd.f32 %v2561, %v2579
  %v2581 = vpop.f32.mrf.mxu0
  %v2582 = vadd.f32 %v2563, %v2581
  %2583 = vdwg.mxu0
  %2584 = vmatpush.bf16.msra.mxu0 %v1849
  %2585 = vmatpush.bf16.msra.mxu0 %v1841
  %2586 = vmatpush.bf16.msra.mxu0 %v1833
  %2587 = vmatpush.bf16.msra.mxu0 %v1825
  %2588 = vmatpush.bf16.msra.mxu0 %v1817
  %2589 = vmatpush.bf16.msra.mxu0 %v1809
  %2590 = vmatpush.bf16.msra.mxu0 %v1801
  %2591 = vmatpush.bf16.msra.mxu0 %v1793
  %2592 = vmatmul.bf16.gmra.mxu0 %v490
  %v2593 = vpop.f32.mrf.mxu0
  %v2594 = vadd.f32 %v2575, %v2593
  %v2595 = vpop.f32.mrf.mxu0
  %v2596 = vadd.f32 %v2577, %v2595
  %2597 = vmatmul.bf16.gmra.mxu0 %v496
  %v2598 = vpop.f32.mrf.mxu0
  %v2599 = vadd.f32 %v2580, %v2598
  %v2600 = vpop.f32.mrf.mxu0
  %v2601 = vadd.f32 %v2582, %v2600
  %2602 = vdwg.mxu0
  %2603 = vmatpush.bf16.msra.mxu0 %v1913
  %2604 = vmatpush.bf16.msra.mxu0 %v1905
  %2605 = vmatpush.bf16.msra.mxu0 %v1897
  %2606 = vmatpush.bf16.msra.mxu0 %v1889
  %2607 = vmatpush.bf16.msra.mxu0 %v1881
  %2608 = vmatpush.bf16.msra.mxu0 %v1873
  %2609 = vmatpush.bf16.msra.mxu0 %v1865
  %2610 = vmatpush.bf16.msra.mxu0 %v1857
  %2611 = vmatmul.bf16.gmra.mxu0 %v491
  %v2612 = vpop.f32.mrf.mxu0
  %v2613 = vadd.f32 %v2594, %v2612
  %v2614 = vpop.f32.mrf.mxu0
  %v2615 = vadd.f32 %v2596, %v2614
  %2616 = vmatmul.bf16.gmra.mxu0 %v497
  %v2617 = vpop.f32.mrf.mxu0
  %v2618 = vadd.f32 %v2599, %v2617
  %v2619 = vpop.f32.mrf.mxu0
  %v2620 = vadd.f32 %v2601, %v2619
  %2621 = vdwg.mxu0
  %2622 = vmatpush.bf16.msra.mxu0 %v1977
  %2623 = vmatpush.bf16.msra.mxu0 %v1969
  %2624 = vmatpush.bf16.msra.mxu0 %v1961
  %2625 = vmatpush.bf16.msra.mxu0 %v1953
  %2626 = vmatpush.bf16.msra.mxu0 %v1945
  %2627 = vmatpush.bf16.msra.mxu0 %v1937
  %2628 = vmatpush.bf16.msra.mxu0 %v1929
  %2629 = vmatpush.bf16.msra.mxu0 %v1921
  %2630 = vmatmul.bf16.gmra.mxu0 %v492
  %v2631 = vpop.f32.mrf.mxu0
  %v2632 = vadd.f32 %v2613, %v2631
  %v2633 = vpop.f32.mrf.mxu0
  %v2634 = vadd.f32 %v2615, %v2633
  %2635 = vmatmul.bf16.gmra.mxu0 %v498
  %v2636 = vpop.f32.mrf.mxu0
  %v2637 = vadd.f32 %v2618, %v2636
  %v2638 = vpop.f32.mrf.mxu0
  %v2639 = vadd.f32 %v2620, %v2638
  %2640 = vdwg.mxu0
  %2641 = vmatpush.bf16.msra.mxu0 %v2041
  %2642 = vmatpush.bf16.msra.mxu0 %v2033
  %2643 = vmatpush.bf16.msra.mxu0 %v2025
  %2644 = vmatpush.bf16.msra.mxu0 %v2017
  %2645 = vmatpush.bf16.msra.mxu0 %v2009
  %2646 = vmatpush.bf16.msra.mxu0 %v2001
  %2647 = vmatpush.bf16.msra.mxu0 %v1993
  %2648 = vmatpush.bf16.msra.mxu0 %v1985
  %2649 = vmatmul.bf16.gmra.mxu0 %v493
  %v2650 = vpop.f32.mrf.mxu0
  %v2651 = vadd.f32 %v2632, %v2650
  %v2652 = vpop.f32.mrf.mxu0
  %v2653 = vadd.f32 %v2634, %v2652
  %2654 = vmatmul.bf16.gmra.mxu0 %v499
  %v2655 = vpop.f32.mrf.mxu0
  %v2656 = vadd.f32 %v2637, %v2655
  %v2657 = vpop.f32.mrf.mxu0
  %v2658 = vadd.f32 %v2639, %v2657
  %2659 = vdwg.mxu0
  %2660 = vmatpush.bf16.msra.mxu0 %v1722
  %2661 = vmatpush.bf16.msra.mxu0 %v1714
  %2662 = vmatpush.bf16.msra.mxu0 %v1706
  %2663 = vmatpush.bf16.msra.mxu0 %v1698
  %2664 = vmatpush.bf16.msra.mxu0 %v1690
  %2665 = vmatpush.bf16.msra.mxu0 %v1682
  %2666 = vmatpush.bf16.msra.mxu0 %v1674
  %2667 = vmatpush.bf16.msra.mxu0 %v1666
  %2668 = vmatmul.bf16.gmra.mxu0 %v488
  %v2669 = vpop.f32.mrf.mxu0
  %v2670 = vadd.f32 %v438, %v2669
  %v2671 = vpop.f32.mrf.mxu0
  %v2672 = vadd.f32 %v438, %v2671
  %2673 = vmatmul.bf16.gmra.mxu0 %v494
  %v2674 = vpop.f32.mrf.mxu0
  %v2675 = vadd.f32 %v438, %v2674
  %v2676 = vpop.f32.mrf.mxu0
  %v2677 = vadd.f32 %v438, %v2676
  %2678 = vdwg.mxu0
  %2679 = vmatpush.bf16.msra.mxu0 %v1786
  %2680 = vmatpush.bf16.msra.mxu0 %v1778
  %2681 = vmatpush.bf16.msra.mxu0 %v1770
  %2682 = vmatpush.bf16.msra.mxu0 %v1762
  %2683 = vmatpush.bf16.msra.mxu0 %v1754
  %2684 = vmatpush.bf16.msra.mxu0 %v1746
  %2685 = vmatpush.bf16.msra.mxu0 %v1738
  %2686 = vmatpush.bf16.msra.mxu0 %v1730
  %2687 = vmatmul.bf16.gmra.mxu0 %v489
  %v2688 = vpop.f32.mrf.mxu0
  %v2689 = vadd.f32 %v2670, %v2688
  %v2690 = vpop.f32.mrf.mxu0
  %v2691 = vadd.f32 %v2672, %v2690
  %2692 = vmatmul.bf16.gmra.mxu0 %v495
  %v2693 = vpop.f32.mrf.mxu0
  %v2694 = vadd.f32 %v2675, %v2693
  %v2695 = vpop.f32.mrf.mxu0
  %v2696 = vadd.f32 %v2677, %v2695
  %2697 = vdwg.mxu0
  %2698 = vmatpush.bf16.msra.mxu0 %v1850
  %2699 = vmatpush.bf16.msra.mxu0 %v1842
  %2700 = vmatpush.bf16.msra.mxu0 %v1834
  %2701 = vmatpush.bf16.msra.mxu0 %v1826
  %2702 = vmatpush.bf16.msra.mxu0 %v1818
  %2703 = vmatpush.bf16.msra.mxu0 %v1810
  %2704 = vmatpush.bf16.msra.mxu0 %v1802
  %2705 = vmatpush.bf16.msra.mxu0 %v1794
  %2706 = vmatmul.bf16.gmra.mxu0 %v490
  %v2707 = vpop.f32.mrf.mxu0
  %v2708 = vadd.f32 %v2689, %v2707
  %v2709 = vpop.f32.mrf.mxu0
  %v2710 = vadd.f32 %v2691, %v2709
  %2711 = vmatmul.bf16.gmra.mxu0 %v496
  %v2712 = vpop.f32.mrf.mxu0
  %v2713 = vadd.f32 %v2694, %v2712
  %v2714 = vpop.f32.mrf.mxu0
  %v2715 = vadd.f32 %v2696, %v2714
  %2716 = vdwg.mxu0
  %2717 = vmatpush.bf16.msra.mxu0 %v1914
  %2718 = vmatpush.bf16.msra.mxu0 %v1906
  %2719 = vmatpush.bf16.msra.mxu0 %v1898
  %2720 = vmatpush.bf16.msra.mxu0 %v1890
  %2721 = vmatpush.bf16.msra.mxu0 %v1882
  %2722 = vmatpush.bf16.msra.mxu0 %v1874
  %2723 = vmatpush.bf16.msra.mxu0 %v1866
  %2724 = vmatpush.bf16.msra.mxu0 %v1858
  %2725 = vmatmul.bf16.gmra.mxu0 %v491
  %v2726 = vpop.f32.mrf.mxu0
  %v2727 = vadd.f32 %v2708, %v2726
  %v2728 = vpop.f32.mrf.mxu0
  %v2729 = vadd.f32 %v2710, %v2728
  %2730 = vmatmul.bf16.gmra.mxu0 %v497
  %v2731 = vpop.f32.mrf.mxu0
  %v2732 = vadd.f32 %v2713, %v2731
  %v2733 = vpop.f32.mrf.mxu0
  %v2734 = vadd.f32 %v2715, %v2733
  %2735 = vdwg.mxu0
  %2736 = vmatpush.bf16.msra.mxu0 %v1978
  %2737 = vmatpush.bf16.msra.mxu0 %v1970
  %2738 = vmatpush.bf16.msra.mxu0 %v1962
  %2739 = vmatpush.bf16.msra.mxu0 %v1954
  %2740 = vmatpush.bf16.msra.mxu0 %v1946
  %2741 = vmatpush.bf16.msra.mxu0 %v1938
  %2742 = vmatpush.bf16.msra.mxu0 %v1930
  %2743 = vmatpush.bf16.msra.mxu0 %v1922
  %2744 = vmatmul.bf16.gmra.mxu0 %v492
  %v2745 = vpop.f32.mrf.mxu0
  %v2746 = vadd.f32 %v2727, %v2745
  %v2747 = vpop.f32.mrf.mxu0
  %v2748 = vadd.f32 %v2729, %v2747
  %2749 = vmatmul.bf16.gmra.mxu0 %v498
  %v2750 = vpop.f32.mrf.mxu0
  %v2751 = vadd.f32 %v2732, %v2750
  %v2752 = vpop.f32.mrf.mxu0
  %v2753 = vadd.f32 %v2734, %v2752
  %2754 = vdwg.mxu0
  %2755 = vmatpush.bf16.msra.mxu0 %v2042
  %2756 = vmatpush.bf16.msra.mxu0 %v2034
  %2757 = vmatpush.bf16.msra.mxu0 %v2026
  %2758 = vmatpush.bf16.msra.mxu0 %v2018
  %2759 = vmatpush.bf16.msra.mxu0 %v2010
  %2760 = vmatpush.bf16.msra.mxu0 %v2002
  %2761 = vmatpush.bf16.msra.mxu0 %v1994
  %2762 = vmatpush.bf16.msra.mxu0 %v1986
  %2763 = vmatmul.bf16.gmra.mxu0 %v493
  %v2764 = vpop.f32.mrf.mxu0
  %v2765 = vadd.f32 %v2746, %v2764
  %v2766 = vpop.f32.mrf.mxu0
  %v2767 = vadd.f32 %v2748, %v2766
  %2768 = vmatmul.bf16.gmra.mxu0 %v499
  %v2769 = vpop.f32.mrf.mxu0
  %v2770 = vadd.f32 %v2751, %v2769
  %v2771 = vpop.f32.mrf.mxu0
  %v2772 = vadd.f32 %v2753, %v2771
  %2773 = vdwg.mxu0
  %2774 = vmatpush.bf16.msra.mxu0 %v1723
  %2775 = vmatpush.bf16.msra.mxu0 %v1715
  %2776 = vmatpush.bf16.msra.mxu0 %v1707
  %2777 = vmatpush.bf16.msra.mxu0 %v1699
  %2778 = vmatpush.bf16.msra.mxu0 %v1691
  %2779 = vmatpush.bf16.msra.mxu0 %v1683
  %2780 = vmatpush.bf16.msra.mxu0 %v1675
  %2781 = vmatpush.bf16.msra.mxu0 %v1667
  %2782 = vmatmul.bf16.gmra.mxu0 %v488
  %v2783 = vpop.f32.mrf.mxu0
  %v2784 = vadd.f32 %v439, %v2783
  %v2785 = vpop.f32.mrf.mxu0
  %v2786 = vadd.f32 %v439, %v2785
  %2787 = vmatmul.bf16.gmra.mxu0 %v494
  %v2788 = vpop.f32.mrf.mxu0
  %v2789 = vadd.f32 %v439, %v2788
  %v2790 = vpop.f32.mrf.mxu0
  %v2791 = vadd.f32 %v439, %v2790
  %2792 = vdwg.mxu0
  %2793 = vmatpush.bf16.msra.mxu0 %v1787
  %2794 = vmatpush.bf16.msra.mxu0 %v1779
  %2795 = vmatpush.bf16.msra.mxu0 %v1771
  %2796 = vmatpush.bf16.msra.mxu0 %v1763
  %2797 = vmatpush.bf16.msra.mxu0 %v1755
  %2798 = vmatpush.bf16.msra.mxu0 %v1747
  %2799 = vmatpush.bf16.msra.mxu0 %v1739
  %2800 = vmatpush.bf16.msra.mxu0 %v1731
  %2801 = vmatmul.bf16.gmra.mxu0 %v489
  %v2802 = vpop.f32.mrf.mxu0
  %v2803 = vadd.f32 %v2784, %v2802
  %v2804 = vpop.f32.mrf.mxu0
  %v2805 = vadd.f32 %v2786, %v2804
  %2806 = vmatmul.bf16.gmra.mxu0 %v495
  %v2807 = vpop.f32.mrf.mxu0
  %v2808 = vadd.f32 %v2789, %v2807
  %v2809 = vpop.f32.mrf.mxu0
  %v2810 = vadd.f32 %v2791, %v2809
  %2811 = vdwg.mxu0
  %2812 = vmatpush.bf16.msra.mxu0 %v1851
  %2813 = vmatpush.bf16.msra.mxu0 %v1843
  %2814 = vmatpush.bf16.msra.mxu0 %v1835
  %2815 = vmatpush.bf16.msra.mxu0 %v1827
  %2816 = vmatpush.bf16.msra.mxu0 %v1819
  %2817 = vmatpush.bf16.msra.mxu0 %v1811
  %2818 = vmatpush.bf16.msra.mxu0 %v1803
  %2819 = vmatpush.bf16.msra.mxu0 %v1795
  %2820 = vmatmul.bf16.gmra.mxu0 %v490
  %v2821 = vpop.f32.mrf.mxu0
  %v2822 = vadd.f32 %v2803, %v2821
  %v2823 = vpop.f32.mrf.mxu0
  %v2824 = vadd.f32 %v2805, %v2823
  %2825 = vmatmul.bf16.gmra.mxu0 %v496
  %v2826 = vpop.f32.mrf.mxu0
  %v2827 = vadd.f32 %v2808, %v2826
  %v2828 = vpop.f32.mrf.mxu0
  %v2829 = vadd.f32 %v2810, %v2828
  %2830 = vdwg.mxu0
  %2831 = vmatpush.bf16.msra.mxu0 %v1915
  %2832 = vmatpush.bf16.msra.mxu0 %v1907
  %2833 = vmatpush.bf16.msra.mxu0 %v1899
  %2834 = vmatpush.bf16.msra.mxu0 %v1891
  %2835 = vmatpush.bf16.msra.mxu0 %v1883
  %2836 = vmatpush.bf16.msra.mxu0 %v1875
  %2837 = vmatpush.bf16.msra.mxu0 %v1867
  %2838 = vmatpush.bf16.msra.mxu0 %v1859
  %2839 = vmatmul.bf16.gmra.mxu0 %v491
  %v2840 = vpop.f32.mrf.mxu0
  %v2841 = vadd.f32 %v2822, %v2840
  %v2842 = vpop.f32.mrf.mxu0
  %v2843 = vadd.f32 %v2824, %v2842
  %2844 = vmatmul.bf16.gmra.mxu0 %v497
  %v2845 = vpop.f32.mrf.mxu0
  %v2846 = vadd.f32 %v2827, %v2845
  %v2847 = vpop.f32.mrf.mxu0
  %v2848 = vadd.f32 %v2829, %v2847
  %2849 = vdwg.mxu0
  %2850 = vmatpush.bf16.msra.mxu0 %v1979
  %2851 = vmatpush.bf16.msra.mxu0 %v1971
  %2852 = vmatpush.bf16.msra.mxu0 %v1963
  %2853 = vmatpush.bf16.msra.mxu0 %v1955
  %2854 = vmatpush.bf16.msra.mxu0 %v1947
  %2855 = vmatpush.bf16.msra.mxu0 %v1939
  %2856 = vmatpush.bf16.msra.mxu0 %v1931
  %2857 = vmatpush.bf16.msra.mxu0 %v1923
  %2858 = vmatmul.bf16.gmra.mxu0 %v492
  %v2859 = vpop.f32.mrf.mxu0
  %v2860 = vadd.f32 %v2841, %v2859
  %v2861 = vpop.f32.mrf.mxu0
  %v2862 = vadd.f32 %v2843, %v2861
  %2863 = vmatmul.bf16.gmra.mxu0 %v498
  %v2864 = vpop.f32.mrf.mxu0
  %v2865 = vadd.f32 %v2846, %v2864
  %v2866 = vpop.f32.mrf.mxu0
  %v2867 = vadd.f32 %v2848, %v2866
  %2868 = vdwg.mxu0
  %2869 = vmatpush.bf16.msra.mxu0 %v2043
  %2870 = vmatpush.bf16.msra.mxu0 %v2035
  %2871 = vmatpush.bf16.msra.mxu0 %v2027
  %2872 = vmatpush.bf16.msra.mxu0 %v2019
  %2873 = vmatpush.bf16.msra.mxu0 %v2011
  %2874 = vmatpush.bf16.msra.mxu0 %v2003
  %2875 = vmatpush.bf16.msra.mxu0 %v1995
  %2876 = vmatpush.bf16.msra.mxu0 %v1987
  %2877 = vmatmul.bf16.gmra.mxu0 %v493
  %v2878 = vpop.f32.mrf.mxu0
  %v2879 = vadd.f32 %v2860, %v2878
  %v2880 = vpop.f32.mrf.mxu0
  %v2881 = vadd.f32 %v2862, %v2880
  %2882 = vmatmul.bf16.gmra.mxu0 %v499
  %v2883 = vpop.f32.mrf.mxu0
  %v2884 = vadd.f32 %v2865, %v2883
  %v2885 = vpop.f32.mrf.mxu0
  %v2886 = vadd.f32 %v2867, %v2885
  %2887 = vdwg.mxu0
  %2888 = vmatpush.bf16.msra.mxu0 %v1724
  %2889 = vmatpush.bf16.msra.mxu0 %v1716
  %2890 = vmatpush.bf16.msra.mxu0 %v1708
  %2891 = vmatpush.bf16.msra.mxu0 %v1700
  %2892 = vmatpush.bf16.msra.mxu0 %v1692
  %2893 = vmatpush.bf16.msra.mxu0 %v1684
  %2894 = vmatpush.bf16.msra.mxu0 %v1676
  %2895 = vmatpush.bf16.msra.mxu0 %v1668
  %2896 = vmatmul.bf16.gmra.mxu0 %v488
  %v2897 = vpop.f32.mrf.mxu0
  %v2898 = vadd.f32 %v440, %v2897
  %v2899 = vpop.f32.mrf.mxu0
  %v2900 = vadd.f32 %v440, %v2899
  %2901 = vmatmul.bf16.gmra.mxu0 %v494
  %v2902 = vpop.f32.mrf.mxu0
  %v2903 = vadd.f32 %v440, %v2902
  %v2904 = vpop.f32.mrf.mxu0
  %v2905 = vadd.f32 %v440, %v2904
  %2906 = vdwg.mxu0
  %2907 = vmatpush.bf16.msra.mxu0 %v1788
  %2908 = vmatpush.bf16.msra.mxu0 %v1780
  %2909 = vmatpush.bf16.msra.mxu0 %v1772
  %2910 = vmatpush.bf16.msra.mxu0 %v1764
  %2911 = vmatpush.bf16.msra.mxu0 %v1756
  %2912 = vmatpush.bf16.msra.mxu0 %v1748
  %2913 = vmatpush.bf16.msra.mxu0 %v1740
  %2914 = vmatpush.bf16.msra.mxu0 %v1732
  %2915 = vmatmul.bf16.gmra.mxu0 %v489
  %v2916 = vpop.f32.mrf.mxu0
  %v2917 = vadd.f32 %v2898, %v2916
  %v2918 = vpop.f32.mrf.mxu0
  %v2919 = vadd.f32 %v2900, %v2918
  %2920 = vmatmul.bf16.gmra.mxu0 %v495
  %v2921 = vpop.f32.mrf.mxu0
  %v2922 = vadd.f32 %v2903, %v2921
  %v2923 = vpop.f32.mrf.mxu0
  %v2924 = vadd.f32 %v2905, %v2923
  %2925 = vdwg.mxu0
  %2926 = vmatpush.bf16.msra.mxu0 %v1852
  %2927 = vmatpush.bf16.msra.mxu0 %v1844
  %2928 = vmatpush.bf16.msra.mxu0 %v1836
  %2929 = vmatpush.bf16.msra.mxu0 %v1828
  %2930 = vmatpush.bf16.msra.mxu0 %v1820
  %2931 = vmatpush.bf16.msra.mxu0 %v1812
  %2932 = vmatpush.bf16.msra.mxu0 %v1804
  %2933 = vmatpush.bf16.msra.mxu0 %v1796
  %2934 = vmatmul.bf16.gmra.mxu0 %v490
  %v2935 = vpop.f32.mrf.mxu0
  %v2936 = vadd.f32 %v2917, %v2935
  %v2937 = vpop.f32.mrf.mxu0
  %v2938 = vadd.f32 %v2919, %v2937
  %2939 = vmatmul.bf16.gmra.mxu0 %v496
  %v2940 = vpop.f32.mrf.mxu0
  %v2941 = vadd.f32 %v2922, %v2940
  %v2942 = vpop.f32.mrf.mxu0
  %v2943 = vadd.f32 %v2924, %v2942
  %2944 = vdwg.mxu0
  %2945 = vmatpush.bf16.msra.mxu0 %v1916
  %2946 = vmatpush.bf16.msra.mxu0 %v1908
  %2947 = vmatpush.bf16.msra.mxu0 %v1900
  %2948 = vmatpush.bf16.msra.mxu0 %v1892
  %2949 = vmatpush.bf16.msra.mxu0 %v1884
  %2950 = vmatpush.bf16.msra.mxu0 %v1876
  %2951 = vmatpush.bf16.msra.mxu0 %v1868
  %2952 = vmatpush.bf16.msra.mxu0 %v1860
  %2953 = vmatmul.bf16.gmra.mxu0 %v491
  %v2954 = vpop.f32.mrf.mxu0
  %v2955 = vadd.f32 %v2936, %v2954
  %v2956 = vpop.f32.mrf.mxu0
  %v2957 = vadd.f32 %v2938, %v2956
  %2958 = vmatmul.bf16.gmra.mxu0 %v497
  %v2959 = vpop.f32.mrf.mxu0
  %v2960 = vadd.f32 %v2941, %v2959
  %v2961 = vpop.f32.mrf.mxu0
  %v2962 = vadd.f32 %v2943, %v2961
  %2963 = vdwg.mxu0
  %2964 = vmatpush.bf16.msra.mxu0 %v1980
  %2965 = vmatpush.bf16.msra.mxu0 %v1972
  %2966 = vmatpush.bf16.msra.mxu0 %v1964
  %2967 = vmatpush.bf16.msra.mxu0 %v1956
  %2968 = vmatpush.bf16.msra.mxu0 %v1948
  %2969 = vmatpush.bf16.msra.mxu0 %v1940
  %2970 = vmatpush.bf16.msra.mxu0 %v1932
  %2971 = vmatpush.bf16.msra.mxu0 %v1924
  %2972 = vmatmul.bf16.gmra.mxu0 %v492
  %v2973 = vpop.f32.mrf.mxu0
  %v2974 = vadd.f32 %v2955, %v2973
  %v2975 = vpop.f32.mrf.mxu0
  %v2976 = vadd.f32 %v2957, %v2975
  %2977 = vmatmul.bf16.gmra.mxu0 %v498
  %v2978 = vpop.f32.mrf.mxu0
  %v2979 = vadd.f32 %v2960, %v2978
  %v2980 = vpop.f32.mrf.mxu0
  %v2981 = vadd.f32 %v2962, %v2980
  %2982 = vdwg.mxu0
  %2983 = vmatpush.bf16.msra.mxu0 %v2044
  %2984 = vmatpush.bf16.msra.mxu0 %v2036
  %2985 = vmatpush.bf16.msra.mxu0 %v2028
  %2986 = vmatpush.bf16.msra.mxu0 %v2020
  %2987 = vmatpush.bf16.msra.mxu0 %v2012
  %2988 = vmatpush.bf16.msra.mxu0 %v2004
  %2989 = vmatpush.bf16.msra.mxu0 %v1996
  %2990 = vmatpush.bf16.msra.mxu0 %v1988
  %2991 = vmatmul.bf16.gmra.mxu0 %v493
  %v2992 = vpop.f32.mrf.mxu0
  %v2993 = vadd.f32 %v2974, %v2992
  %v2994 = vpop.f32.mrf.mxu0
  %v2995 = vadd.f32 %v2976, %v2994
  %2996 = vmatmul.bf16.gmra.mxu0 %v499
  %v2997 = vpop.f32.mrf.mxu0
  %v2998 = vadd.f32 %v2979, %v2997
  %v2999 = vpop.f32.mrf.mxu0
  %v3000 = vadd.f32 %v2981, %v2999
  %3001 = vdwg.mxu0
  %3002 = vmatpush.bf16.msra.mxu0 %v1725
  %3003 = vmatpush.bf16.msra.mxu0 %v1717
  %3004 = vmatpush.bf16.msra.mxu0 %v1709
  %3005 = vmatpush.bf16.msra.mxu0 %v1701
  %3006 = vmatpush.bf16.msra.mxu0 %v1693
  %3007 = vmatpush.bf16.msra.mxu0 %v1685
  %3008 = vmatpush.bf16.msra.mxu0 %v1677
  %3009 = vmatpush.bf16.msra.mxu0 %v1669
  %3010 = vmatmul.bf16.gmra.mxu0 %v488
  %v3011 = vpop.f32.mrf.mxu0
  %v3012 = vadd.f32 %v441, %v3011
  %v3013 = vpop.f32.mrf.mxu0
  %v3014 = vadd.f32 %v441, %v3013
  %3015 = vmatmul.bf16.gmra.mxu0 %v494
  %v3016 = vpop.f32.mrf.mxu0
  %v3017 = vadd.f32 %v441, %v3016
  %v3018 = vpop.f32.mrf.mxu0
  %v3019 = vadd.f32 %v441, %v3018
  %3020 = vdwg.mxu0
  %3021 = vmatpush.bf16.msra.mxu0 %v1789
  %3022 = vmatpush.bf16.msra.mxu0 %v1781
  %3023 = vmatpush.bf16.msra.mxu0 %v1773
  %3024 = vmatpush.bf16.msra.mxu0 %v1765
  %3025 = vmatpush.bf16.msra.mxu0 %v1757
  %3026 = vmatpush.bf16.msra.mxu0 %v1749
  %3027 = vmatpush.bf16.msra.mxu0 %v1741
  %3028 = vmatpush.bf16.msra.mxu0 %v1733
  %3029 = vmatmul.bf16.gmra.mxu0 %v489
  %v3030 = vpop.f32.mrf.mxu0
  %v3031 = vadd.f32 %v3012, %v3030
  %v3032 = vpop.f32.mrf.mxu0
  %v3033 = vadd.f32 %v3014, %v3032
  %3034 = vmatmul.bf16.gmra.mxu0 %v495
  %v3035 = vpop.f32.mrf.mxu0
  %v3036 = vadd.f32 %v3017, %v3035
  %v3037 = vpop.f32.mrf.mxu0
  %v3038 = vadd.f32 %v3019, %v3037
  %3039 = vdwg.mxu0
  %3040 = vmatpush.bf16.msra.mxu0 %v1853
  %3041 = vmatpush.bf16.msra.mxu0 %v1845
  %3042 = vmatpush.bf16.msra.mxu0 %v1837
  %3043 = vmatpush.bf16.msra.mxu0 %v1829
  %3044 = vmatpush.bf16.msra.mxu0 %v1821
  %3045 = vmatpush.bf16.msra.mxu0 %v1813
  %3046 = vmatpush.bf16.msra.mxu0 %v1805
  %3047 = vmatpush.bf16.msra.mxu0 %v1797
  %3048 = vmatmul.bf16.gmra.mxu0 %v490
  %v3049 = vpop.f32.mrf.mxu0
  %v3050 = vadd.f32 %v3031, %v3049
  %v3051 = vpop.f32.mrf.mxu0
  %v3052 = vadd.f32 %v3033, %v3051
  %3053 = vmatmul.bf16.gmra.mxu0 %v496
  %v3054 = vpop.f32.mrf.mxu0
  %v3055 = vadd.f32 %v3036, %v3054
  %v3056 = vpop.f32.mrf.mxu0
  %v3057 = vadd.f32 %v3038, %v3056
  %3058 = vdwg.mxu0
  %3059 = vmatpush.bf16.msra.mxu0 %v1917
  %3060 = vmatpush.bf16.msra.mxu0 %v1909
  %3061 = vmatpush.bf16.msra.mxu0 %v1901
  %3062 = vmatpush.bf16.msra.mxu0 %v1893
  %3063 = vmatpush.bf16.msra.mxu0 %v1885
  %3064 = vmatpush.bf16.msra.mxu0 %v1877
  %3065 = vmatpush.bf16.msra.mxu0 %v1869
  %3066 = vmatpush.bf16.msra.mxu0 %v1861
  %3067 = vmatmul.bf16.gmra.mxu0 %v491
  %v3068 = vpop.f32.mrf.mxu0
  %v3069 = vadd.f32 %v3050, %v3068
  %v3070 = vpop.f32.mrf.mxu0
  %v3071 = vadd.f32 %v3052, %v3070
  %3072 = vmatmul.bf16.gmra.mxu0 %v497
  %v3073 = vpop.f32.mrf.mxu0
  %v3074 = vadd.f32 %v3055, %v3073
  %v3075 = vpop.f32.mrf.mxu0
  %v3076 = vadd.f32 %v3057, %v3075
  %3077 = vdwg.mxu0
  %3078 = vmatpush.bf16.msra.mxu0 %v1981
  %3079 = vmatpush.bf16.msra.mxu0 %v1973
  %3080 = vmatpush.bf16.msra.mxu0 %v1965
  %3081 = vmatpush.bf16.msra.mxu0 %v1957
  %3082 = vmatpush.bf16.msra.mxu0 %v1949
  %3083 = vmatpush.bf16.msra.mxu0 %v1941
  %3084 = vmatpush.bf16.msra.mxu0 %v1933
  %3085 = vmatpush.bf16.msra.mxu0 %v1925
  %3086 = vmatmul.bf16.gmra.mxu0 %v492
  %v3087 = vpop.f32.mrf.mxu0
  %v3088 = vadd.f32 %v3069, %v3087
  %v3089 = vpop.f32.mrf.mxu0
  %v3090 = vadd.f32 %v3071, %v3089
  %3091 = vmatmul.bf16.gmra.mxu0 %v498
  %v3092 = vpop.f32.mrf.mxu0
  %v3093 = vadd.f32 %v3074, %v3092
  %v3094 = vpop.f32.mrf.mxu0
  %v3095 = vadd.f32 %v3076, %v3094
  %3096 = vdwg.mxu0
  %3097 = vmatpush.bf16.msra.mxu0 %v2045
  %3098 = vmatpush.bf16.msra.mxu0 %v2037
  %3099 = vmatpush.bf16.msra.mxu0 %v2029
  %3100 = vmatpush.bf16.msra.mxu0 %v2021
  %3101 = vmatpush.bf16.msra.mxu0 %v2013
  %3102 = vmatpush.bf16.msra.mxu0 %v2005
  %3103 = vmatpush.bf16.msra.mxu0 %v1997
  %3104 = vmatpush.bf16.msra.mxu0 %v1989
  %3105 = vmatmul.bf16.gmra.mxu0 %v493
  %v3106 = vpop.f32.mrf.mxu0
  %v3107 = vadd.f32 %v3088, %v3106
  %v3108 = vpop.f32.mrf.mxu0
  %v3109 = vadd.f32 %v3090, %v3108
  %3110 = vmatmul.bf16.gmra.mxu0 %v499
  %v3111 = vpop.f32.mrf.mxu0
  %v3112 = vadd.f32 %v3093, %v3111
  %v3113 = vpop.f32.mrf.mxu0
  %v3114 = vadd.f32 %v3095, %v3113
  %3115 = vdwg.mxu0
  %3116 = vmatpush.bf16.msra.mxu0 %v1726
  %3117 = vmatpush.bf16.msra.mxu0 %v1718
  %3118 = vmatpush.bf16.msra.mxu0 %v1710
  %3119 = vmatpush.bf16.msra.mxu0 %v1702
  %3120 = vmatpush.bf16.msra.mxu0 %v1694
  %3121 = vmatpush.bf16.msra.mxu0 %v1686
  %3122 = vmatpush.bf16.msra.mxu0 %v1678
  %3123 = vmatpush.bf16.msra.mxu0 %v1670
  %3124 = vmatmul.bf16.gmra.mxu0 %v488
  %v3125 = vpop.f32.mrf.mxu0
  %v3126 = vadd.f32 %v442, %v3125
  %v3127 = vpop.f32.mrf.mxu0
  %v3128 = vadd.f32 %v442, %v3127
  %3129 = vmatmul.bf16.gmra.mxu0 %v494
  %v3130 = vpop.f32.mrf.mxu0
  %v3131 = vadd.f32 %v442, %v3130
  %v3132 = vpop.f32.mrf.mxu0
  %v3133 = vadd.f32 %v442, %v3132
  %3134 = vdwg.mxu0
  %3135 = vmatpush.bf16.msra.mxu0 %v1790
  %3136 = vmatpush.bf16.msra.mxu0 %v1782
  %3137 = vmatpush.bf16.msra.mxu0 %v1774
  %3138 = vmatpush.bf16.msra.mxu0 %v1766
  %3139 = vmatpush.bf16.msra.mxu0 %v1758
  %3140 = vmatpush.bf16.msra.mxu0 %v1750
  %3141 = vmatpush.bf16.msra.mxu0 %v1742
  %3142 = vmatpush.bf16.msra.mxu0 %v1734
  %3143 = vmatmul.bf16.gmra.mxu0 %v489
  %v3144 = vpop.f32.mrf.mxu0
  %v3145 = vadd.f32 %v3126, %v3144
  %v3146 = vpop.f32.mrf.mxu0
  %v3147 = vadd.f32 %v3128, %v3146
  %3148 = vmatmul.bf16.gmra.mxu0 %v495
  %v3149 = vpop.f32.mrf.mxu0
  %v3150 = vadd.f32 %v3131, %v3149
  %v3151 = vpop.f32.mrf.mxu0
  %v3152 = vadd.f32 %v3133, %v3151
  %3153 = vdwg.mxu0
  %3154 = vmatpush.bf16.msra.mxu0 %v1854
  %3155 = vmatpush.bf16.msra.mxu0 %v1846
  %3156 = vmatpush.bf16.msra.mxu0 %v1838
  %3157 = vmatpush.bf16.msra.mxu0 %v1830
  %3158 = vmatpush.bf16.msra.mxu0 %v1822
  %3159 = vmatpush.bf16.msra.mxu0 %v1814
  %3160 = vmatpush.bf16.msra.mxu0 %v1806
  %3161 = vmatpush.bf16.msra.mxu0 %v1798
  %3162 = vmatmul.bf16.gmra.mxu0 %v490
  %v3163 = vpop.f32.mrf.mxu0
  %v3164 = vadd.f32 %v3145, %v3163
  %v3165 = vpop.f32.mrf.mxu0
  %v3166 = vadd.f32 %v3147, %v3165
  %3167 = vmatmul.bf16.gmra.mxu0 %v496
  %v3168 = vpop.f32.mrf.mxu0
  %v3169 = vadd.f32 %v3150, %v3168
  %v3170 = vpop.f32.mrf.mxu0
  %v3171 = vadd.f32 %v3152, %v3170
  %3172 = vdwg.mxu0
  %3173 = vmatpush.bf16.msra.mxu0 %v1918
  %3174 = vmatpush.bf16.msra.mxu0 %v1910
  %3175 = vmatpush.bf16.msra.mxu0 %v1902
  %3176 = vmatpush.bf16.msra.mxu0 %v1894
  %3177 = vmatpush.bf16.msra.mxu0 %v1886
  %3178 = vmatpush.bf16.msra.mxu0 %v1878
  %3179 = vmatpush.bf16.msra.mxu0 %v1870
  %3180 = vmatpush.bf16.msra.mxu0 %v1862
  %3181 = vmatmul.bf16.gmra.mxu0 %v491
  %v3182 = vpop.f32.mrf.mxu0
  %v3183 = vadd.f32 %v3164, %v3182
  %v3184 = vpop.f32.mrf.mxu0
  %v3185 = vadd.f32 %v3166, %v3184
  %3186 = vmatmul.bf16.gmra.mxu0 %v497
  %v3187 = vpop.f32.mrf.mxu0
  %v3188 = vadd.f32 %v3169, %v3187
  %v3189 = vpop.f32.mrf.mxu0
  %v3190 = vadd.f32 %v3171, %v3189
  %3191 = vdwg.mxu0
  %3192 = vmatpush.bf16.msra.mxu0 %v1982
  %3193 = vmatpush.bf16.msra.mxu0 %v1974
  %3194 = vmatpush.bf16.msra.mxu0 %v1966
  %3195 = vmatpush.bf16.msra.mxu0 %v1958
  %3196 = vmatpush.bf16.msra.mxu0 %v1950
  %3197 = vmatpush.bf16.msra.mxu0 %v1942
  %3198 = vmatpush.bf16.msra.mxu0 %v1934
  %3199 = vmatpush.bf16.msra.mxu0 %v1926
  %3200 = vmatmul.bf16.gmra.mxu0 %v492
  %v3201 = vpop.f32.mrf.mxu0
  %v3202 = vadd.f32 %v3183, %v3201
  %v3203 = vpop.f32.mrf.mxu0
  %v3204 = vadd.f32 %v3185, %v3203
  %3205 = vmatmul.bf16.gmra.mxu0 %v498
  %v3206 = vpop.f32.mrf.mxu0
  %v3207 = vadd.f32 %v3188, %v3206
  %v3208 = vpop.f32.mrf.mxu0
  %v3209 = vadd.f32 %v3190, %v3208
  %3210 = vdwg.mxu0
  %3211 = vmatpush.bf16.msra.mxu0 %v2046
  %3212 = vmatpush.bf16.msra.mxu0 %v2038
  %3213 = vmatpush.bf16.msra.mxu0 %v2030
  %3214 = vmatpush.bf16.msra.mxu0 %v2022
  %3215 = vmatpush.bf16.msra.mxu0 %v2014
  %3216 = vmatpush.bf16.msra.mxu0 %v2006
  %3217 = vmatpush.bf16.msra.mxu0 %v1998
  %3218 = vmatpush.bf16.msra.mxu0 %v1990
  %3219 = vmatmul.bf16.gmra.mxu0 %v493
  %v3220 = vpop.f32.mrf.mxu0
  %v3221 = vadd.f32 %v3202, %v3220
  %v3222 = vpop.f32.mrf.mxu0
  %v3223 = vadd.f32 %v3204, %v3222
  %3224 = vmatmul.bf16.gmra.mxu0 %v499
  %v3225 = vpop.f32.mrf.mxu0
  %v3226 = vadd.f32 %v3207, %v3225
  %v3227 = vpop.f32.mrf.mxu0
  %v3228 = vadd.f32 %v3209, %v3227
  %3229 = vdwg.mxu0
  %3230 = vmatpush.bf16.msra.mxu0 %v1727
  %3231 = vmatpush.bf16.msra.mxu0 %v1719
  %3232 = vmatpush.bf16.msra.mxu0 %v1711
  %3233 = vmatpush.bf16.msra.mxu0 %v1703
  %3234 = vmatpush.bf16.msra.mxu0 %v1695
  %3235 = vmatpush.bf16.msra.mxu0 %v1687
  %3236 = vmatpush.bf16.msra.mxu0 %v1679
  %3237 = vmatpush.bf16.msra.mxu0 %v1671
  %3238 = vmatmul.bf16.gmra.mxu0 %v488
  %v3239 = vpop.f32.mrf.mxu0
  %v3240 = vadd.f32 %v443, %v3239
  %v3241 = vpop.f32.mrf.mxu0
  %v3242 = vadd.f32 %v443, %v3241
  %3243 = vmatmul.bf16.gmra.mxu0 %v494
  %v3244 = vpop.f32.mrf.mxu0
  %v3245 = vadd.f32 %v443, %v3244
  %v3246 = vpop.f32.mrf.mxu0
  %v3247 = vadd.f32 %v443, %v3246
  %3248 = vdwg.mxu0
  %3249 = vmatpush.bf16.msra.mxu0 %v1791
  %3250 = vmatpush.bf16.msra.mxu0 %v1783
  %3251 = vmatpush.bf16.msra.mxu0 %v1775
  %3252 = vmatpush.bf16.msra.mxu0 %v1767
  %3253 = vmatpush.bf16.msra.mxu0 %v1759
  %3254 = vmatpush.bf16.msra.mxu0 %v1751
  %3255 = vmatpush.bf16.msra.mxu0 %v1743
  %3256 = vmatpush.bf16.msra.mxu0 %v1735
  %3257 = vmatmul.bf16.gmra.mxu0 %v489
  %v3258 = vpop.f32.mrf.mxu0
  %v3259 = vadd.f32 %v3240, %v3258
  %v3260 = vpop.f32.mrf.mxu0
  %v3261 = vadd.f32 %v3242, %v3260
  %3262 = vmatmul.bf16.gmra.mxu0 %v495
  %v3263 = vpop.f32.mrf.mxu0
  %v3264 = vadd.f32 %v3245, %v3263
  %v3265 = vpop.f32.mrf.mxu0
  %v3266 = vadd.f32 %v3247, %v3265
  %3267 = vdwg.mxu0
  %3268 = vmatpush.bf16.msra.mxu0 %v1855
  %3269 = vmatpush.bf16.msra.mxu0 %v1847
  %3270 = vmatpush.bf16.msra.mxu0 %v1839
  %3271 = vmatpush.bf16.msra.mxu0 %v1831
  %3272 = vmatpush.bf16.msra.mxu0 %v1823
  %3273 = vmatpush.bf16.msra.mxu0 %v1815
  %3274 = vmatpush.bf16.msra.mxu0 %v1807
  %3275 = vmatpush.bf16.msra.mxu0 %v1799
  %3276 = vmatmul.bf16.gmra.mxu0 %v490
  %v3277 = vpop.f32.mrf.mxu0
  %v3278 = vadd.f32 %v3259, %v3277
  %v3279 = vpop.f32.mrf.mxu0
  %v3280 = vadd.f32 %v3261, %v3279
  %3281 = vmatmul.bf16.gmra.mxu0 %v496
  %v3282 = vpop.f32.mrf.mxu0
  %v3283 = vadd.f32 %v3264, %v3282
  %v3284 = vpop.f32.mrf.mxu0
  %v3285 = vadd.f32 %v3266, %v3284
  %3286 = vdwg.mxu0
  %3287 = vmatpush.bf16.msra.mxu0 %v1919
  %3288 = vmatpush.bf16.msra.mxu0 %v1911
  %3289 = vmatpush.bf16.msra.mxu0 %v1903
  %3290 = vmatpush.bf16.msra.mxu0 %v1895
  %3291 = vmatpush.bf16.msra.mxu0 %v1887
  %3292 = vmatpush.bf16.msra.mxu0 %v1879
  %3293 = vmatpush.bf16.msra.mxu0 %v1871
  %3294 = vmatpush.bf16.msra.mxu0 %v1863
  %3295 = vmatmul.bf16.gmra.mxu0 %v491
  %v3296 = vpop.f32.mrf.mxu0
  %v3297 = vadd.f32 %v3278, %v3296
  %v3298 = vpop.f32.mrf.mxu0
  %v3299 = vadd.f32 %v3280, %v3298
  %3300 = vmatmul.bf16.gmra.mxu0 %v497
  %v3301 = vpop.f32.mrf.mxu0
  %v3302 = vadd.f32 %v3283, %v3301
  %v3303 = vpop.f32.mrf.mxu0
  %v3304 = vadd.f32 %v3285, %v3303
  %3305 = vdwg.mxu0
  %3306 = vmatpush.bf16.msra.mxu0 %v1983
  %3307 = vmatpush.bf16.msra.mxu0 %v1975
  %3308 = vmatpush.bf16.msra.mxu0 %v1967
  %3309 = vmatpush.bf16.msra.mxu0 %v1959
  %3310 = vmatpush.bf16.msra.mxu0 %v1951
  %3311 = vmatpush.bf16.msra.mxu0 %v1943
  %3312 = vmatpush.bf16.msra.mxu0 %v1935
  %3313 = vmatpush.bf16.msra.mxu0 %v1927
  %3314 = vmatmul.bf16.gmra.mxu0 %v492
  %v3315 = vpop.f32.mrf.mxu0
  %v3316 = vadd.f32 %v3297, %v3315
  %v3317 = vpop.f32.mrf.mxu0
  %v3318 = vadd.f32 %v3299, %v3317
  %3319 = vmatmul.bf16.gmra.mxu0 %v498
  %v3320 = vpop.f32.mrf.mxu0
  %v3321 = vadd.f32 %v3302, %v3320
  %v3322 = vpop.f32.mrf.mxu0
  %v3323 = vadd.f32 %v3304, %v3322
  %3324 = vdwg.mxu0
  %3325 = vmatpush.bf16.msra.mxu0 %v2047
  %3326 = vmatpush.bf16.msra.mxu0 %v2039
  %3327 = vmatpush.bf16.msra.mxu0 %v2031
  %3328 = vmatpush.bf16.msra.mxu0 %v2023
  %3329 = vmatpush.bf16.msra.mxu0 %v2015
  %3330 = vmatpush.bf16.msra.mxu0 %v2007
  %3331 = vmatpush.bf16.msra.mxu0 %v1999
  %3332 = vmatpush.bf16.msra.mxu0 %v1991
  %3333 = vmatmul.bf16.gmra.mxu0 %v493
  %v3334 = vpop.f32.mrf.mxu0
  %v3335 = vadd.f32 %v3316, %v3334
  %v3336 = vpop.f32.mrf.mxu0
  %v3337 = vadd.f32 %v3318, %v3336
  %3338 = vmatmul.bf16.gmra.mxu0 %v499
  %v3339 = vpop.f32.mrf.mxu0
  %v3340 = vadd.f32 %v3321, %v3339
  %v3341 = vpop.f32.mrf.mxu0
  %v3342 = vadd.f32 %v3323, %v3341
  %3343 = vdwg.mxu0
  %v3344 = vmax.f32 %v2537, 0.0
  %v3345 = vmax.f32 %v2651, 0.0
  %v3346 = vmax.f32 %v2765, 0.0
  %v3347 = vmax.f32 %v2879, 0.0
  %v3348 = vmax.f32 %v2993, 0.0
  %v3349 = vmax.f32 %v3107, 0.0
  %v3350 = vmax.f32 %v3221, 0.0
  %v3351 = vmax.f32 %v3335, 0.0
  %v3352 = vmax.f32 %v2539, 0.0
  %v3353 = vmax.f32 %v2653, 0.0
  %v3354 = vmax.f32 %v2767, 0.0
  %v3355 = vmax.f32 %v2881, 0.0
  %v3356 = vmax.f32 %v2995, 0.0
  %v3357 = vmax.f32 %v3109, 0.0
  %v3358 = vmax.f32 %v3223, 0.0
  %v3359 = vmax.f32 %v3337, 0.0
  %v3360 = vmax.f32 %v2542, 0.0
  %v3361 = vmax.f32 %v2656, 0.0
  %v3362 = vmax.f32 %v2770, 0.0
  %v3363 = vmax.f32 %v2884, 0.0
  %v3364 = vmax.f32 %v2998, 0.0
  %v3365 = vmax.f32 %v3112, 0.0
  %v3366 = vmax.f32 %v3226, 0.0
  %v3367 = vmax.f32 %v3340, 0.0
  %v3368 = vmax.f32 %v2544, 0.0
  %v3369 = vmax.f32 %v2658, 0.0
  %v3370 = vmax.f32 %v2772, 0.0
  %v3371 = vmax.f32 %v2886, 0.0
  %v3372 = vmax.f32 %v3000, 0.0
  %v3373 = vmax.f32 %v3114, 0.0
  %v3374 = vmax.f32 %v3228, 0.0
  %v3375 = vmax.f32 %v3342, 0.0
  %v3376 = vmax.f32 %v3344, %v3352
  %v3377 = vrot.slane %v3376, 4
  %v3378 = vmax.f32 %v3376, %v3377
  %v3379 = vrot.slane %v3378, 2
  %v3380 = vmax.f32 %v3378, %v3379
  %v3381 = vrot.slane %v3380, 1
  %v3382 = vmax.f32 %v3380, %v3381
  %v3383 = vmax.f32 %v3345, %v3353
  %v3384 = vrot.slane %v3383, 4
  %v3385 = vmax.f32 %v3383, %v3384
  %v3386 = vrot.slane %v3385, 2
  %v3387 = vmax.f32 %v3385, %v3386
  %v3388 = vrot.slane %v3387, 1
  %v3389 = vmax.f32 %v3387, %v3388
  %v3390 = vmax.f32 %v3346, %v3354
  %v3391 = vrot.slane %v3390, 4
  %v3392 = vmax.f32 %v3390, %v3391
  %v3393 = vrot.slane %v3392, 2
  %v3394 = vmax.f32 %v3392, %v3393
  %v3395 = vrot.slane %v3394, 1
  %v3396 = vmax.f32 %v3394, %v3395
  %v3397 = vmax.f32 %v3347, %v3355
  %v3398 = vrot.slane %v3397, 4
  %v3399 = vmax.f32 %v3397, %v3398
  %v3400 = vrot.slane %v3399, 2
  %v3401 = vmax.f32 %v3399, %v3400
  %v3402 = vrot.slane %v3401, 1
  %v3403 = vmax.f32 %v3401, %v3402
  %v3404 = vmax.f32 %v3348, %v3356
  %v3405 = vrot.slane %v3404, 4
  %v3406 = vmax.f32 %v3404, %v3405
  %v3407 = vrot.slane %v3406, 2
  %v3408 = vmax.f32 %v3406, %v3407
  %v3409 = vrot.slane %v3408, 1
  %v3410 = vmax.f32 %v3408, %v3409
  %v3411 = vmax.f32 %v3349, %v3357
  %v3412 = vrot.slane %v3411, 4
  %v3413 = vmax.f32 %v3411, %v3412
  %v3414 = vrot.slane %v3413, 2
  %v3415 = vmax.f32 %v3413, %v3414
  %v3416 = vrot.slane %v3415, 1
  %v3417 = vmax.f32 %v3415, %v3416
  %v3418 = vmax.f32 %v3350, %v3358
  %v3419 = vrot.slane %v3418, 4
  %v3420 = vmax.f32 %v3418, %v3419
  %v3421 = vrot.slane %v3420, 2
  %v3422 = vmax.f32 %v3420, %v3421
  %v3423 = vrot.slane %v3422, 1
  %v3424 = vmax.f32 %v3422, %v3423
  %v3425 = vmax.f32 %v3351, %v3359
  %v3426 = vrot.slane %v3425, 4
  %v3427 = vmax.f32 %v3425, %v3426
  %v3428 = vrot.slane %v3427, 2
  %v3429 = vmax.f32 %v3427, %v3428
  %v3430 = vrot.slane %v3429, 1
  %v3431 = vmax.f32 %v3429, %v3430
  %v3432 = vmax.f32 %v3360, %v3368
  %v3433 = vrot.slane %v3432, 4
  %v3434 = vmax.f32 %v3432, %v3433
  %v3435 = vrot.slane %v3434, 2
  %v3436 = vmax.f32 %v3434, %v3435
  %v3437 = vrot.slane %v3436, 1
  %v3438 = vmax.f32 %v3436, %v3437
  %v3439 = vmax.f32 %v3361, %v3369
  %v3440 = vrot.slane %v3439, 4
  %v3441 = vmax.f32 %v3439, %v3440
  %v3442 = vrot.slane %v3441, 2
  %v3443 = vmax.f32 %v3441, %v3442
  %v3444 = vrot.slane %v3443, 1
  %v3445 = vmax.f32 %v3443, %v3444
  %v3446 = vmax.f32 %v3362, %v3370
  %v3447 = vrot.slane %v3446, 4
  %v3448 = vmax.f32 %v3446, %v3447
  %v3449 = vrot.slane %v3448, 2
  %v3450 = vmax.f32 %v3448, %v3449
  %v3451 = vrot.slane %v3450, 1
  %v3452 = vmax.f32 %v3450, %v3451
  %v3453 = vmax.f32 %v3363, %v3371
  %v3454 = vrot.slane %v3453, 4
  %v3455 = vmax.f32 %v3453, %v3454
  %v3456 = vrot.slane %v3455, 2
  %v3457 = vmax.f32 %v3455, %v3456
  %v3458 = vrot.slane %v3457, 1
  %v3459 = vmax.f32 %v3457, %v3458
  %v3460 = vmax.f32 %v3364, %v3372
  %v3461 = vrot.slane %v3460, 4
  %v3462 = vmax.f32 %v3460, %v3461
  %v3463 = vrot.slane %v3462, 2
  %v3464 = vmax.f32 %v3462, %v3463
  %v3465 = vrot.slane %v3464, 1
  %v3466 = vmax.f32 %v3464, %v3465
  %v3467 = vmax.f32 %v3365, %v3373
  %v3468 = vrot.slane %v3467, 4
  %v3469 = vmax.f32 %v3467, %v3468
  %v3470 = vrot.slane %v3469, 2
  %v3471 = vmax.f32 %v3469, %v3470
  %v3472 = vrot.slane %v3471, 1
  %v3473 = vmax.f32 %v3471, %v3472
  %v3474 = vmax.f32 %v3366, %v3374
  %v3475 = vrot.slane %v3474, 4
  %v3476 = vmax.f32 %v3474, %v3475
  %v3477 = vrot.slane %v3476, 2
  %v3478 = vmax.f32 %v3476, %v3477
  %v3479 = vrot.slane %v3478, 1
  %v3480 = vmax.f32 %v3478, %v3479
  %v3481 = vmax.f32 %v3367, %v3375
  %v3482 = vrot.slane %v3481, 4
  %v3483 = vmax.f32 %v3481, %v3482
  %v3484 = vrot.slane %v3483, 2
  %v3485 = vmax.f32 %v3483, %v3484
  %v3486 = vrot.slane %v3485, 1
  %v3487 = vmax.f32 %v3485, %v3486
  %vm3504 = vcmask 1041409
  %v3505 = vsel %vm3504, %v3438, %v3382
  %v3506 = vsel %vm3504, %v3445, %v3389
  %v3507 = vsel %vm3504, %v3452, %v3396
  %v3508 = vsel %vm3504, %v3459, %v3403
  %v3509 = vsel %vm3504, %v3466, %v3410
  %v3510 = vsel %vm3504, %v3473, %v3417
  %v3511 = vsel %vm3504, %v3480, %v3424
  %v3512 = vsel %vm3504, %v3487, %v3431
  %3521 = vst [vmem:[#allocation2] sm:$0x3] %v3505
  %3522 = vst [vmem:[#allocation2 + $0x8] sm:$0x3] %v3506
  %3523 = vst [vmem:[#allocation2 + $0x10] sm:$0x3] %v3507
  %3524 = vst [vmem:[#allocation2 + $0x18] sm:$0x3] %v3508
  %3525 = vst [vmem:[#allocation2 + $0x20] sm:$0x3] %v3509
  %3526 = vst [vmem:[#allocation2 + $0x28] sm:$0x3] %v3510
  %3527 = vst [vmem:[#allocation2 + $0x30] sm:$0x3] %v3511
  %3528 = vst [vmem:[#allocation2 + $0x38] sm:$0x3] %v3512
  // Predicated region
  $region34: #{kernel_learning_forward.1} parent=0 // pred_check
    %p3529 = pneg %p26
  $region35: #{kernel_learning_forward.1} parent=0 // pred_check_branch
    %3531 = sbr.rel (%p3529) target = $region37
  $region36: #{kernel_learning_forward.1} parent=0 // pred_region
    %v3532 = vld [vmem:[#allocation2] sm:$0xff]
    %v3533 = vld [vmem:[#allocation2 + $0x8] sm:$0xff]
    %v3534 = vld [vmem:[#allocation2 + $0x10] sm:$0xff]
    %v3535 = vld [vmem:[#allocation2 + $0x18] sm:$0xff]
    %v3536 = vld [vmem:[#allocation2 + $0x20] sm:$0xff]
    %v3537 = vld [vmem:[#allocation2 + $0x28] sm:$0xff]
    %v3538 = vld [vmem:[#allocation2 + $0x30] sm:$0xff]
    %v3539 = vld [vmem:[#allocation2 + $0x38] sm:$0xff]
    %v3540 = vpack.c.bf16 %v3532, %v3532
    %v3541 = vpack.c.bf16 %v3533, %v3533
    %v3542 = vpack.c.bf16 %v3534, %v3534
    %v3543 = vpack.c.bf16 %v3535, %v3535
    %v3544 = vpack.c.bf16 %v3536, %v3536
    %v3545 = vpack.c.bf16 %v3537, %v3537
    %v3546 = vpack.c.bf16 %v3538, %v3538
    %v3547 = vpack.c.bf16 %v3539, %v3539
    %v3548 = vld [vmem:[%s3] sm:$0xff]
    %v3549 = vld [vmem:[%s3 + $0x8] sm:$0xff]
    %v3550 = vld [vmem:[%s3 + $0x10] sm:$0xff]
    %v3551 = vld [vmem:[%s3 + $0x18] sm:$0xff]
    %v3552 = vld [vmem:[%s3 + $0x20] sm:$0xff]
    %v3553 = vld [vmem:[%s3 + $0x28] sm:$0xff]
    %v3554 = vld [vmem:[%s3 + $0x30] sm:$0xff]
    %v3555 = vld [vmem:[%s3 + $0x38] sm:$0xff]
    %v3556 = vld [vmem:[%s3 + $0x40] sm:$0xff]
    %v3557 = vld [vmem:[%s3 + $0x48] sm:$0xff]
    %v3558 = vld [vmem:[%s3 + $0x50] sm:$0xff]
    %v3559 = vld [vmem:[%s3 + $0x58] sm:$0xff]
    %v3560 = vld [vmem:[%s3 + $0x60] sm:$0xff]
    %v3561 = vld [vmem:[%s3 + $0x68] sm:$0xff]
    %v3562 = vld [vmem:[%s3 + $0x70] sm:$0xff]
    %v3563 = vld [vmem:[%s3 + $0x78] sm:$0xff]
    %v3564 = vld [vmem:[%s3 + $0x80] sm:$0xff]
    %v3565 = vld [vmem:[%s3 + $0x88] sm:$0xff]
    %v3566 = vld [vmem:[%s3 + $0x90] sm:$0xff]
    %v3567 = vld [vmem:[%s3 + $0x98] sm:$0xff]
    %v3568 = vld [vmem:[%s3 + $0xa0] sm:$0xff]
    %v3569 = vld [vmem:[%s3 + $0xa8] sm:$0xff]
    %v3570 = vld [vmem:[%s3 + $0xb0] sm:$0xff]
    %v3571 = vld [vmem:[%s3 + $0xb8] sm:$0xff]
    %v3572 = vld [vmem:[%s3 + $0xc0] sm:$0xff]
    %v3573 = vld [vmem:[%s3 + $0xc8] sm:$0xff]
    %v3574 = vld [vmem:[%s3 + $0xd0] sm:$0xff]
    %v3575 = vld [vmem:[%s3 + $0xd8] sm:$0xff]
    %v3576 = vld [vmem:[%s3 + $0xe0] sm:$0xff]
    %v3577 = vld [vmem:[%s3 + $0xe8] sm:$0xff]
    %v3578 = vld [vmem:[%s3 + $0xf0] sm:$0xff]
    %v3579 = vld [vmem:[%s3 + $0xf8] sm:$0xff]
    %v3580 = vld [vmem:[%s3 + $0x100] sm:$0xff]
    %v3581 = vld [vmem:[%s3 + $0x108] sm:$0xff]
    %v3582 = vld [vmem:[%s3 + $0x110] sm:$0xff]
    %v3583 = vld [vmem:[%s3 + $0x118] sm:$0xff]
    %v3584 = vld [vmem:[%s3 + $0x120] sm:$0xff]
    %v3585 = vld [vmem:[%s3 + $0x128] sm:$0xff]
    %v3586 = vld [vmem:[%s3 + $0x130] sm:$0xff]
    %v3587 = vld [vmem:[%s3 + $0x138] sm:$0xff]
    %v3588 = vld [vmem:[%s3 + $0x140] sm:$0xff]
    %v3589 = vld [vmem:[%s3 + $0x148] sm:$0xff]
    %v3590 = vld [vmem:[%s3 + $0x150] sm:$0xff]
    %v3591 = vld [vmem:[%s3 + $0x158] sm:$0xff]
    %v3592 = vld [vmem:[%s3 + $0x160] sm:$0xff]
    %v3593 = vld [vmem:[%s3 + $0x168] sm:$0xff]
    %v3594 = vld [vmem:[%s3 + $0x170] sm:$0xff]
    %v3595 = vld [vmem:[%s3 + $0x178] sm:$0xff]
    %v3596 = vld [vmem:[%s3 + $0x180] sm:$0xff]
    %v3597 = vld [vmem:[%s3 + $0x188] sm:$0xff]
    %v3598 = vld [vmem:[%s3 + $0x190] sm:$0xff]
    %v3599 = vld [vmem:[%s3 + $0x198] sm:$0xff]
    %v3600 = vld [vmem:[%s3 + $0x1a0] sm:$0xff]
    %v3601 = vld [vmem:[%s3 + $0x1a8] sm:$0xff]
    %v3602 = vld [vmem:[%s3 + $0x1b0] sm:$0xff]
    %v3603 = vld [vmem:[%s3 + $0x1b8] sm:$0xff]
    %v3604 = vld [vmem:[%s3 + $0x1c0] sm:$0xff]
    %v3605 = vld [vmem:[%s3 + $0x1c8] sm:$0xff]
    %v3606 = vld [vmem:[%s3 + $0x1d0] sm:$0xff]
    %v3607 = vld [vmem:[%s3 + $0x1d8] sm:$0xff]
    %v3608 = vld [vmem:[%s3 + $0x1e0] sm:$0xff]
    %v3609 = vld [vmem:[%s3 + $0x1e8] sm:$0xff]
    %v3610 = vld [vmem:[%s3 + $0x1f0] sm:$0xff]
    %v3611 = vld [vmem:[%s3 + $0x1f8] sm:$0xff]
    %v3612 = vld [vmem:[%s3 + $0x200] sm:$0xff]
    %v3613 = vld [vmem:[%s3 + $0x208] sm:$0xff]
    %v3614 = vld [vmem:[%s3 + $0x210] sm:$0xff]
    %v3615 = vld [vmem:[%s3 + $0x218] sm:$0xff]
    %v3616 = vld [vmem:[%s3 + $0x220] sm:$0xff]
    %v3617 = vld [vmem:[%s3 + $0x228] sm:$0xff]
    %v3618 = vld [vmem:[%s3 + $0x230] sm:$0xff]
    %v3619 = vld [vmem:[%s3 + $0x238] sm:$0xff]
    %v3620 = vld [vmem:[%s3 + $0x240] sm:$0xff]
    %v3621 = vld [vmem:[%s3 + $0x248] sm:$0xff]
    %v3622 = vld [vmem:[%s3 + $0x250] sm:$0xff]
    %v3623 = vld [vmem:[%s3 + $0x258] sm:$0xff]
    %v3624 = vld [vmem:[%s3 + $0x260] sm:$0xff]
    %v3625 = vld [vmem:[%s3 + $0x268] sm:$0xff]
    %v3626 = vld [vmem:[%s3 + $0x270] sm:$0xff]
    %v3627 = vld [vmem:[%s3 + $0x278] sm:$0xff]
    %v3628 = vld [vmem:[%s3 + $0x280] sm:$0xff]
    %v3629 = vld [vmem:[%s3 + $0x288] sm:$0xff]
    %v3630 = vld [vmem:[%s3 + $0x290] sm:$0xff]
    %v3631 = vld [vmem:[%s3 + $0x298] sm:$0xff]
    %v3632 = vld [vmem:[%s3 + $0x2a0] sm:$0xff]
    %v3633 = vld [vmem:[%s3 + $0x2a8] sm:$0xff]
    %v3634 = vld [vmem:[%s3 + $0x2b0] sm:$0xff]
    %v3635 = vld [vmem:[%s3 + $0x2b8] sm:$0xff]
    %v3636 = vld [vmem:[%s3 + $0x2c0] sm:$0xff]
    %v3637 = vld [vmem:[%s3 + $0x2c8] sm:$0xff]
    %v3638 = vld [vmem:[%s3 + $0x2d0] sm:$0xff]
    %v3639 = vld [vmem:[%s3 + $0x2d8] sm:$0xff]
    %v3640 = vld [vmem:[%s3 + $0x2e0] sm:$0xff]
    %v3641 = vld [vmem:[%s3 + $0x2e8] sm:$0xff]
    %v3642 = vld [vmem:[%s3 + $0x2f0] sm:$0xff]
    %v3643 = vld [vmem:[%s3 + $0x2f8] sm:$0xff]
    %v3644 = vld [vmem:[%s3 + $0x300] sm:$0xff]
    %v3645 = vld [vmem:[%s3 + $0x308] sm:$0xff]
    %v3646 = vld [vmem:[%s3 + $0x310] sm:$0xff]
    %v3647 = vld [vmem:[%s3 + $0x318] sm:$0xff]
    %v3648 = vld [vmem:[%s3 + $0x320] sm:$0xff]
    %v3649 = vld [vmem:[%s3 + $0x328] sm:$0xff]
    %v3650 = vld [vmem:[%s3 + $0x330] sm:$0xff]
    %v3651 = vld [vmem:[%s3 + $0x338] sm:$0xff]
    %v3652 = vld [vmem:[%s3 + $0x340] sm:$0xff]
    %v3653 = vld [vmem:[%s3 + $0x348] sm:$0xff]
    %v3654 = vld [vmem:[%s3 + $0x350] sm:$0xff]
    %v3655 = vld [vmem:[%s3 + $0x358] sm:$0xff]
    %v3656 = vld [vmem:[%s3 + $0x360] sm:$0xff]
    %v3657 = vld [vmem:[%s3 + $0x368] sm:$0xff]
    %v3658 = vld [vmem:[%s3 + $0x370] sm:$0xff]
    %v3659 = vld [vmem:[%s3 + $0x378] sm:$0xff]
    %v3660 = vld [vmem:[%s3 + $0x380] sm:$0xff]
    %v3661 = vld [vmem:[%s3 + $0x388] sm:$0xff]
    %v3662 = vld [vmem:[%s3 + $0x390] sm:$0xff]
    %v3663 = vld [vmem:[%s3 + $0x398] sm:$0xff]
    %v3664 = vld [vmem:[%s3 + $0x3a0] sm:$0xff]
    %v3665 = vld [vmem:[%s3 + $0x3a8] sm:$0xff]
    %v3666 = vld [vmem:[%s3 + $0x3b0] sm:$0xff]
    %v3667 = vld [vmem:[%s3 + $0x3b8] sm:$0xff]
    %v3668 = vld [vmem:[%s3 + $0x3c0] sm:$0xff]
    %v3669 = vld [vmem:[%s3 + $0x3c8] sm:$0xff]
    %v3670 = vld [vmem:[%s3 + $0x3d0] sm:$0xff]
    %v3671 = vld [vmem:[%s3 + $0x3d8] sm:$0xff]
    %v3672 = vld [vmem:[%s3 + $0x3e0] sm:$0xff]
    %v3673 = vld [vmem:[%s3 + $0x3e8] sm:$0xff]
    %v3674 = vld [vmem:[%s3 + $0x3f0] sm:$0xff]
    %v3675 = vld [vmem:[%s3 + $0x3f8] sm:$0xff]
    %v3676 = vld [vmem:[%s3 + $0x400] sm:$0xff]
    %v3677 = vld [vmem:[%s3 + $0x408] sm:$0xff]
    %v3678 = vld [vmem:[%s3 + $0x410] sm:$0xff]
    %v3679 = vld [vmem:[%s3 + $0x418] sm:$0xff]
    %v3680 = vld [vmem:[%s3 + $0x420] sm:$0xff]
    %v3681 = vld [vmem:[%s3 + $0x428] sm:$0xff]
    %v3682 = vld [vmem:[%s3 + $0x430] sm:$0xff]
    %v3683 = vld [vmem:[%s3 + $0x438] sm:$0xff]
    %v3684 = vld [vmem:[%s3 + $0x440] sm:$0xff]
    %v3685 = vld [vmem:[%s3 + $0x448] sm:$0xff]
    %v3686 = vld [vmem:[%s3 + $0x450] sm:$0xff]
    %v3687 = vld [vmem:[%s3 + $0x458] sm:$0xff]
    %v3688 = vld [vmem:[%s3 + $0x460] sm:$0xff]
    %v3689 = vld [vmem:[%s3 + $0x468] sm:$0xff]
    %v3690 = vld [vmem:[%s3 + $0x470] sm:$0xff]
    %v3691 = vld [vmem:[%s3 + $0x478] sm:$0xff]
    %v3692 = vld [vmem:[%s3 + $0x480] sm:$0xff]
    %v3693 = vld [vmem:[%s3 + $0x488] sm:$0xff]
    %v3694 = vld [vmem:[%s3 + $0x490] sm:$0xff]
    %v3695 = vld [vmem:[%s3 + $0x498] sm:$0xff]
    %v3696 = vld [vmem:[%s3 + $0x4a0] sm:$0xff]
    %v3697 = vld [vmem:[%s3 + $0x4a8] sm:$0xff]
    %v3698 = vld [vmem:[%s3 + $0x4b0] sm:$0xff]
    %v3699 = vld [vmem:[%s3 + $0x4b8] sm:$0xff]
    %v3700 = vld [vmem:[%s3 + $0x4c0] sm:$0xff]
    %v3701 = vld [vmem:[%s3 + $0x4c8] sm:$0xff]
    %v3702 = vld [vmem:[%s3 + $0x4d0] sm:$0xff]
    %v3703 = vld [vmem:[%s3 + $0x4d8] sm:$0xff]
    %v3704 = vld [vmem:[%s3 + $0x4e0] sm:$0xff]
    %v3705 = vld [vmem:[%s3 + $0x4e8] sm:$0xff]
    %v3706 = vld [vmem:[%s3 + $0x4f0] sm:$0xff]
    %v3707 = vld [vmem:[%s3 + $0x4f8] sm:$0xff]
    %v3708 = vld [vmem:[%s3 + $0x500] sm:$0xff]
    %v3709 = vld [vmem:[%s3 + $0x508] sm:$0xff]
    %v3710 = vld [vmem:[%s3 + $0x510] sm:$0xff]
    %v3711 = vld [vmem:[%s3 + $0x518] sm:$0xff]
    %v3712 = vld [vmem:[%s3 + $0x520] sm:$0xff]
    %v3713 = vld [vmem:[%s3 + $0x528] sm:$0xff]
    %v3714 = vld [vmem:[%s3 + $0x530] sm:$0xff]
    %v3715 = vld [vmem:[%s3 + $0x538] sm:$0xff]
    %v3716 = vld [vmem:[%s3 + $0x540] sm:$0xff]
    %v3717 = vld [vmem:[%s3 + $0x548] sm:$0xff]
    %v3718 = vld [vmem:[%s3 + $0x550] sm:$0xff]
    %v3719 = vld [vmem:[%s3 + $0x558] sm:$0xff]
    %v3720 = vld [vmem:[%s3 + $0x560] sm:$0xff]
    %v3721 = vld [vmem:[%s3 + $0x568] sm:$0xff]
    %v3722 = vld [vmem:[%s3 + $0x570] sm:$0xff]
    %v3723 = vld [vmem:[%s3 + $0x578] sm:$0xff]
    %v3724 = vld [vmem:[%s3 + $0x580] sm:$0xff]
    %v3725 = vld [vmem:[%s3 + $0x588] sm:$0xff]
    %v3726 = vld [vmem:[%s3 + $0x590] sm:$0xff]
    %v3727 = vld [vmem:[%s3 + $0x598] sm:$0xff]
    %v3728 = vld [vmem:[%s3 + $0x5a0] sm:$0xff]
    %v3729 = vld [vmem:[%s3 + $0x5a8] sm:$0xff]
    %v3730 = vld [vmem:[%s3 + $0x5b0] sm:$0xff]
    %v3731 = vld [vmem:[%s3 + $0x5b8] sm:$0xff]
    %v3732 = vld [vmem:[%s3 + $0x5c0] sm:$0xff]
    %v3733 = vld [vmem:[%s3 + $0x5c8] sm:$0xff]
    %v3734 = vld [vmem:[%s3 + $0x5d0] sm:$0xff]
    %v3735 = vld [vmem:[%s3 + $0x5d8] sm:$0xff]
    %v3736 = vld [vmem:[%s3 + $0x5e0] sm:$0xff]
    %v3737 = vld [vmem:[%s3 + $0x5e8] sm:$0xff]
    %v3738 = vld [vmem:[%s3 + $0x5f0] sm:$0xff]
    %v3739 = vld [vmem:[%s3 + $0x5f8] sm:$0xff]
    %v3740 = vld [vmem:[%s3 + $0x600] sm:$0xff]
    %v3741 = vld [vmem:[%s3 + $0x608] sm:$0xff]
    %v3742 = vld [vmem:[%s3 + $0x610] sm:$0xff]
    %v3743 = vld [vmem:[%s3 + $0x618] sm:$0xff]
    %v3744 = vld [vmem:[%s3 + $0x620] sm:$0xff]
    %v3745 = vld [vmem:[%s3 + $0x628] sm:$0xff]
    %v3746 = vld [vmem:[%s3 + $0x630] sm:$0xff]
    %v3747 = vld [vmem:[%s3 + $0x638] sm:$0xff]
    %v3748 = vld [vmem:[%s3 + $0x640] sm:$0xff]
    %v3749 = vld [vmem:[%s3 + $0x648] sm:$0xff]
    %v3750 = vld [vmem:[%s3 + $0x650] sm:$0xff]
    %v3751 = vld [vmem:[%s3 + $0x658] sm:$0xff]
    %v3752 = vld [vmem:[%s3 + $0x660] sm:$0xff]
    %v3753 = vld [vmem:[%s3 + $0x668] sm:$0xff]
    %v3754 = vld [vmem:[%s3 + $0x670] sm:$0xff]
    %v3755 = vld [vmem:[%s3 + $0x678] sm:$0xff]
    %v3756 = vld [vmem:[%s3 + $0x680] sm:$0xff]
    %v3757 = vld [vmem:[%s3 + $0x688] sm:$0xff]
    %v3758 = vld [vmem:[%s3 + $0x690] sm:$0xff]
    %v3759 = vld [vmem:[%s3 + $0x698] sm:$0xff]
    %v3760 = vld [vmem:[%s3 + $0x6a0] sm:$0xff]
    %v3761 = vld [vmem:[%s3 + $0x6a8] sm:$0xff]
    %v3762 = vld [vmem:[%s3 + $0x6b0] sm:$0xff]
    %v3763 = vld [vmem:[%s3 + $0x6b8] sm:$0xff]
    %v3764 = vld [vmem:[%s3 + $0x6c0] sm:$0xff]
    %v3765 = vld [vmem:[%s3 + $0x6c8] sm:$0xff]
    %v3766 = vld [vmem:[%s3 + $0x6d0] sm:$0xff]
    %v3767 = vld [vmem:[%s3 + $0x6d8] sm:$0xff]
    %v3768 = vld [vmem:[%s3 + $0x6e0] sm:$0xff]
    %v3769 = vld [vmem:[%s3 + $0x6e8] sm:$0xff]
    %v3770 = vld [vmem:[%s3 + $0x6f0] sm:$0xff]
    %v3771 = vld [vmem:[%s3 + $0x6f8] sm:$0xff]
    %v3772 = vld [vmem:[%s3 + $0x700] sm:$0xff]
    %v3773 = vld [vmem:[%s3 + $0x708] sm:$0xff]
    %v3774 = vld [vmem:[%s3 + $0x710] sm:$0xff]
    %v3775 = vld [vmem:[%s3 + $0x718] sm:$0xff]
    %v3776 = vld [vmem:[%s3 + $0x720] sm:$0xff]
    %v3777 = vld [vmem:[%s3 + $0x728] sm:$0xff]
    %v3778 = vld [vmem:[%s3 + $0x730] sm:$0xff]
    %v3779 = vld [vmem:[%s3 + $0x738] sm:$0xff]
    %v3780 = vld [vmem:[%s3 + $0x740] sm:$0xff]
    %v3781 = vld [vmem:[%s3 + $0x748] sm:$0xff]
    %v3782 = vld [vmem:[%s3 + $0x750] sm:$0xff]
    %v3783 = vld [vmem:[%s3 + $0x758] sm:$0xff]
    %v3784 = vld [vmem:[%s3 + $0x760] sm:$0xff]
    %v3785 = vld [vmem:[%s3 + $0x768] sm:$0xff]
    %v3786 = vld [vmem:[%s3 + $0x770] sm:$0xff]
    %v3787 = vld [vmem:[%s3 + $0x778] sm:$0xff]
    %v3788 = vld [vmem:[%s3 + $0x780] sm:$0xff]
    %v3789 = vld [vmem:[%s3 + $0x788] sm:$0xff]
    %v3790 = vld [vmem:[%s3 + $0x790] sm:$0xff]
    %v3791 = vld [vmem:[%s3 + $0x798] sm:$0xff]
    %v3792 = vld [vmem:[%s3 + $0x7a0] sm:$0xff]
    %v3793 = vld [vmem:[%s3 + $0x7a8] sm:$0xff]
    %v3794 = vld [vmem:[%s3 + $0x7b0] sm:$0xff]
    %v3795 = vld [vmem:[%s3 + $0x7b8] sm:$0xff]
    %v3796 = vld [vmem:[%s3 + $0x7c0] sm:$0xff]
    %v3797 = vld [vmem:[%s3 + $0x7c8] sm:$0xff]
    %v3798 = vld [vmem:[%s3 + $0x7d0] sm:$0xff]
    %v3799 = vld [vmem:[%s3 + $0x7d8] sm:$0xff]
    %v3800 = vld [vmem:[%s3 + $0x7e0] sm:$0xff]
    %v3801 = vld [vmem:[%s3 + $0x7e8] sm:$0xff]
    %v3802 = vld [vmem:[%s3 + $0x7f0] sm:$0xff]
    %v3803 = vld [vmem:[%s3 + $0x7f8] sm:$0xff]
    %v3804 = vld [vmem:[%s4] sm:$0xf]
    %v3806 = vperm.slane %v3804, 0
    %v3807 = vperm.slane %v3804, 1
    %v3808 = vperm.slane %v3804, 2
    %v3809 = vperm.slane %v3804, 3
    %v4070 = vunpack.c.l.b16 %v3548
    %v4071 = vunpack.c.h.b16 %v3548
    %v4072 = vunpack.c.l.b16 %v3549
    %v4073 = vunpack.c.h.b16 %v3549
    %v4074 = vunpack.c.l.b16 %v3550
    %v4075 = vunpack.c.h.b16 %v3550
    %v4076 = vunpack.c.l.b16 %v3551
    %v4077 = vunpack.c.h.b16 %v3551
    %v4078 = vunpack.c.l.b16 %v3552
    %v4079 = vunpack.c.h.b16 %v3552
    %v4080 = vunpack.c.l.b16 %v3553
    %v4081 = vunpack.c.h.b16 %v3553
    %v4082 = vunpack.c.l.b16 %v3554
    %v4083 = vunpack.c.h.b16 %v3554
    %v4084 = vunpack.c.l.b16 %v3555
    %v4085 = vunpack.c.h.b16 %v3555
    %v4086 = vunpack.c.l.b16 %v3556
    %v4087 = vunpack.c.h.b16 %v3556
    %v4088 = vunpack.c.l.b16 %v3557
    %v4089 = vunpack.c.h.b16 %v3557
    %v4090 = vunpack.c.l.b16 %v3558
    %v4091 = vunpack.c.h.b16 %v3558
    %v4092 = vunpack.c.l.b16 %v3559
    %v4093 = vunpack.c.h.b16 %v3559
    %v4094 = vunpack.c.l.b16 %v3560
    %v4095 = vunpack.c.h.b16 %v3560
    %v4096 = vunpack.c.l.b16 %v3561
    %v4097 = vunpack.c.h.b16 %v3561
    %v4098 = vunpack.c.l.b16 %v3562
    %v4099 = vunpack.c.h.b16 %v3562
    %v4100 = vunpack.c.l.b16 %v3563
    %v4101 = vunpack.c.h.b16 %v3563
    %v4102 = vunpack.c.l.b16 %v3564
    %v4103 = vunpack.c.h.b16 %v3564
    %v4104 = vunpack.c.l.b16 %v3565
    %v4105 = vunpack.c.h.b16 %v3565
    %v4106 = vunpack.c.l.b16 %v3566
    %v4107 = vunpack.c.h.b16 %v3566
    %v4108 = vunpack.c.l.b16 %v3567
    %v4109 = vunpack.c.h.b16 %v3567
    %v4110 = vunpack.c.l.b16 %v3568
    %v4111 = vunpack.c.h.b16 %v3568
    %v4112 = vunpack.c.l.b16 %v3569
    %v4113 = vunpack.c.h.b16 %v3569
    %v4114 = vunpack.c.l.b16 %v3570
    %v4115 = vunpack.c.h.b16 %v3570
    %v4116 = vunpack.c.l.b16 %v3571
    %v4117 = vunpack.c.h.b16 %v3571
    %v4118 = vunpack.c.l.b16 %v3572
    %v4119 = vunpack.c.h.b16 %v3572
    %v4120 = vunpack.c.l.b16 %v3573
    %v4121 = vunpack.c.h.b16 %v3573
    %v4122 = vunpack.c.l.b16 %v3574
    %v4123 = vunpack.c.h.b16 %v3574
    %v4124 = vunpack.c.l.b16 %v3575
    %v4125 = vunpack.c.h.b16 %v3575
    %v4126 = vunpack.c.l.b16 %v3576
    %v4127 = vunpack.c.h.b16 %v3576
    %v4128 = vunpack.c.l.b16 %v3577
    %v4129 = vunpack.c.h.b16 %v3577
    %v4130 = vunpack.c.l.b16 %v3578
    %v4131 = vunpack.c.h.b16 %v3578
    %v4132 = vunpack.c.l.b16 %v3579
    %v4133 = vunpack.c.h.b16 %v3579
    %v4134 = vunpack.c.l.b16 %v3580
    %v4135 = vunpack.c.h.b16 %v3580
    %v4136 = vunpack.c.l.b16 %v3581
    %v4137 = vunpack.c.h.b16 %v3581
    %v4138 = vunpack.c.l.b16 %v3582
    %v4139 = vunpack.c.h.b16 %v3582
    %v4140 = vunpack.c.l.b16 %v3583
    %v4141 = vunpack.c.h.b16 %v3583
    %v4142 = vunpack.c.l.b16 %v3584
    %v4143 = vunpack.c.h.b16 %v3584
    %v4144 = vunpack.c.l.b16 %v3585
    %v4145 = vunpack.c.h.b16 %v3585
    %v4146 = vunpack.c.l.b16 %v3586
    %v4147 = vunpack.c.h.b16 %v3586
    %v4148 = vunpack.c.l.b16 %v3587
    %v4149 = vunpack.c.h.b16 %v3587
    %v4150 = vunpack.c.l.b16 %v3588
    %v4151 = vunpack.c.h.b16 %v3588
    %v4152 = vunpack.c.l.b16 %v3589
    %v4153 = vunpack.c.h.b16 %v3589
    %v4154 = vunpack.c.l.b16 %v3590
    %v4155 = vunpack.c.h.b16 %v3590
    %v4156 = vunpack.c.l.b16 %v3591
    %v4157 = vunpack.c.h.b16 %v3591
    %v4158 = vunpack.c.l.b16 %v3592
    %v4159 = vunpack.c.h.b16 %v3592
    %v4160 = vunpack.c.l.b16 %v3593
    %v4161 = vunpack.c.h.b16 %v3593
    %v4162 = vunpack.c.l.b16 %v3594
    %v4163 = vunpack.c.h.b16 %v3594
    %v4164 = vunpack.c.l.b16 %v3595
    %v4165 = vunpack.c.h.b16 %v3595
    %v4166 = vunpack.c.l.b16 %v3596
    %v4167 = vunpack.c.h.b16 %v3596
    %v4168 = vunpack.c.l.b16 %v3597
    %v4169 = vunpack.c.h.b16 %v3597
    %v4170 = vunpack.c.l.b16 %v3598
    %v4171 = vunpack.c.h.b16 %v3598
    %v4172 = vunpack.c.l.b16 %v3599
    %v4173 = vunpack.c.h.b16 %v3599
    %v4174 = vunpack.c.l.b16 %v3600
    %v4175 = vunpack.c.h.b16 %v3600
    %v4176 = vunpack.c.l.b16 %v3601
    %v4177 = vunpack.c.h.b16 %v3601
    %v4178 = vunpack.c.l.b16 %v3602
    %v4179 = vunpack.c.h.b16 %v3602
    %v4180 = vunpack.c.l.b16 %v3603
    %v4181 = vunpack.c.h.b16 %v3603
    %v4182 = vunpack.c.l.b16 %v3604
    %v4183 = vunpack.c.h.b16 %v3604
    %v4184 = vunpack.c.l.b16 %v3605
    %v4185 = vunpack.c.h.b16 %v3605
    %v4186 = vunpack.c.l.b16 %v3606
    %v4187 = vunpack.c.h.b16 %v3606
    %v4188 = vunpack.c.l.b16 %v3607
    %v4189 = vunpack.c.h.b16 %v3607
    %v4190 = vunpack.c.l.b16 %v3608
    %v4191 = vunpack.c.h.b16 %v3608
    %v4192 = vunpack.c.l.b16 %v3609
    %v4193 = vunpack.c.h.b16 %v3609
    %v4194 = vunpack.c.l.b16 %v3610
    %v4195 = vunpack.c.h.b16 %v3610
    %v4196 = vunpack.c.l.b16 %v3611
    %v4197 = vunpack.c.h.b16 %v3611
    %v4198 = vunpack.c.l.b16 %v3612
    %v4199 = vunpack.c.h.b16 %v3612
    %v4200 = vunpack.c.l.b16 %v3613
    %v4201 = vunpack.c.h.b16 %v3613
    %v4202 = vunpack.c.l.b16 %v3614
    %v4203 = vunpack.c.h.b16 %v3614
    %v4204 = vunpack.c.l.b16 %v3615
    %v4205 = vunpack.c.h.b16 %v3615
    %v4206 = vunpack.c.l.b16 %v3616
    %v4207 = vunpack.c.h.b16 %v3616
    %v4208 = vunpack.c.l.b16 %v3617
    %v4209 = vunpack.c.h.b16 %v3617
    %v4210 = vunpack.c.l.b16 %v3618
    %v4211 = vunpack.c.h.b16 %v3618
    %v4212 = vunpack.c.l.b16 %v3619
    %v4213 = vunpack.c.h.b16 %v3619
    %v4214 = vunpack.c.l.b16 %v3620
    %v4215 = vunpack.c.h.b16 %v3620
    %v4216 = vunpack.c.l.b16 %v3621
    %v4217 = vunpack.c.h.b16 %v3621
    %v4218 = vunpack.c.l.b16 %v3622
    %v4219 = vunpack.c.h.b16 %v3622
    %v4220 = vunpack.c.l.b16 %v3623
    %v4221 = vunpack.c.h.b16 %v3623
    %v4222 = vunpack.c.l.b16 %v3624
    %v4223 = vunpack.c.h.b16 %v3624
    %v4224 = vunpack.c.l.b16 %v3625
    %v4225 = vunpack.c.h.b16 %v3625
    %v4226 = vunpack.c.l.b16 %v3626
    %v4227 = vunpack.c.h.b16 %v3626
    %v4228 = vunpack.c.l.b16 %v3627
    %v4229 = vunpack.c.h.b16 %v3627
    %v4230 = vunpack.c.l.b16 %v3628
    %v4231 = vunpack.c.h.b16 %v3628
    %v4232 = vunpack.c.l.b16 %v3629
    %v4233 = vunpack.c.h.b16 %v3629
    %v4234 = vunpack.c.l.b16 %v3630
    %v4235 = vunpack.c.h.b16 %v3630
    %v4236 = vunpack.c.l.b16 %v3631
    %v4237 = vunpack.c.h.b16 %v3631
    %v4238 = vunpack.c.l.b16 %v3632
    %v4239 = vunpack.c.h.b16 %v3632
    %v4240 = vunpack.c.l.b16 %v3633
    %v4241 = vunpack.c.h.b16 %v3633
    %v4242 = vunpack.c.l.b16 %v3634
    %v4243 = vunpack.c.h.b16 %v3634
    %v4244 = vunpack.c.l.b16 %v3635
    %v4245 = vunpack.c.h.b16 %v3635
    %v4246 = vunpack.c.l.b16 %v3636
    %v4247 = vunpack.c.h.b16 %v3636
    %v4248 = vunpack.c.l.b16 %v3637
    %v4249 = vunpack.c.h.b16 %v3637
    %v4250 = vunpack.c.l.b16 %v3638
    %v4251 = vunpack.c.h.b16 %v3638
    %v4252 = vunpack.c.l.b16 %v3639
    %v4253 = vunpack.c.h.b16 %v3639
    %v4254 = vunpack.c.l.b16 %v3640
    %v4255 = vunpack.c.h.b16 %v3640
    %v4256 = vunpack.c.l.b16 %v3641
    %v4257 = vunpack.c.h.b16 %v3641
    %v4258 = vunpack.c.l.b16 %v3642
    %v4259 = vunpack.c.h.b16 %v3642
    %v4260 = vunpack.c.l.b16 %v3643
    %v4261 = vunpack.c.h.b16 %v3643
    %v4262 = vunpack.c.l.b16 %v3644
    %v4263 = vunpack.c.h.b16 %v3644
    %v4264 = vunpack.c.l.b16 %v3645
    %v4265 = vunpack.c.h.b16 %v3645
    %v4266 = vunpack.c.l.b16 %v3646
    %v4267 = vunpack.c.h.b16 %v3646
    %v4268 = vunpack.c.l.b16 %v3647
    %v4269 = vunpack.c.h.b16 %v3647
    %v4270 = vunpack.c.l.b16 %v3648
    %v4271 = vunpack.c.h.b16 %v3648
    %v4272 = vunpack.c.l.b16 %v3649
    %v4273 = vunpack.c.h.b16 %v3649
    %v4274 = vunpack.c.l.b16 %v3650
    %v4275 = vunpack.c.h.b16 %v3650
    %v4276 = vunpack.c.l.b16 %v3651
    %v4277 = vunpack.c.h.b16 %v3651
    %v4278 = vunpack.c.l.b16 %v3652
    %v4279 = vunpack.c.h.b16 %v3652
    %v4280 = vunpack.c.l.b16 %v3653
    %v4281 = vunpack.c.h.b16 %v3653
    %v4282 = vunpack.c.l.b16 %v3654
    %v4283 = vunpack.c.h.b16 %v3654
    %v4284 = vunpack.c.l.b16 %v3655
    %v4285 = vunpack.c.h.b16 %v3655
    %v4286 = vunpack.c.l.b16 %v3656
    %v4287 = vunpack.c.h.b16 %v3656
    %v4288 = vunpack.c.l.b16 %v3657
    %v4289 = vunpack.c.h.b16 %v3657
    %v4290 = vunpack.c.l.b16 %v3658
    %v4291 = vunpack.c.h.b16 %v3658
    %v4292 = vunpack.c.l.b16 %v3659
    %v4293 = vunpack.c.h.b16 %v3659
    %v4294 = vunpack.c.l.b16 %v3660
    %v4295 = vunpack.c.h.b16 %v3660
    %v4296 = vunpack.c.l.b16 %v3661
    %v4297 = vunpack.c.h.b16 %v3661
    %v4298 = vunpack.c.l.b16 %v3662
    %v4299 = vunpack.c.h.b16 %v3662
    %v4300 = vunpack.c.l.b16 %v3663
    %v4301 = vunpack.c.h.b16 %v3663
    %v4302 = vunpack.c.l.b16 %v3664
    %v4303 = vunpack.c.h.b16 %v3664
    %v4304 = vunpack.c.l.b16 %v3665
    %v4305 = vunpack.c.h.b16 %v3665
    %v4306 = vunpack.c.l.b16 %v3666
    %v4307 = vunpack.c.h.b16 %v3666
    %v4308 = vunpack.c.l.b16 %v3667
    %v4309 = vunpack.c.h.b16 %v3667
    %v4310 = vunpack.c.l.b16 %v3668
    %v4311 = vunpack.c.h.b16 %v3668
    %v4312 = vunpack.c.l.b16 %v3669
    %v4313 = vunpack.c.h.b16 %v3669
    %v4314 = vunpack.c.l.b16 %v3670
    %v4315 = vunpack.c.h.b16 %v3670
    %v4316 = vunpack.c.l.b16 %v3671
    %v4317 = vunpack.c.h.b16 %v3671
    %v4318 = vunpack.c.l.b16 %v3672
    %v4319 = vunpack.c.h.b16 %v3672
    %v4320 = vunpack.c.l.b16 %v3673
    %v4321 = vunpack.c.h.b16 %v3673
    %v4322 = vunpack.c.l.b16 %v3674
    %v4323 = vunpack.c.h.b16 %v3674
    %v4324 = vunpack.c.l.b16 %v3675
    %v4325 = vunpack.c.h.b16 %v3675
    %v4326 = vunpack.c.l.b16 %v3676
    %v4327 = vunpack.c.h.b16 %v3676
    %v4328 = vunpack.c.l.b16 %v3677
    %v4329 = vunpack.c.h.b16 %v3677
    %v4330 = vunpack.c.l.b16 %v3678
    %v4331 = vunpack.c.h.b16 %v3678
    %v4332 = vunpack.c.l.b16 %v3679
    %v4333 = vunpack.c.h.b16 %v3679
    %v4334 = vunpack.c.l.b16 %v3680
    %v4335 = vunpack.c.h.b16 %v3680
    %v4336 = vunpack.c.l.b16 %v3681
    %v4337 = vunpack.c.h.b16 %v3681
    %v4338 = vunpack.c.l.b16 %v3682
    %v4339 = vunpack.c.h.b16 %v3682
    %v4340 = vunpack.c.l.b16 %v3683
    %v4341 = vunpack.c.h.b16 %v3683
    %v4342 = vunpack.c.l.b16 %v3684
    %v4343 = vunpack.c.h.b16 %v3684
    %v4344 = vunpack.c.l.b16 %v3685
    %v4345 = vunpack.c.h.b16 %v3685
    %v4346 = vunpack.c.l.b16 %v3686
    %v4347 = vunpack.c.h.b16 %v3686
    %v4348 = vunpack.c.l.b16 %v3687
    %v4349 = vunpack.c.h.b16 %v3687
    %v4350 = vunpack.c.l.b16 %v3688
    %v4351 = vunpack.c.h.b16 %v3688
    %v4352 = vunpack.c.l.b16 %v3689
    %v4353 = vunpack.c.h.b16 %v3689
    %v4354 = vunpack.c.l.b16 %v3690
    %v4355 = vunpack.c.h.b16 %v3690
    %v4356 = vunpack.c.l.b16 %v3691
    %v4357 = vunpack.c.h.b16 %v3691
    %v4358 = vunpack.c.l.b16 %v3692
    %v4359 = vunpack.c.h.b16 %v3692
    %v4360 = vunpack.c.l.b16 %v3693
    %v4361 = vunpack.c.h.b16 %v3693
    %v4362 = vunpack.c.l.b16 %v3694
    %v4363 = vunpack.c.h.b16 %v3694
    %v4364 = vunpack.c.l.b16 %v3695
    %v4365 = vunpack.c.h.b16 %v3695
    %v4366 = vunpack.c.l.b16 %v3696
    %v4367 = vunpack.c.h.b16 %v3696
    %v4368 = vunpack.c.l.b16 %v3697
    %v4369 = vunpack.c.h.b16 %v3697
    %v4370 = vunpack.c.l.b16 %v3698
    %v4371 = vunpack.c.h.b16 %v3698
    %v4372 = vunpack.c.l.b16 %v3699
    %v4373 = vunpack.c.h.b16 %v3699
    %v4374 = vunpack.c.l.b16 %v3700
    %v4375 = vunpack.c.h.b16 %v3700
    %v4376 = vunpack.c.l.b16 %v3701
    %v4377 = vunpack.c.h.b16 %v3701
    %v4378 = vunpack.c.l.b16 %v3702
    %v4379 = vunpack.c.h.b16 %v3702
    %v4380 = vunpack.c.l.b16 %v3703
    %v4381 = vunpack.c.h.b16 %v3703
    %v4382 = vunpack.c.l.b16 %v3704
    %v4383 = vunpack.c.h.b16 %v3704
    %v4384 = vunpack.c.l.b16 %v3705
    %v4385 = vunpack.c.h.b16 %v3705
    %v4386 = vunpack.c.l.b16 %v3706
    %v4387 = vunpack.c.h.b16 %v3706
    %v4388 = vunpack.c.l.b16 %v3707
    %v4389 = vunpack.c.h.b16 %v3707
    %v4390 = vunpack.c.l.b16 %v3708
    %v4391 = vunpack.c.h.b16 %v3708
    %v4392 = vunpack.c.l.b16 %v3709
    %v4393 = vunpack.c.h.b16 %v3709
    %v4394 = vunpack.c.l.b16 %v3710
    %v4395 = vunpack.c.h.b16 %v3710
    %v4396 = vunpack.c.l.b16 %v3711
    %v4397 = vunpack.c.h.b16 %v3711
    %v4398 = vunpack.c.l.b16 %v3712
    %v4399 = vunpack.c.h.b16 %v3712
    %v4400 = vunpack.c.l.b16 %v3713
    %v4401 = vunpack.c.h.b16 %v3713
    %v4402 = vunpack.c.l.b16 %v3714
    %v4403 = vunpack.c.h.b16 %v3714
    %v4404 = vunpack.c.l.b16 %v3715
    %v4405 = vunpack.c.h.b16 %v3715
    %v4406 = vunpack.c.l.b16 %v3716
    %v4407 = vunpack.c.h.b16 %v3716
    %v4408 = vunpack.c.l.b16 %v3717
    %v4409 = vunpack.c.h.b16 %v3717
    %v4410 = vunpack.c.l.b16 %v3718
    %v4411 = vunpack.c.h.b16 %v3718
    %v4412 = vunpack.c.l.b16 %v3719
    %v4413 = vunpack.c.h.b16 %v3719
    %v4414 = vunpack.c.l.b16 %v3720
    %v4415 = vunpack.c.h.b16 %v3720
    %v4416 = vunpack.c.l.b16 %v3721
    %v4417 = vunpack.c.h.b16 %v3721
    %v4418 = vunpack.c.l.b16 %v3722
    %v4419 = vunpack.c.h.b16 %v3722
    %v4420 = vunpack.c.l.b16 %v3723
    %v4421 = vunpack.c.h.b16 %v3723
    %v4422 = vunpack.c.l.b16 %v3724
    %v4423 = vunpack.c.h.b16 %v3724
    %v4424 = vunpack.c.l.b16 %v3725
    %v4425 = vunpack.c.h.b16 %v3725
    %v4426 = vunpack.c.l.b16 %v3726
    %v4427 = vunpack.c.h.b16 %v3726
    %v4428 = vunpack.c.l.b16 %v3727
    %v4429 = vunpack.c.h.b16 %v3727
    %v4430 = vunpack.c.l.b16 %v3728
    %v4431 = vunpack.c.h.b16 %v3728
    %v4432 = vunpack.c.l.b16 %v3729
    %v4433 = vunpack.c.h.b16 %v3729
    %v4434 = vunpack.c.l.b16 %v3730
    %v4435 = vunpack.c.h.b16 %v3730
    %v4436 = vunpack.c.l.b16 %v3731
    %v4437 = vunpack.c.h.b16 %v3731
    %v4438 = vunpack.c.l.b16 %v3732
    %v4439 = vunpack.c.h.b16 %v3732
    %v4440 = vunpack.c.l.b16 %v3733
    %v4441 = vunpack.c.h.b16 %v3733
    %v4442 = vunpack.c.l.b16 %v3734
    %v4443 = vunpack.c.h.b16 %v3734
    %v4444 = vunpack.c.l.b16 %v3735
    %v4445 = vunpack.c.h.b16 %v3735
    %v4446 = vunpack.c.l.b16 %v3736
    %v4447 = vunpack.c.h.b16 %v3736
    %v4448 = vunpack.c.l.b16 %v3737
    %v4449 = vunpack.c.h.b16 %v3737
    %v4450 = vunpack.c.l.b16 %v3738
    %v4451 = vunpack.c.h.b16 %v3738
    %v4452 = vunpack.c.l.b16 %v3739
    %v4453 = vunpack.c.h.b16 %v3739
    %v4454 = vunpack.c.l.b16 %v3740
    %v4455 = vunpack.c.h.b16 %v3740
    %v4456 = vunpack.c.l.b16 %v3741
    %v4457 = vunpack.c.h.b16 %v3741
    %v4458 = vunpack.c.l.b16 %v3742
    %v4459 = vunpack.c.h.b16 %v3742
    %v4460 = vunpack.c.l.b16 %v3743
    %v4461 = vunpack.c.h.b16 %v3743
    %v4462 = vunpack.c.l.b16 %v3744
    %v4463 = vunpack.c.h.b16 %v3744
    %v4464 = vunpack.c.l.b16 %v3745
    %v4465 = vunpack.c.h.b16 %v3745
    %v4466 = vunpack.c.l.b16 %v3746
    %v4467 = vunpack.c.h.b16 %v3746
    %v4468 = vunpack.c.l.b16 %v3747
    %v4469 = vunpack.c.h.b16 %v3747
    %v4470 = vunpack.c.l.b16 %v3748
    %v4471 = vunpack.c.h.b16 %v3748
    %v4472 = vunpack.c.l.b16 %v3749
    %v4473 = vunpack.c.h.b16 %v3749
    %v4474 = vunpack.c.l.b16 %v3750
    %v4475 = vunpack.c.h.b16 %v3750
    %v4476 = vunpack.c.l.b16 %v3751
    %v4477 = vunpack.c.h.b16 %v3751
    %v4478 = vunpack.c.l.b16 %v3752
    %v4479 = vunpack.c.h.b16 %v3752
    %v4480 = vunpack.c.l.b16 %v3753
    %v4481 = vunpack.c.h.b16 %v3753
    %v4482 = vunpack.c.l.b16 %v3754
    %v4483 = vunpack.c.h.b16 %v3754
    %v4484 = vunpack.c.l.b16 %v3755
    %v4485 = vunpack.c.h.b16 %v3755
    %v4486 = vunpack.c.l.b16 %v3756
    %v4487 = vunpack.c.h.b16 %v3756
    %v4488 = vunpack.c.l.b16 %v3757
    %v4489 = vunpack.c.h.b16 %v3757
    %v4490 = vunpack.c.l.b16 %v3758
    %v4491 = vunpack.c.h.b16 %v3758
    %v4492 = vunpack.c.l.b16 %v3759
    %v4493 = vunpack.c.h.b16 %v3759
    %v4494 = vunpack.c.l.b16 %v3760
    %v4495 = vunpack.c.h.b16 %v3760
    %v4496 = vunpack.c.l.b16 %v3761
    %v4497 = vunpack.c.h.b16 %v3761
    %v4498 = vunpack.c.l.b16 %v3762
    %v4499 = vunpack.c.h.b16 %v3762
    %v4500 = vunpack.c.l.b16 %v3763
    %v4501 = vunpack.c.h.b16 %v3763
    %v4502 = vunpack.c.l.b16 %v3764
    %v4503 = vunpack.c.h.b16 %v3764
    %v4504 = vunpack.c.l.b16 %v3765
    %v4505 = vunpack.c.h.b16 %v3765
    %v4506 = vunpack.c.l.b16 %v3766
    %v4507 = vunpack.c.h.b16 %v3766
    %v4508 = vunpack.c.l.b16 %v3767
    %v4509 = vunpack.c.h.b16 %v3767
    %v4510 = vunpack.c.l.b16 %v3768
    %v4511 = vunpack.c.h.b16 %v3768
    %v4512 = vunpack.c.l.b16 %v3769
    %v4513 = vunpack.c.h.b16 %v3769
    %v4514 = vunpack.c.l.b16 %v3770
    %v4515 = vunpack.c.h.b16 %v3770
    %v4516 = vunpack.c.l.b16 %v3771
    %v4517 = vunpack.c.h.b16 %v3771
    %v4518 = vunpack.c.l.b16 %v3772
    %v4519 = vunpack.c.h.b16 %v3772
    %v4520 = vunpack.c.l.b16 %v3773
    %v4521 = vunpack.c.h.b16 %v3773
    %v4522 = vunpack.c.l.b16 %v3774
    %v4523 = vunpack.c.h.b16 %v3774
    %v4524 = vunpack.c.l.b16 %v3775
    %v4525 = vunpack.c.h.b16 %v3775
    %v4526 = vunpack.c.l.b16 %v3776
    %v4527 = vunpack.c.h.b16 %v3776
    %v4528 = vunpack.c.l.b16 %v3777
    %v4529 = vunpack.c.h.b16 %v3777
    %v4530 = vunpack.c.l.b16 %v3778
    %v4531 = vunpack.c.h.b16 %v3778
    %v4532 = vunpack.c.l.b16 %v3779
    %v4533 = vunpack.c.h.b16 %v3779
    %v4534 = vunpack.c.l.b16 %v3780
    %v4535 = vunpack.c.h.b16 %v3780
    %v4536 = vunpack.c.l.b16 %v3781
    %v4537 = vunpack.c.h.b16 %v3781
    %v4538 = vunpack.c.l.b16 %v3782
    %v4539 = vunpack.c.h.b16 %v3782
    %v4540 = vunpack.c.l.b16 %v3783
    %v4541 = vunpack.c.h.b16 %v3783
    %v4542 = vunpack.c.l.b16 %v3784
    %v4543 = vunpack.c.h.b16 %v3784
    %v4544 = vunpack.c.l.b16 %v3785
    %v4545 = vunpack.c.h.b16 %v3785
    %v4546 = vunpack.c.l.b16 %v3786
    %v4547 = vunpack.c.h.b16 %v3786
    %v4548 = vunpack.c.l.b16 %v3787
    %v4549 = vunpack.c.h.b16 %v3787
    %v4550 = vunpack.c.l.b16 %v3788
    %v4551 = vunpack.c.h.b16 %v3788
    %v4552 = vunpack.c.l.b16 %v3789
    %v4553 = vunpack.c.h.b16 %v3789
    %v4554 = vunpack.c.l.b16 %v3790
    %v4555 = vunpack.c.h.b16 %v3790
    %v4556 = vunpack.c.l.b16 %v3791
    %v4557 = vunpack.c.h.b16 %v3791
    %v4558 = vunpack.c.l.b16 %v3792
    %v4559 = vunpack.c.h.b16 %v3792
    %v4560 = vunpack.c.l.b16 %v3793
    %v4561 = vunpack.c.h.b16 %v3793
    %v4562 = vunpack.c.l.b16 %v3794
    %v4563 = vunpack.c.h.b16 %v3794
    %v4564 = vunpack.c.l.b16 %v3795
    %v4565 = vunpack.c.h.b16 %v3795
    %v4566 = vunpack.c.l.b16 %v3796
    %v4567 = vunpack.c.h.b16 %v3796
    %v4568 = vunpack.c.l.b16 %v3797
    %v4569 = vunpack.c.h.b16 %v3797
    %v4570 = vunpack.c.l.b16 %v3798
    %v4571 = vunpack.c.h.b16 %v3798
    %v4572 = vunpack.c.l.b16 %v3799
    %v4573 = vunpack.c.h.b16 %v3799
    %v4574 = vunpack.c.l.b16 %v3800
    %v4575 = vunpack.c.h.b16 %v3800
    %v4576 = vunpack.c.l.b16 %v3801
    %v4577 = vunpack.c.h.b16 %v3801
    %v4578 = vunpack.c.l.b16 %v3802
    %v4579 = vunpack.c.h.b16 %v3802
    %v4580 = vunpack.c.l.b16 %v3803
    %v4581 = vunpack.c.h.b16 %v3803
    %v4582 = vpack.c.b16 %v4074, %v4070
    %v4583 = vpack.c.b16 %v4075, %v4071
    %v4584 = vpack.c.b16 %v4076, %v4072
    %v4585 = vpack.c.b16 %v4077, %v4073
    %v4586 = vpack.c.b16 %v4082, %v4078
    %v4587 = vpack.c.b16 %v4083, %v4079
    %v4588 = vpack.c.b16 %v4084, %v4080
    %v4589 = vpack.c.b16 %v4085, %v4081
    %v4590 = vpack.c.b16 %v4090, %v4086
    %v4591 = vpack.c.b16 %v4091, %v4087
    %v4592 = vpack.c.b16 %v4092, %v4088
    %v4593 = vpack.c.b16 %v4093, %v4089
    %v4594 = vpack.c.b16 %v4098, %v4094
    %v4595 = vpack.c.b16 %v4099, %v4095
    %v4596 = vpack.c.b16 %v4100, %v4096
    %v4597 = vpack.c.b16 %v4101, %v4097
    %v4598 = vpack.c.b16 %v4106, %v4102
    %v4599 = vpack.c.b16 %v4107, %v4103
    %v4600 = vpack.c.b16 %v4108, %v4104
    %v4601 = vpack.c.b16 %v4109, %v4105
    %v4602 = vpack.c.b16 %v4114, %v4110
    %v4603 = vpack.c.b16 %v4115, %v4111
    %v4604 = vpack.c.b16 %v4116, %v4112
    %v4605 = vpack.c.b16 %v4117, %v4113
    %v4606 = vpack.c.b16 %v4122, %v4118
    %v4607 = vpack.c.b16 %v4123, %v4119
    %v4608 = vpack.c.b16 %v4124, %v4120
    %v4609 = vpack.c.b16 %v4125, %v4121
    %v4610 = vpack.c.b16 %v4130, %v4126
    %v4611 = vpack.c.b16 %v4131, %v4127
    %v4612 = vpack.c.b16 %v4132, %v4128
    %v4613 = vpack.c.b16 %v4133, %v4129
    %v4614 = vpack.c.b16 %v4138, %v4134
    %v4615 = vpack.c.b16 %v4139, %v4135
    %v4616 = vpack.c.b16 %v4140, %v4136
    %v4617 = vpack.c.b16 %v4141, %v4137
    %v4618 = vpack.c.b16 %v4146, %v4142
    %v4619 = vpack.c.b16 %v4147, %v4143
    %v4620 = vpack.c.b16 %v4148, %v4144
    %v4621 = vpack.c.b16 %v4149, %v4145
    %v4622 = vpack.c.b16 %v4154, %v4150
    %v4623 = vpack.c.b16 %v4155, %v4151
    %v4624 = vpack.c.b16 %v4156, %v4152
    %v4625 = vpack.c.b16 %v4157, %v4153
    %v4626 = vpack.c.b16 %v4162, %v4158
    %v4627 = vpack.c.b16 %v4163, %v4159
    %v4628 = vpack.c.b16 %v4164, %v4160
    %v4629 = vpack.c.b16 %v4165, %v4161
    %v4630 = vpack.c.b16 %v4170, %v4166
    %v4631 = vpack.c.b16 %v4171, %v4167
    %v4632 = vpack.c.b16 %v4172, %v4168
    %v4633 = vpack.c.b16 %v4173, %v4169
    %v4634 = vpack.c.b16 %v4178, %v4174
    %v4635 = vpack.c.b16 %v4179, %v4175
    %v4636 = vpack.c.b16 %v4180, %v4176
    %v4637 = vpack.c.b16 %v4181, %v4177
    %v4638 = vpack.c.b16 %v4186, %v4182
    %v4639 = vpack.c.b16 %v4187, %v4183
    %v4640 = vpack.c.b16 %v4188, %v4184
    %v4641 = vpack.c.b16 %v4189, %v4185
    %v4642 = vpack.c.b16 %v4194, %v4190
    %v4643 = vpack.c.b16 %v4195, %v4191
    %v4644 = vpack.c.b16 %v4196, %v4192
    %v4645 = vpack.c.b16 %v4197, %v4193
    %v4646 = vpack.c.b16 %v4202, %v4198
    %v4647 = vpack.c.b16 %v4203, %v4199
    %v4648 = vpack.c.b16 %v4204, %v4200
    %v4649 = vpack.c.b16 %v4205, %v4201
    %v4650 = vpack.c.b16 %v4210, %v4206
    %v4651 = vpack.c.b16 %v4211, %v4207
    %v4652 = vpack.c.b16 %v4212, %v4208
    %v4653 = vpack.c.b16 %v4213, %v4209
    %v4654 = vpack.c.b16 %v4218, %v4214
    %v4655 = vpack.c.b16 %v4219, %v4215
    %v4656 = vpack.c.b16 %v4220, %v4216
    %v4657 = vpack.c.b16 %v4221, %v4217
    %v4658 = vpack.c.b16 %v4226, %v4222
    %v4659 = vpack.c.b16 %v4227, %v4223
    %v4660 = vpack.c.b16 %v4228, %v4224
    %v4661 = vpack.c.b16 %v4229, %v4225
    %v4662 = vpack.c.b16 %v4234, %v4230
    %v4663 = vpack.c.b16 %v4235, %v4231
    %v4664 = vpack.c.b16 %v4236, %v4232
    %v4665 = vpack.c.b16 %v4237, %v4233
    %v4666 = vpack.c.b16 %v4242, %v4238
    %v4667 = vpack.c.b16 %v4243, %v4239
    %v4668 = vpack.c.b16 %v4244, %v4240
    %v4669 = vpack.c.b16 %v4245, %v4241
    %v4670 = vpack.c.b16 %v4250, %v4246
    %v4671 = vpack.c.b16 %v4251, %v4247
    %v4672 = vpack.c.b16 %v4252, %v4248
    %v4673 = vpack.c.b16 %v4253, %v4249
    %v4674 = vpack.c.b16 %v4258, %v4254
    %v4675 = vpack.c.b16 %v4259, %v4255
    %v4676 = vpack.c.b16 %v4260, %v4256
    %v4677 = vpack.c.b16 %v4261, %v4257
    %v4678 = vpack.c.b16 %v4266, %v4262
    %v4679 = vpack.c.b16 %v4267, %v4263
    %v4680 = vpack.c.b16 %v4268, %v4264
    %v4681 = vpack.c.b16 %v4269, %v4265
    %v4682 = vpack.c.b16 %v4274, %v4270
    %v4683 = vpack.c.b16 %v4275, %v4271
    %v4684 = vpack.c.b16 %v4276, %v4272
    %v4685 = vpack.c.b16 %v4277, %v4273
    %v4686 = vpack.c.b16 %v4282, %v4278
    %v4687 = vpack.c.b16 %v4283, %v4279
    %v4688 = vpack.c.b16 %v4284, %v4280
    %v4689 = vpack.c.b16 %v4285, %v4281
    %v4690 = vpack.c.b16 %v4290, %v4286
    %v4691 = vpack.c.b16 %v4291, %v4287
    %v4692 = vpack.c.b16 %v4292, %v4288
    %v4693 = vpack.c.b16 %v4293, %v4289
    %v4694 = vpack.c.b16 %v4298, %v4294
    %v4695 = vpack.c.b16 %v4299, %v4295
    %v4696 = vpack.c.b16 %v4300, %v4296
    %v4697 = vpack.c.b16 %v4301, %v4297
    %v4698 = vpack.c.b16 %v4306, %v4302
    %v4699 = vpack.c.b16 %v4307, %v4303
    %v4700 = vpack.c.b16 %v4308, %v4304
    %v4701 = vpack.c.b16 %v4309, %v4305
    %v4702 = vpack.c.b16 %v4314, %v4310
    %v4703 = vpack.c.b16 %v4315, %v4311
    %v4704 = vpack.c.b16 %v4316, %v4312
    %v4705 = vpack.c.b16 %v4317, %v4313
    %v4706 = vpack.c.b16 %v4322, %v4318
    %v4707 = vpack.c.b16 %v4323, %v4319
    %v4708 = vpack.c.b16 %v4324, %v4320
    %v4709 = vpack.c.b16 %v4325, %v4321
    %v4710 = vpack.c.b16 %v4330, %v4326
    %v4711 = vpack.c.b16 %v4331, %v4327
    %v4712 = vpack.c.b16 %v4332, %v4328
    %v4713 = vpack.c.b16 %v4333, %v4329
    %v4714 = vpack.c.b16 %v4338, %v4334
    %v4715 = vpack.c.b16 %v4339, %v4335
    %v4716 = vpack.c.b16 %v4340, %v4336
    %v4717 = vpack.c.b16 %v4341, %v4337
    %v4718 = vpack.c.b16 %v4346, %v4342
    %v4719 = vpack.c.b16 %v4347, %v4343
    %v4720 = vpack.c.b16 %v4348, %v4344
    %v4721 = vpack.c.b16 %v4349, %v4345
    %v4722 = vpack.c.b16 %v4354, %v4350
    %v4723 = vpack.c.b16 %v4355, %v4351
    %v4724 = vpack.c.b16 %v4356, %v4352
    %v4725 = vpack.c.b16 %v4357, %v4353
    %v4726 = vpack.c.b16 %v4362, %v4358
    %v4727 = vpack.c.b16 %v4363, %v4359
    %v4728 = vpack.c.b16 %v4364, %v4360
    %v4729 = vpack.c.b16 %v4365, %v4361
    %v4730 = vpack.c.b16 %v4370, %v4366
    %v4731 = vpack.c.b16 %v4371, %v4367
    %v4732 = vpack.c.b16 %v4372, %v4368
    %v4733 = vpack.c.b16 %v4373, %v4369
    %v4734 = vpack.c.b16 %v4378, %v4374
    %v4735 = vpack.c.b16 %v4379, %v4375
    %v4736 = vpack.c.b16 %v4380, %v4376
    %v4737 = vpack.c.b16 %v4381, %v4377
    %v4738 = vpack.c.b16 %v4386, %v4382
    %v4739 = vpack.c.b16 %v4387, %v4383
    %v4740 = vpack.c.b16 %v4388, %v4384
    %v4741 = vpack.c.b16 %v4389, %v4385
    %v4742 = vpack.c.b16 %v4394, %v4390
    %v4743 = vpack.c.b16 %v4395, %v4391
    %v4744 = vpack.c.b16 %v4396, %v4392
    %v4745 = vpack.c.b16 %v4397, %v4393
    %v4746 = vpack.c.b16 %v4402, %v4398
    %v4747 = vpack.c.b16 %v4403, %v4399
    %v4748 = vpack.c.b16 %v4404, %v4400
    %v4749 = vpack.c.b16 %v4405, %v4401
    %v4750 = vpack.c.b16 %v4410, %v4406
    %v4751 = vpack.c.b16 %v4411, %v4407
    %v4752 = vpack.c.b16 %v4412, %v4408
    %v4753 = vpack.c.b16 %v4413, %v4409
    %v4754 = vpack.c.b16 %v4418, %v4414
    %v4755 = vpack.c.b16 %v4419, %v4415
    %v4756 = vpack.c.b16 %v4420, %v4416
    %v4757 = vpack.c.b16 %v4421, %v4417
    %v4758 = vpack.c.b16 %v4426, %v4422
    %v4759 = vpack.c.b16 %v4427, %v4423
    %v4760 = vpack.c.b16 %v4428, %v4424
    %v4761 = vpack.c.b16 %v4429, %v4425
    %v4762 = vpack.c.b16 %v4434, %v4430
    %v4763 = vpack.c.b16 %v4435, %v4431
    %v4764 = vpack.c.b16 %v4436, %v4432
    %v4765 = vpack.c.b16 %v4437, %v4433
    %v4766 = vpack.c.b16 %v4442, %v4438
    %v4767 = vpack.c.b16 %v4443, %v4439
    %v4768 = vpack.c.b16 %v4444, %v4440
    %v4769 = vpack.c.b16 %v4445, %v4441
    %v4770 = vpack.c.b16 %v4450, %v4446
    %v4771 = vpack.c.b16 %v4451, %v4447
    %v4772 = vpack.c.b16 %v4452, %v4448
    %v4773 = vpack.c.b16 %v4453, %v4449
    %v4774 = vpack.c.b16 %v4458, %v4454
    %v4775 = vpack.c.b16 %v4459, %v4455
    %v4776 = vpack.c.b16 %v4460, %v4456
    %v4777 = vpack.c.b16 %v4461, %v4457
    %v4778 = vpack.c.b16 %v4466, %v4462
    %v4779 = vpack.c.b16 %v4467, %v4463
    %v4780 = vpack.c.b16 %v4468, %v4464
    %v4781 = vpack.c.b16 %v4469, %v4465
    %v4782 = vpack.c.b16 %v4474, %v4470
    %v4783 = vpack.c.b16 %v4475, %v4471
    %v4784 = vpack.c.b16 %v4476, %v4472
    %v4785 = vpack.c.b16 %v4477, %v4473
    %v4786 = vpack.c.b16 %v4482, %v4478
    %v4787 = vpack.c.b16 %v4483, %v4479
    %v4788 = vpack.c.b16 %v4484, %v4480
    %v4789 = vpack.c.b16 %v4485, %v4481
    %v4790 = vpack.c.b16 %v4490, %v4486
    %v4791 = vpack.c.b16 %v4491, %v4487
    %v4792 = vpack.c.b16 %v4492, %v4488
    %v4793 = vpack.c.b16 %v4493, %v4489
    %v4794 = vpack.c.b16 %v4498, %v4494
    %v4795 = vpack.c.b16 %v4499, %v4495
    %v4796 = vpack.c.b16 %v4500, %v4496
    %v4797 = vpack.c.b16 %v4501, %v4497
    %v4798 = vpack.c.b16 %v4506, %v4502
    %v4799 = vpack.c.b16 %v4507, %v4503
    %v4800 = vpack.c.b16 %v4508, %v4504
    %v4801 = vpack.c.b16 %v4509, %v4505
    %v4802 = vpack.c.b16 %v4514, %v4510
    %v4803 = vpack.c.b16 %v4515, %v4511
    %v4804 = vpack.c.b16 %v4516, %v4512
    %v4805 = vpack.c.b16 %v4517, %v4513
    %v4806 = vpack.c.b16 %v4522, %v4518
    %v4807 = vpack.c.b16 %v4523, %v4519
    %v4808 = vpack.c.b16 %v4524, %v4520
    %v4809 = vpack.c.b16 %v4525, %v4521
    %v4810 = vpack.c.b16 %v4530, %v4526
    %v4811 = vpack.c.b16 %v4531, %v4527
    %v4812 = vpack.c.b16 %v4532, %v4528
    %v4813 = vpack.c.b16 %v4533, %v4529
    %v4814 = vpack.c.b16 %v4538, %v4534
    %v4815 = vpack.c.b16 %v4539, %v4535
    %v4816 = vpack.c.b16 %v4540, %v4536
    %v4817 = vpack.c.b16 %v4541, %v4537
    %v4818 = vpack.c.b16 %v4546, %v4542
    %v4819 = vpack.c.b16 %v4547, %v4543
    %v4820 = vpack.c.b16 %v4548, %v4544
    %v4821 = vpack.c.b16 %v4549, %v4545
    %v4822 = vpack.c.b16 %v4554, %v4550
    %v4823 = vpack.c.b16 %v4555, %v4551
    %v4824 = vpack.c.b16 %v4556, %v4552
    %v4825 = vpack.c.b16 %v4557, %v4553
    %v4826 = vpack.c.b16 %v4562, %v4558
    %v4827 = vpack.c.b16 %v4563, %v4559
    %v4828 = vpack.c.b16 %v4564, %v4560
    %v4829 = vpack.c.b16 %v4565, %v4561
    %v4830 = vpack.c.b16 %v4570, %v4566
    %v4831 = vpack.c.b16 %v4571, %v4567
    %v4832 = vpack.c.b16 %v4572, %v4568
    %v4833 = vpack.c.b16 %v4573, %v4569
    %v4834 = vpack.c.b16 %v4578, %v4574
    %v4835 = vpack.c.b16 %v4579, %v4575
    %v4836 = vpack.c.b16 %v4580, %v4576
    %v4837 = vpack.c.b16 %v4581, %v4577
    %5094 = vmatpush.bf16.msra.mxu0 %v4610
    %5095 = vmatpush.bf16.msra.mxu0 %v4606
    %5096 = vmatpush.bf16.msra.mxu0 %v4602
    %5097 = vmatpush.bf16.msra.mxu0 %v4598
    %5098 = vmatpush.bf16.msra.mxu0 %v4594
    %5099 = vmatpush.bf16.msra.mxu0 %v4590
    %5100 = vmatpush.bf16.msra.mxu0 %v4586
    %5101 = vmatpush.bf16.msra.mxu0 %v4582
    %5102 = vmatmul.bf16.gmra.mxu0 %v3540
    %v5103 = vpop.f32.mrf.mxu0
    %v5104 = vadd.f32 %v3806, %v5103
    %v5105 = vpop.f32.mrf.mxu0
    %5106 = vdwg.mxu0
    %5107 = vmatpush.bf16.msra.mxu0 %v4642
    %5108 = vmatpush.bf16.msra.mxu0 %v4638
    %5109 = vmatpush.bf16.msra.mxu0 %v4634
    %5110 = vmatpush.bf16.msra.mxu0 %v4630
    %5111 = vmatpush.bf16.msra.mxu0 %v4626
    %5112 = vmatpush.bf16.msra.mxu0 %v4622
    %5113 = vmatpush.bf16.msra.mxu0 %v4618
    %5114 = vmatpush.bf16.msra.mxu0 %v4614
    %5115 = vmatmul.bf16.gmra.mxu0 %v3541
    %v5116 = vpop.f32.mrf.mxu0
    %v5117 = vadd.f32 %v5104, %v5116
    %v5118 = vpop.f32.mrf.mxu0
    %5119 = vdwg.mxu0
    %5120 = vmatpush.bf16.msra.mxu0 %v4674
    %5121 = vmatpush.bf16.msra.mxu0 %v4670
    %5122 = vmatpush.bf16.msra.mxu0 %v4666
    %5123 = vmatpush.bf16.msra.mxu0 %v4662
    %5124 = vmatpush.bf16.msra.mxu0 %v4658
    %5125 = vmatpush.bf16.msra.mxu0 %v4654
    %5126 = vmatpush.bf16.msra.mxu0 %v4650
    %5127 = vmatpush.bf16.msra.mxu0 %v4646
    %5128 = vmatmul.bf16.gmra.mxu0 %v3542
    %v5129 = vpop.f32.mrf.mxu0
    %v5130 = vadd.f32 %v5117, %v5129
    %v5131 = vpop.f32.mrf.mxu0
    %5132 = vdwg.mxu0
    %5133 = vmatpush.bf16.msra.mxu0 %v4706
    %5134 = vmatpush.bf16.msra.mxu0 %v4702
    %5135 = vmatpush.bf16.msra.mxu0 %v4698
    %5136 = vmatpush.bf16.msra.mxu0 %v4694
    %5137 = vmatpush.bf16.msra.mxu0 %v4690
    %5138 = vmatpush.bf16.msra.mxu0 %v4686
    %5139 = vmatpush.bf16.msra.mxu0 %v4682
    %5140 = vmatpush.bf16.msra.mxu0 %v4678
    %5141 = vmatmul.bf16.gmra.mxu0 %v3543
    %v5142 = vpop.f32.mrf.mxu0
    %v5143 = vadd.f32 %v5130, %v5142
    %v5144 = vpop.f32.mrf.mxu0
    %5145 = vdwg.mxu0
    %5146 = vmatpush.bf16.msra.mxu0 %v4738
    %5147 = vmatpush.bf16.msra.mxu0 %v4734
    %5148 = vmatpush.bf16.msra.mxu0 %v4730
    %5149 = vmatpush.bf16.msra.mxu0 %v4726
    %5150 = vmatpush.bf16.msra.mxu0 %v4722
    %5151 = vmatpush.bf16.msra.mxu0 %v4718
    %5152 = vmatpush.bf16.msra.mxu0 %v4714
    %5153 = vmatpush.bf16.msra.mxu0 %v4710
    %5154 = vmatmul.bf16.gmra.mxu0 %v3544
    %v5155 = vpop.f32.mrf.mxu0
    %v5156 = vadd.f32 %v5143, %v5155
    %v5157 = vpop.f32.mrf.mxu0
    %5158 = vdwg.mxu0
    %5159 = vmatpush.bf16.msra.mxu0 %v4770
    %5160 = vmatpush.bf16.msra.mxu0 %v4766
    %5161 = vmatpush.bf16.msra.mxu0 %v4762
    %5162 = vmatpush.bf16.msra.mxu0 %v4758
    %5163 = vmatpush.bf16.msra.mxu0 %v4754
    %5164 = vmatpush.bf16.msra.mxu0 %v4750
    %5165 = vmatpush.bf16.msra.mxu0 %v4746
    %5166 = vmatpush.bf16.msra.mxu0 %v4742
    %5167 = vmatmul.bf16.gmra.mxu0 %v3545
    %v5168 = vpop.f32.mrf.mxu0
    %v5169 = vadd.f32 %v5156, %v5168
    %v5170 = vpop.f32.mrf.mxu0
    %5171 = vdwg.mxu0
    %5172 = vmatpush.bf16.msra.mxu0 %v4802
    %5173 = vmatpush.bf16.msra.mxu0 %v4798
    %5174 = vmatpush.bf16.msra.mxu0 %v4794
    %5175 = vmatpush.bf16.msra.mxu0 %v4790
    %5176 = vmatpush.bf16.msra.mxu0 %v4786
    %5177 = vmatpush.bf16.msra.mxu0 %v4782
    %5178 = vmatpush.bf16.msra.mxu0 %v4778
    %5179 = vmatpush.bf16.msra.mxu0 %v4774
    %5180 = vmatmul.bf16.gmra.mxu0 %v3546
    %v5181 = vpop.f32.mrf.mxu0
    %v5182 = vadd.f32 %v5169, %v5181
    %v5183 = vpop.f32.mrf.mxu0
    %5184 = vdwg.mxu0
    %5185 = vmatpush.bf16.msra.mxu0 %v4834
    %5186 = vmatpush.bf16.msra.mxu0 %v4830
    %5187 = vmatpush.bf16.msra.mxu0 %v4826
    %5188 = vmatpush.bf16.msra.mxu0 %v4822
    %5189 = vmatpush.bf16.msra.mxu0 %v4818
    %5190 = vmatpush.bf16.msra.mxu0 %v4814
    %5191 = vmatpush.bf16.msra.mxu0 %v4810
    %5192 = vmatpush.bf16.msra.mxu0 %v4806
    %5193 = vmatmul.bf16.gmra.mxu0 %v3547
    %v5194 = vpop.f32.mrf.mxu0
    %v5195 = vadd.f32 %v5182, %v5194
    %v5196 = vpop.f32.mrf.mxu0
    %5197 = vdwg.mxu0
    %5198 = vmatpush.bf16.msra.mxu0 %v4611
    %5199 = vmatpush.bf16.msra.mxu0 %v4607
    %5200 = vmatpush.bf16.msra.mxu0 %v4603
    %5201 = vmatpush.bf16.msra.mxu0 %v4599
    %5202 = vmatpush.bf16.msra.mxu0 %v4595
    %5203 = vmatpush.bf16.msra.mxu0 %v4591
    %5204 = vmatpush.bf16.msra.mxu0 %v4587
    %5205 = vmatpush.bf16.msra.mxu0 %v4583
    %5206 = vmatmul.bf16.gmra.mxu0 %v3540
    %v5207 = vpop.f32.mrf.mxu0
    %v5208 = vadd.f32 %v3807, %v5207
    %v5209 = vpop.f32.mrf.mxu0
    %5210 = vdwg.mxu0
    %5211 = vmatpush.bf16.msra.mxu0 %v4643
    %5212 = vmatpush.bf16.msra.mxu0 %v4639
    %5213 = vmatpush.bf16.msra.mxu0 %v4635
    %5214 = vmatpush.bf16.msra.mxu0 %v4631
    %5215 = vmatpush.bf16.msra.mxu0 %v4627
    %5216 = vmatpush.bf16.msra.mxu0 %v4623
    %5217 = vmatpush.bf16.msra.mxu0 %v4619
    %5218 = vmatpush.bf16.msra.mxu0 %v4615
    %5219 = vmatmul.bf16.gmra.mxu0 %v3541
    %v5220 = vpop.f32.mrf.mxu0
    %v5221 = vadd.f32 %v5208, %v5220
    %v5222 = vpop.f32.mrf.mxu0
    %5223 = vdwg.mxu0
    %5224 = vmatpush.bf16.msra.mxu0 %v4675
    %5225 = vmatpush.bf16.msra.mxu0 %v4671
    %5226 = vmatpush.bf16.msra.mxu0 %v4667
    %5227 = vmatpush.bf16.msra.mxu0 %v4663
    %5228 = vmatpush.bf16.msra.mxu0 %v4659
    %5229 = vmatpush.bf16.msra.mxu0 %v4655
    %5230 = vmatpush.bf16.msra.mxu0 %v4651
    %5231 = vmatpush.bf16.msra.mxu0 %v4647
    %5232 = vmatmul.bf16.gmra.mxu0 %v3542
    %v5233 = vpop.f32.mrf.mxu0
    %v5234 = vadd.f32 %v5221, %v5233
    %v5235 = vpop.f32.mrf.mxu0
    %5236 = vdwg.mxu0
    %5237 = vmatpush.bf16.msra.mxu0 %v4707
    %5238 = vmatpush.bf16.msra.mxu0 %v4703
    %5239 = vmatpush.bf16.msra.mxu0 %v4699
    %5240 = vmatpush.bf16.msra.mxu0 %v4695
    %5241 = vmatpush.bf16.msra.mxu0 %v4691
    %5242 = vmatpush.bf16.msra.mxu0 %v4687
    %5243 = vmatpush.bf16.msra.mxu0 %v4683
    %5244 = vmatpush.bf16.msra.mxu0 %v4679
    %5245 = vmatmul.bf16.gmra.mxu0 %v3543
    %v5246 = vpop.f32.mrf.mxu0
    %v5247 = vadd.f32 %v5234, %v5246
    %v5248 = vpop.f32.mrf.mxu0
    %5249 = vdwg.mxu0
    %5250 = vmatpush.bf16.msra.mxu0 %v4739
    %5251 = vmatpush.bf16.msra.mxu0 %v4735
    %5252 = vmatpush.bf16.msra.mxu0 %v4731
    %5253 = vmatpush.bf16.msra.mxu0 %v4727
    %5254 = vmatpush.bf16.msra.mxu0 %v4723
    %5255 = vmatpush.bf16.msra.mxu0 %v4719
    %5256 = vmatpush.bf16.msra.mxu0 %v4715
    %5257 = vmatpush.bf16.msra.mxu0 %v4711
    %5258 = vmatmul.bf16.gmra.mxu0 %v3544
    %v5259 = vpop.f32.mrf.mxu0
    %v5260 = vadd.f32 %v5247, %v5259
    %v5261 = vpop.f32.mrf.mxu0
    %5262 = vdwg.mxu0
    %5263 = vmatpush.bf16.msra.mxu0 %v4771
    %5264 = vmatpush.bf16.msra.mxu0 %v4767
    %5265 = vmatpush.bf16.msra.mxu0 %v4763
    %5266 = vmatpush.bf16.msra.mxu0 %v4759
    %5267 = vmatpush.bf16.msra.mxu0 %v4755
    %5268 = vmatpush.bf16.msra.mxu0 %v4751
    %5269 = vmatpush.bf16.msra.mxu0 %v4747
    %5270 = vmatpush.bf16.msra.mxu0 %v4743
    %5271 = vmatmul.bf16.gmra.mxu0 %v3545
    %v5272 = vpop.f32.mrf.mxu0
    %v5273 = vadd.f32 %v5260, %v5272
    %v5274 = vpop.f32.mrf.mxu0
    %5275 = vdwg.mxu0
    %5276 = vmatpush.bf16.msra.mxu0 %v4803
    %5277 = vmatpush.bf16.msra.mxu0 %v4799
    %5278 = vmatpush.bf16.msra.mxu0 %v4795
    %5279 = vmatpush.bf16.msra.mxu0 %v4791
    %5280 = vmatpush.bf16.msra.mxu0 %v4787
    %5281 = vmatpush.bf16.msra.mxu0 %v4783
    %5282 = vmatpush.bf16.msra.mxu0 %v4779
    %5283 = vmatpush.bf16.msra.mxu0 %v4775
    %5284 = vmatmul.bf16.gmra.mxu0 %v3546
    %v5285 = vpop.f32.mrf.mxu0
    %v5286 = vadd.f32 %v5273, %v5285
    %v5287 = vpop.f32.mrf.mxu0
    %5288 = vdwg.mxu0
    %5289 = vmatpush.bf16.msra.mxu0 %v4835
    %5290 = vmatpush.bf16.msra.mxu0 %v4831
    %5291 = vmatpush.bf16.msra.mxu0 %v4827
    %5292 = vmatpush.bf16.msra.mxu0 %v4823
    %5293 = vmatpush.bf16.msra.mxu0 %v4819
    %5294 = vmatpush.bf16.msra.mxu0 %v4815
    %5295 = vmatpush.bf16.msra.mxu0 %v4811
    %5296 = vmatpush.bf16.msra.mxu0 %v4807
    %5297 = vmatmul.bf16.gmra.mxu0 %v3547
    %v5298 = vpop.f32.mrf.mxu0
    %v5299 = vadd.f32 %v5286, %v5298
    %v5300 = vpop.f32.mrf.mxu0
    %5301 = vdwg.mxu0
    %5302 = vmatpush.bf16.msra.mxu0 %v4612
    %5303 = vmatpush.bf16.msra.mxu0 %v4608
    %5304 = vmatpush.bf16.msra.mxu0 %v4604
    %5305 = vmatpush.bf16.msra.mxu0 %v4600
    %5306 = vmatpush.bf16.msra.mxu0 %v4596
    %5307 = vmatpush.bf16.msra.mxu0 %v4592
    %5308 = vmatpush.bf16.msra.mxu0 %v4588
    %5309 = vmatpush.bf16.msra.mxu0 %v4584
    %5310 = vmatmul.bf16.gmra.mxu0 %v3540
    %v5311 = vpop.f32.mrf.mxu0
    %v5312 = vadd.f32 %v3808, %v5311
    %v5313 = vpop.f32.mrf.mxu0
    %5314 = vdwg.mxu0
    %5315 = vmatpush.bf16.msra.mxu0 %v4644
    %5316 = vmatpush.bf16.msra.mxu0 %v4640
    %5317 = vmatpush.bf16.msra.mxu0 %v4636
    %5318 = vmatpush.bf16.msra.mxu0 %v4632
    %5319 = vmatpush.bf16.msra.mxu0 %v4628
    %5320 = vmatpush.bf16.msra.mxu0 %v4624
    %5321 = vmatpush.bf16.msra.mxu0 %v4620
    %5322 = vmatpush.bf16.msra.mxu0 %v4616
    %5323 = vmatmul.bf16.gmra.mxu0 %v3541
    %v5324 = vpop.f32.mrf.mxu0
    %v5325 = vadd.f32 %v5312, %v5324
    %v5326 = vpop.f32.mrf.mxu0
    %5327 = vdwg.mxu0
    %5328 = vmatpush.bf16.msra.mxu0 %v4676
    %5329 = vmatpush.bf16.msra.mxu0 %v4672
    %5330 = vmatpush.bf16.msra.mxu0 %v4668
    %5331 = vmatpush.bf16.msra.mxu0 %v4664
    %5332 = vmatpush.bf16.msra.mxu0 %v4660
    %5333 = vmatpush.bf16.msra.mxu0 %v4656
    %5334 = vmatpush.bf16.msra.mxu0 %v4652
    %5335 = vmatpush.bf16.msra.mxu0 %v4648
    %5336 = vmatmul.bf16.gmra.mxu0 %v3542
    %v5337 = vpop.f32.mrf.mxu0
    %v5338 = vadd.f32 %v5325, %v5337
    %v5339 = vpop.f32.mrf.mxu0
    %5340 = vdwg.mxu0
    %5341 = vmatpush.bf16.msra.mxu0 %v4708
    %5342 = vmatpush.bf16.msra.mxu0 %v4704
    %5343 = vmatpush.bf16.msra.mxu0 %v4700
    %5344 = vmatpush.bf16.msra.mxu0 %v4696
    %5345 = vmatpush.bf16.msra.mxu0 %v4692
    %5346 = vmatpush.bf16.msra.mxu0 %v4688
    %5347 = vmatpush.bf16.msra.mxu0 %v4684
    %5348 = vmatpush.bf16.msra.mxu0 %v4680
    %5349 = vmatmul.bf16.gmra.mxu0 %v3543
    %v5350 = vpop.f32.mrf.mxu0
    %v5351 = vadd.f32 %v5338, %v5350
    %v5352 = vpop.f32.mrf.mxu0
    %5353 = vdwg.mxu0
    %5354 = vmatpush.bf16.msra.mxu0 %v4740
    %5355 = vmatpush.bf16.msra.mxu0 %v4736
    %5356 = vmatpush.bf16.msra.mxu0 %v4732
    %5357 = vmatpush.bf16.msra.mxu0 %v4728
    %5358 = vmatpush.bf16.msra.mxu0 %v4724
    %5359 = vmatpush.bf16.msra.mxu0 %v4720
    %5360 = vmatpush.bf16.msra.mxu0 %v4716
    %5361 = vmatpush.bf16.msra.mxu0 %v4712
    %5362 = vmatmul.bf16.gmra.mxu0 %v3544
    %v5363 = vpop.f32.mrf.mxu0
    %v5364 = vadd.f32 %v5351, %v5363
    %v5365 = vpop.f32.mrf.mxu0
    %5366 = vdwg.mxu0
    %5367 = vmatpush.bf16.msra.mxu0 %v4772
    %5368 = vmatpush.bf16.msra.mxu0 %v4768
    %5369 = vmatpush.bf16.msra.mxu0 %v4764
    %5370 = vmatpush.bf16.msra.mxu0 %v4760
    %5371 = vmatpush.bf16.msra.mxu0 %v4756
    %5372 = vmatpush.bf16.msra.mxu0 %v4752
    %5373 = vmatpush.bf16.msra.mxu0 %v4748
    %5374 = vmatpush.bf16.msra.mxu0 %v4744
    %5375 = vmatmul.bf16.gmra.mxu0 %v3545
    %v5376 = vpop.f32.mrf.mxu0
    %v5377 = vadd.f32 %v5364, %v5376
    %v5378 = vpop.f32.mrf.mxu0
    %5379 = vdwg.mxu0
    %5380 = vmatpush.bf16.msra.mxu0 %v4804
    %5381 = vmatpush.bf16.msra.mxu0 %v4800
    %5382 = vmatpush.bf16.msra.mxu0 %v4796
    %5383 = vmatpush.bf16.msra.mxu0 %v4792
    %5384 = vmatpush.bf16.msra.mxu0 %v4788
    %5385 = vmatpush.bf16.msra.mxu0 %v4784
    %5386 = vmatpush.bf16.msra.mxu0 %v4780
    %5387 = vmatpush.bf16.msra.mxu0 %v4776
    %5388 = vmatmul.bf16.gmra.mxu0 %v3546
    %v5389 = vpop.f32.mrf.mxu0
    %v5390 = vadd.f32 %v5377, %v5389
    %v5391 = vpop.f32.mrf.mxu0
    %5392 = vdwg.mxu0
    %5393 = vmatpush.bf16.msra.mxu0 %v4836
    %5394 = vmatpush.bf16.msra.mxu0 %v4832
    %5395 = vmatpush.bf16.msra.mxu0 %v4828
    %5396 = vmatpush.bf16.msra.mxu0 %v4824
    %5397 = vmatpush.bf16.msra.mxu0 %v4820
    %5398 = vmatpush.bf16.msra.mxu0 %v4816
    %5399 = vmatpush.bf16.msra.mxu0 %v4812
    %5400 = vmatpush.bf16.msra.mxu0 %v4808
    %5401 = vmatmul.bf16.gmra.mxu0 %v3547
    %v5402 = vpop.f32.mrf.mxu0
    %v5403 = vadd.f32 %v5390, %v5402
    %v5404 = vpop.f32.mrf.mxu0
    %5405 = vdwg.mxu0
    %5406 = vmatpush.bf16.msra.mxu0 %v4613
    %5407 = vmatpush.bf16.msra.mxu0 %v4609
    %5408 = vmatpush.bf16.msra.mxu0 %v4605
    %5409 = vmatpush.bf16.msra.mxu0 %v4601
    %5410 = vmatpush.bf16.msra.mxu0 %v4597
    %5411 = vmatpush.bf16.msra.mxu0 %v4593
    %5412 = vmatpush.bf16.msra.mxu0 %v4589
    %5413 = vmatpush.bf16.msra.mxu0 %v4585
    %5414 = vmatmul.bf16.gmra.mxu0 %v3540
    %v5415 = vpop.f32.mrf.mxu0
    %v5416 = vadd.f32 %v3809, %v5415
    %v5417 = vpop.f32.mrf.mxu0
    %5418 = vdwg.mxu0
    %5419 = vmatpush.bf16.msra.mxu0 %v4645
    %5420 = vmatpush.bf16.msra.mxu0 %v4641
    %5421 = vmatpush.bf16.msra.mxu0 %v4637
    %5422 = vmatpush.bf16.msra.mxu0 %v4633
    %5423 = vmatpush.bf16.msra.mxu0 %v4629
    %5424 = vmatpush.bf16.msra.mxu0 %v4625
    %5425 = vmatpush.bf16.msra.mxu0 %v4621
    %5426 = vmatpush.bf16.msra.mxu0 %v4617
    %5427 = vmatmul.bf16.gmra.mxu0 %v3541
    %v5428 = vpop.f32.mrf.mxu0
    %v5429 = vadd.f32 %v5416, %v5428
    %v5430 = vpop.f32.mrf.mxu0
    %5431 = vdwg.mxu0
    %5432 = vmatpush.bf16.msra.mxu0 %v4677
    %5433 = vmatpush.bf16.msra.mxu0 %v4673
    %5434 = vmatpush.bf16.msra.mxu0 %v4669
    %5435 = vmatpush.bf16.msra.mxu0 %v4665
    %5436 = vmatpush.bf16.msra.mxu0 %v4661
    %5437 = vmatpush.bf16.msra.mxu0 %v4657
    %5438 = vmatpush.bf16.msra.mxu0 %v4653
    %5439 = vmatpush.bf16.msra.mxu0 %v4649
    %5440 = vmatmul.bf16.gmra.mxu0 %v3542
    %v5441 = vpop.f32.mrf.mxu0
    %v5442 = vadd.f32 %v5429, %v5441
    %v5443 = vpop.f32.mrf.mxu0
    %5444 = vdwg.mxu0
    %5445 = vmatpush.bf16.msra.mxu0 %v4709
    %5446 = vmatpush.bf16.msra.mxu0 %v4705
    %5447 = vmatpush.bf16.msra.mxu0 %v4701
    %5448 = vmatpush.bf16.msra.mxu0 %v4697
    %5449 = vmatpush.bf16.msra.mxu0 %v4693
    %5450 = vmatpush.bf16.msra.mxu0 %v4689
    %5451 = vmatpush.bf16.msra.mxu0 %v4685
    %5452 = vmatpush.bf16.msra.mxu0 %v4681
    %5453 = vmatmul.bf16.gmra.mxu0 %v3543
    %v5454 = vpop.f32.mrf.mxu0
    %v5455 = vadd.f32 %v5442, %v5454
    %v5456 = vpop.f32.mrf.mxu0
    %5457 = vdwg.mxu0
    %5458 = vmatpush.bf16.msra.mxu0 %v4741
    %5459 = vmatpush.bf16.msra.mxu0 %v4737
    %5460 = vmatpush.bf16.msra.mxu0 %v4733
    %5461 = vmatpush.bf16.msra.mxu0 %v4729
    %5462 = vmatpush.bf16.msra.mxu0 %v4725
    %5463 = vmatpush.bf16.msra.mxu0 %v4721
    %5464 = vmatpush.bf16.msra.mxu0 %v4717
    %5465 = vmatpush.bf16.msra.mxu0 %v4713
    %5466 = vmatmul.bf16.gmra.mxu0 %v3544
    %v5467 = vpop.f32.mrf.mxu0
    %v5468 = vadd.f32 %v5455, %v5467
    %v5469 = vpop.f32.mrf.mxu0
    %5470 = vdwg.mxu0
    %5471 = vmatpush.bf16.msra.mxu0 %v4773
    %5472 = vmatpush.bf16.msra.mxu0 %v4769
    %5473 = vmatpush.bf16.msra.mxu0 %v4765
    %5474 = vmatpush.bf16.msra.mxu0 %v4761
    %5475 = vmatpush.bf16.msra.mxu0 %v4757
    %5476 = vmatpush.bf16.msra.mxu0 %v4753
    %5477 = vmatpush.bf16.msra.mxu0 %v4749
    %5478 = vmatpush.bf16.msra.mxu0 %v4745
    %5479 = vmatmul.bf16.gmra.mxu0 %v3545
    %v5480 = vpop.f32.mrf.mxu0
    %v5481 = vadd.f32 %v5468, %v5480
    %v5482 = vpop.f32.mrf.mxu0
    %5483 = vdwg.mxu0
    %5484 = vmatpush.bf16.msra.mxu0 %v4805
    %5485 = vmatpush.bf16.msra.mxu0 %v4801
    %5486 = vmatpush.bf16.msra.mxu0 %v4797
    %5487 = vmatpush.bf16.msra.mxu0 %v4793
    %5488 = vmatpush.bf16.msra.mxu0 %v4789
    %5489 = vmatpush.bf16.msra.mxu0 %v4785
    %5490 = vmatpush.bf16.msra.mxu0 %v4781
    %5491 = vmatpush.bf16.msra.mxu0 %v4777
    %5492 = vmatmul.bf16.gmra.mxu0 %v3546
    %v5493 = vpop.f32.mrf.mxu0
    %v5494 = vadd.f32 %v5481, %v5493
    %v5495 = vpop.f32.mrf.mxu0
    %5496 = vdwg.mxu0
    %5497 = vmatpush.bf16.msra.mxu0 %v4837
    %5498 = vmatpush.bf16.msra.mxu0 %v4833
    %5499 = vmatpush.bf16.msra.mxu0 %v4829
    %5500 = vmatpush.bf16.msra.mxu0 %v4825
    %5501 = vmatpush.bf16.msra.mxu0 %v4821
    %5502 = vmatpush.bf16.msra.mxu0 %v4817
    %5503 = vmatpush.bf16.msra.mxu0 %v4813
    %5504 = vmatpush.bf16.msra.mxu0 %v4809
    %5505 = vmatmul.bf16.gmra.mxu0 %v3547
    %v5506 = vpop.f32.mrf.mxu0
    %v5507 = vadd.f32 %v5494, %v5506
    %v5508 = vpop.f32.mrf.mxu0
    %5509 = vdwg.mxu0
    %v5510 = vmax.f32 %v5195, 0.0
    %v5511 = vmax.f32 %v5299, 0.0
    %v5512 = vmax.f32 %v5403, 0.0
    %v5513 = vmax.f32 %v5507, 0.0
    %v5514 = vpack.c.bf16 %v5510, %v5510
    %v5515 = vpack.c.bf16 %v5511, %v5511
    %v5516 = vpack.c.bf16 %v5512, %v5512
    %v5517 = vpack.c.bf16 %v5513, %v5513
    %v5518 = vld [vmem:[%s5] sm:$0xff]
    %v5519 = vld [vmem:[%s5 + $0x8] sm:$0xff]
    %v5520 = vld [vmem:[%s5 + $0x10] sm:$0xff]
    %v5521 = vld [vmem:[%s5 + $0x18] sm:$0xff]
    %v5522 = vld [vmem:[%s5 + $0x20] sm:$0xff]
    %v5523 = vld [vmem:[%s5 + $0x28] sm:$0xff]
    %v5524 = vld [vmem:[%s5 + $0x30] sm:$0xff]
    %v5525 = vld [vmem:[%s5 + $0x38] sm:$0xff]
    %v5526 = vld [vmem:[%s5 + $0x40] sm:$0xff]
    %v5527 = vld [vmem:[%s5 + $0x48] sm:$0xff]
    %v5528 = vld [vmem:[%s5 + $0x50] sm:$0xff]
    %v5529 = vld [vmem:[%s5 + $0x58] sm:$0xff]
    %v5530 = vld [vmem:[%s5 + $0x60] sm:$0xff]
    %v5531 = vld [vmem:[%s5 + $0x68] sm:$0xff]
    %v5532 = vld [vmem:[%s5 + $0x70] sm:$0xff]
    %v5533 = vld [vmem:[%s5 + $0x78] sm:$0xff]
    %v5534 = vld [vmem:[%s5 + $0x80] sm:$0xff]
    %v5535 = vld [vmem:[%s5 + $0x88] sm:$0xff]
    %v5536 = vld [vmem:[%s5 + $0x90] sm:$0xff]
    %v5537 = vld [vmem:[%s5 + $0x98] sm:$0xff]
    %v5538 = vld [vmem:[%s5 + $0xa0] sm:$0xff]
    %v5539 = vld [vmem:[%s5 + $0xa8] sm:$0xff]
    %v5540 = vld [vmem:[%s5 + $0xb0] sm:$0xff]
    %v5541 = vld [vmem:[%s5 + $0xb8] sm:$0xff]
    %v5542 = vld [vmem:[%s5 + $0xc0] sm:$0xff]
    %v5543 = vld [vmem:[%s5 + $0xc8] sm:$0xff]
    %v5544 = vld [vmem:[%s5 + $0xd0] sm:$0xff]
    %v5545 = vld [vmem:[%s5 + $0xd8] sm:$0xff]
    %v5546 = vld [vmem:[%s5 + $0xe0] sm:$0xff]
    %v5547 = vld [vmem:[%s5 + $0xe8] sm:$0xff]
    %v5548 = vld [vmem:[%s5 + $0xf0] sm:$0xff]
    %v5549 = vld [vmem:[%s5 + $0xf8] sm:$0xff]
    %v5550 = vld [vmem:[%s5 + $0x100] sm:$0xff]
    %v5551 = vld [vmem:[%s5 + $0x108] sm:$0xff]
    %v5552 = vld [vmem:[%s5 + $0x110] sm:$0xff]
    %v5553 = vld [vmem:[%s5 + $0x118] sm:$0xff]
    %v5554 = vld [vmem:[%s5 + $0x120] sm:$0xff]
    %v5555 = vld [vmem:[%s5 + $0x128] sm:$0xff]
    %v5556 = vld [vmem:[%s5 + $0x130] sm:$0xff]
    %v5557 = vld [vmem:[%s5 + $0x138] sm:$0xff]
    %v5558 = vld [vmem:[%s5 + $0x140] sm:$0xff]
    %v5559 = vld [vmem:[%s5 + $0x148] sm:$0xff]
    %v5560 = vld [vmem:[%s5 + $0x150] sm:$0xff]
    %v5561 = vld [vmem:[%s5 + $0x158] sm:$0xff]
    %v5562 = vld [vmem:[%s5 + $0x160] sm:$0xff]
    %v5563 = vld [vmem:[%s5 + $0x168] sm:$0xff]
    %v5564 = vld [vmem:[%s5 + $0x170] sm:$0xff]
    %v5565 = vld [vmem:[%s5 + $0x178] sm:$0xff]
    %v5566 = vld [vmem:[%s5 + $0x180] sm:$0xff]
    %v5567 = vld [vmem:[%s5 + $0x188] sm:$0xff]
    %v5568 = vld [vmem:[%s5 + $0x190] sm:$0xff]
    %v5569 = vld [vmem:[%s5 + $0x198] sm:$0xff]
    %v5570 = vld [vmem:[%s5 + $0x1a0] sm:$0xff]
    %v5571 = vld [vmem:[%s5 + $0x1a8] sm:$0xff]
    %v5572 = vld [vmem:[%s5 + $0x1b0] sm:$0xff]
    %v5573 = vld [vmem:[%s5 + $0x1b8] sm:$0xff]
    %v5574 = vld [vmem:[%s5 + $0x1c0] sm:$0xff]
    %v5575 = vld [vmem:[%s5 + $0x1c8] sm:$0xff]
    %v5576 = vld [vmem:[%s5 + $0x1d0] sm:$0xff]
    %v5577 = vld [vmem:[%s5 + $0x1d8] sm:$0xff]
    %v5578 = vld [vmem:[%s5 + $0x1e0] sm:$0xff]
    %v5579 = vld [vmem:[%s5 + $0x1e8] sm:$0xff]
    %v5580 = vld [vmem:[%s5 + $0x1f0] sm:$0xff]
    %v5581 = vld [vmem:[%s5 + $0x1f8] sm:$0xff]
    %v5582 = vld [vmem:[%s6] sm:$0x3]
    %v5584 = vperm.slane %v5582, 0
    %v5585 = vperm.slane %v5582, 1
    %v5652 = vunpack.c.l.b16 %v5518
    %v5653 = vunpack.c.h.b16 %v5518
    %v5654 = vunpack.c.l.b16 %v5519
    %v5655 = vunpack.c.h.b16 %v5519
    %v5656 = vunpack.c.l.b16 %v5520
    %v5657 = vunpack.c.h.b16 %v5520
    %v5658 = vunpack.c.l.b16 %v5521
    %v5659 = vunpack.c.h.b16 %v5521
    %v5660 = vunpack.c.l.b16 %v5522
    %v5661 = vunpack.c.h.b16 %v5522
    %v5662 = vunpack.c.l.b16 %v5523
    %v5663 = vunpack.c.h.b16 %v5523
    %v5664 = vunpack.c.l.b16 %v5524
    %v5665 = vunpack.c.h.b16 %v5524
    %v5666 = vunpack.c.l.b16 %v5525
    %v5667 = vunpack.c.h.b16 %v5525
    %v5668 = vunpack.c.l.b16 %v5526
    %v5669 = vunpack.c.h.b16 %v5526
    %v5670 = vunpack.c.l.b16 %v5527
    %v5671 = vunpack.c.h.b16 %v5527
    %v5672 = vunpack.c.l.b16 %v5528
    %v5673 = vunpack.c.h.b16 %v5528
    %v5674 = vunpack.c.l.b16 %v5529
    %v5675 = vunpack.c.h.b16 %v5529
    %v5676 = vunpack.c.l.b16 %v5530
    %v5677 = vunpack.c.h.b16 %v5530
    %v5678 = vunpack.c.l.b16 %v5531
    %v5679 = vunpack.c.h.b16 %v5531
    %v5680 = vunpack.c.l.b16 %v5532
    %v5681 = vunpack.c.h.b16 %v5532
    %v5682 = vunpack.c.l.b16 %v5533
    %v5683 = vunpack.c.h.b16 %v5533
    %v5684 = vunpack.c.l.b16 %v5534
    %v5685 = vunpack.c.h.b16 %v5534
    %v5686 = vunpack.c.l.b16 %v5535
    %v5687 = vunpack.c.h.b16 %v5535
    %v5688 = vunpack.c.l.b16 %v5536
    %v5689 = vunpack.c.h.b16 %v5536
    %v5690 = vunpack.c.l.b16 %v5537
    %v5691 = vunpack.c.h.b16 %v5537
    %v5692 = vunpack.c.l.b16 %v5538
    %v5693 = vunpack.c.h.b16 %v5538
    %v5694 = vunpack.c.l.b16 %v5539
    %v5695 = vunpack.c.h.b16 %v5539
    %v5696 = vunpack.c.l.b16 %v5540
    %v5697 = vunpack.c.h.b16 %v5540
    %v5698 = vunpack.c.l.b16 %v5541
    %v5699 = vunpack.c.h.b16 %v5541
    %v5700 = vunpack.c.l.b16 %v5542
    %v5701 = vunpack.c.h.b16 %v5542
    %v5702 = vunpack.c.l.b16 %v5543
    %v5703 = vunpack.c.h.b16 %v5543
    %v5704 = vunpack.c.l.b16 %v5544
    %v5705 = vunpack.c.h.b16 %v5544
    %v5706 = vunpack.c.l.b16 %v5545
    %v5707 = vunpack.c.h.b16 %v5545
    %v5708 = vunpack.c.l.b16 %v5546
    %v5709 = vunpack.c.h.b16 %v5546
    %v5710 = vunpack.c.l.b16 %v5547
    %v5711 = vunpack.c.h.b16 %v5547
    %v5712 = vunpack.c.l.b16 %v5548
    %v5713 = vunpack.c.h.b16 %v5548
    %v5714 = vunpack.c.l.b16 %v5549
    %v5715 = vunpack.c.h.b16 %v5549
    %v5716 = vunpack.c.l.b16 %v5550
    %v5717 = vunpack.c.h.b16 %v5550
    %v5718 = vunpack.c.l.b16 %v5551
    %v5719 = vunpack.c.h.b16 %v5551
    %v5720 = vunpack.c.l.b16 %v5552
    %v5721 = vunpack.c.h.b16 %v5552
    %v5722 = vunpack.c.l.b16 %v5553
    %v5723 = vunpack.c.h.b16 %v5553
    %v5724 = vunpack.c.l.b16 %v5554
    %v5725 = vunpack.c.h.b16 %v5554
    %v5726 = vunpack.c.l.b16 %v5555
    %v5727 = vunpack.c.h.b16 %v5555
    %v5728 = vunpack.c.l.b16 %v5556
    %v5729 = vunpack.c.h.b16 %v5556
    %v5730 = vunpack.c.l.b16 %v5557
    %v5731 = vunpack.c.h.b16 %v5557
    %v5732 = vunpack.c.l.b16 %v5558
    %v5733 = vunpack.c.h.b16 %v5558
    %v5734 = vunpack.c.l.b16 %v5559
    %v5735 = vunpack.c.h.b16 %v5559
    %v5736 = vunpack.c.l.b16 %v5560
    %v5737 = vunpack.c.h.b16 %v5560
    %v5738 = vunpack.c.l.b16 %v5561
    %v5739 = vunpack.c.h.b16 %v5561
    %v5740 = vunpack.c.l.b16 %v5562
    %v5741 = vunpack.c.h.b16 %v5562
    %v5742 = vunpack.c.l.b16 %v5563
    %v5743 = vunpack.c.h.b16 %v5563
    %v5744 = vunpack.c.l.b16 %v5564
    %v5745 = vunpack.c.h.b16 %v5564
    %v5746 = vunpack.c.l.b16 %v5565
    %v5747 = vunpack.c.h.b16 %v5565
    %v5748 = vunpack.c.l.b16 %v5566
    %v5749 = vunpack.c.h.b16 %v5566
    %v5750 = vunpack.c.l.b16 %v5567
    %v5751 = vunpack.c.h.b16 %v5567
    %v5752 = vunpack.c.l.b16 %v5568
    %v5753 = vunpack.c.h.b16 %v5568
    %v5754 = vunpack.c.l.b16 %v5569
    %v5755 = vunpack.c.h.b16 %v5569
    %v5756 = vunpack.c.l.b16 %v5570
    %v5757 = vunpack.c.h.b16 %v5570
    %v5758 = vunpack.c.l.b16 %v5571
    %v5759 = vunpack.c.h.b16 %v5571
    %v5760 = vunpack.c.l.b16 %v5572
    %v5761 = vunpack.c.h.b16 %v5572
    %v5762 = vunpack.c.l.b16 %v5573
    %v5763 = vunpack.c.h.b16 %v5573
    %v5764 = vunpack.c.l.b16 %v5574
    %v5765 = vunpack.c.h.b16 %v5574
    %v5766 = vunpack.c.l.b16 %v5575
    %v5767 = vunpack.c.h.b16 %v5575
    %v5768 = vunpack.c.l.b16 %v5576
    %v5769 = vunpack.c.h.b16 %v5576
    %v5770 = vunpack.c.l.b16 %v5577
    %v5771 = vunpack.c.h.b16 %v5577
    %v5772 = vunpack.c.l.b16 %v5578
    %v5773 = vunpack.c.h.b16 %v5578
    %v5774 = vunpack.c.l.b16 %v5579
    %v5775 = vunpack.c.h.b16 %v5579
    %v5776 = vunpack.c.l.b16 %v5580
    %v5777 = vunpack.c.h.b16 %v5580
    %v5778 = vunpack.c.l.b16 %v5581
    %v5779 = vunpack.c.h.b16 %v5581
    %v5780 = vpack.c.b16 %v5654, %v5652
    %v5781 = vpack.c.b16 %v5655, %v5653
    %v5782 = vpack.c.b16 %v5658, %v5656
    %v5783 = vpack.c.b16 %v5659, %v5657
    %v5784 = vpack.c.b16 %v5662, %v5660
    %v5785 = vpack.c.b16 %v5663, %v5661
    %v5786 = vpack.c.b16 %v5666, %v5664
    %v5787 = vpack.c.b16 %v5667, %v5665
    %v5788 = vpack.c.b16 %v5670, %v5668
    %v5789 = vpack.c.b16 %v5671, %v5669
    %v5790 = vpack.c.b16 %v5674, %v5672
    %v5791 = vpack.c.b16 %v5675, %v5673
    %v5792 = vpack.c.b16 %v5678, %v5676
    %v5793 = vpack.c.b16 %v5679, %v5677
    %v5794 = vpack.c.b16 %v5682, %v5680
    %v5795 = vpack.c.b16 %v5683, %v5681
    %v5796 = vpack.c.b16 %v5686, %v5684
    %v5797 = vpack.c.b16 %v5687, %v5685
    %v5798 = vpack.c.b16 %v5690, %v5688
    %v5799 = vpack.c.b16 %v5691, %v5689
    %v5800 = vpack.c.b16 %v5694, %v5692
    %v5801 = vpack.c.b16 %v5695, %v5693
    %v5802 = vpack.c.b16 %v5698, %v5696
    %v5803 = vpack.c.b16 %v5699, %v5697
    %v5804 = vpack.c.b16 %v5702, %v5700
    %v5805 = vpack.c.b16 %v5703, %v5701
    %v5806 = vpack.c.b16 %v5706, %v5704
    %v5807 = vpack.c.b16 %v5707, %v5705
    %v5808 = vpack.c.b16 %v5710, %v5708
    %v5809 = vpack.c.b16 %v5711, %v5709
    %v5810 = vpack.c.b16 %v5714, %v5712
    %v5811 = vpack.c.b16 %v5715, %v5713
    %v5812 = vpack.c.b16 %v5718, %v5716
    %v5813 = vpack.c.b16 %v5719, %v5717
    %v5814 = vpack.c.b16 %v5722, %v5720
    %v5815 = vpack.c.b16 %v5723, %v5721
    %v5816 = vpack.c.b16 %v5726, %v5724
    %v5817 = vpack.c.b16 %v5727, %v5725
    %v5818 = vpack.c.b16 %v5730, %v5728
    %v5819 = vpack.c.b16 %v5731, %v5729
    %v5820 = vpack.c.b16 %v5734, %v5732
    %v5821 = vpack.c.b16 %v5735, %v5733
    %v5822 = vpack.c.b16 %v5738, %v5736
    %v5823 = vpack.c.b16 %v5739, %v5737
    %v5824 = vpack.c.b16 %v5742, %v5740
    %v5825 = vpack.c.b16 %v5743, %v5741
    %v5826 = vpack.c.b16 %v5746, %v5744
    %v5827 = vpack.c.b16 %v5747, %v5745
    %v5828 = vpack.c.b16 %v5750, %v5748
    %v5829 = vpack.c.b16 %v5751, %v5749
    %v5830 = vpack.c.b16 %v5754, %v5752
    %v5831 = vpack.c.b16 %v5755, %v5753
    %v5832 = vpack.c.b16 %v5758, %v5756
    %v5833 = vpack.c.b16 %v5759, %v5757
    %v5834 = vpack.c.b16 %v5762, %v5760
    %v5835 = vpack.c.b16 %v5763, %v5761
    %v5836 = vpack.c.b16 %v5766, %v5764
    %v5837 = vpack.c.b16 %v5767, %v5765
    %v5838 = vpack.c.b16 %v5770, %v5768
    %v5839 = vpack.c.b16 %v5771, %v5769
    %v5840 = vpack.c.b16 %v5774, %v5772
    %v5841 = vpack.c.b16 %v5775, %v5773
    %v5842 = vpack.c.b16 %v5778, %v5776
    %v5843 = vpack.c.b16 %v5779, %v5777
    %5908 = vmatpush.bf16.msra.mxu0 %v5794
    %5909 = vmatpush.bf16.msra.mxu0 %v5792
    %5910 = vmatpush.bf16.msra.mxu0 %v5790
    %5911 = vmatpush.bf16.msra.mxu0 %v5788
    %5912 = vmatpush.bf16.msra.mxu0 %v5786
    %5913 = vmatpush.bf16.msra.mxu0 %v5784
    %5914 = vmatpush.bf16.msra.mxu0 %v5782
    %5915 = vmatpush.bf16.msra.mxu0 %v5780
    %5916 = vmatmul.bf16.gmra.mxu0 %v5514
    %v5917 = vpop.f32.mrf.mxu0
    %v5918 = vadd.f32 %v5584, %v5917
    %v5919 = vpop.f32.mrf.mxu0
    %5920 = vdwg.mxu0
    %5921 = vmatpush.bf16.msra.mxu0 %v5810
    %5922 = vmatpush.bf16.msra.mxu0 %v5808
    %5923 = vmatpush.bf16.msra.mxu0 %v5806
    %5924 = vmatpush.bf16.msra.mxu0 %v5804
    %5925 = vmatpush.bf16.msra.mxu0 %v5802
    %5926 = vmatpush.bf16.msra.mxu0 %v5800
    %5927 = vmatpush.bf16.msra.mxu0 %v5798
    %5928 = vmatpush.bf16.msra.mxu0 %v5796
    %5929 = vmatmul.bf16.gmra.mxu0 %v5515
    %v5930 = vpop.f32.mrf.mxu0
    %v5931 = vadd.f32 %v5918, %v5930
    %v5932 = vpop.f32.mrf.mxu0
    %5933 = vdwg.mxu0
    %5934 = vmatpush.bf16.msra.mxu0 %v5826
    %5935 = vmatpush.bf16.msra.mxu0 %v5824
    %5936 = vmatpush.bf16.msra.mxu0 %v5822
    %5937 = vmatpush.bf16.msra.mxu0 %v5820
    %5938 = vmatpush.bf16.msra.mxu0 %v5818
    %5939 = vmatpush.bf16.msra.mxu0 %v5816
    %5940 = vmatpush.bf16.msra.mxu0 %v5814
    %5941 = vmatpush.bf16.msra.mxu0 %v5812
    %5942 = vmatmul.bf16.gmra.mxu0 %v5516
    %v5943 = vpop.f32.mrf.mxu0
    %v5944 = vadd.f32 %v5931, %v5943
    %v5945 = vpop.f32.mrf.mxu0
    %5946 = vdwg.mxu0
    %5947 = vmatpush.bf16.msra.mxu0 %v5842
    %5948 = vmatpush.bf16.msra.mxu0 %v5840
    %5949 = vmatpush.bf16.msra.mxu0 %v5838
    %5950 = vmatpush.bf16.msra.mxu0 %v5836
    %5951 = vmatpush.bf16.msra.mxu0 %v5834
    %5952 = vmatpush.bf16.msra.mxu0 %v5832
    %5953 = vmatpush.bf16.msra.mxu0 %v5830
    %5954 = vmatpush.bf16.msra.mxu0 %v5828
    %5955 = vmatmul.bf16.gmra.mxu0 %v5517
    %v5956 = vpop.f32.mrf.mxu0
    %v5957 = vadd.f32 %v5944, %v5956
    %v5958 = vpop.f32.mrf.mxu0
    %5959 = vdwg.mxu0
    %5960 = vmatpush.bf16.msra.mxu0 %v5795
    %5961 = vmatpush.bf16.msra.mxu0 %v5793
    %5962 = vmatpush.bf16.msra.mxu0 %v5791
    %5963 = vmatpush.bf16.msra.mxu0 %v5789
    %5964 = vmatpush.bf16.msra.mxu0 %v5787
    %5965 = vmatpush.bf16.msra.mxu0 %v5785
    %5966 = vmatpush.bf16.msra.mxu0 %v5783
    %5967 = vmatpush.bf16.msra.mxu0 %v5781
    %5968 = vmatmul.bf16.gmra.mxu0 %v5514
    %v5969 = vpop.f32.mrf.mxu0
    %v5970 = vadd.f32 %v5585, %v5969
    %v5971 = vpop.f32.mrf.mxu0
    %5972 = vdwg.mxu0
    %5973 = vmatpush.bf16.msra.mxu0 %v5811
    %5974 = vmatpush.bf16.msra.mxu0 %v5809
    %5975 = vmatpush.bf16.msra.mxu0 %v5807
    %5976 = vmatpush.bf16.msra.mxu0 %v5805
    %5977 = vmatpush.bf16.msra.mxu0 %v5803
    %5978 = vmatpush.bf16.msra.mxu0 %v5801
    %5979 = vmatpush.bf16.msra.mxu0 %v5799
    %5980 = vmatpush.bf16.msra.mxu0 %v5797
    %5981 = vmatmul.bf16.gmra.mxu0 %v5515
    %v5982 = vpop.f32.mrf.mxu0
    %v5983 = vadd.f32 %v5970, %v5982
    %v5984 = vpop.f32.mrf.mxu0
    %5985 = vdwg.mxu0
    %5986 = vmatpush.bf16.msra.mxu0 %v5827
    %5987 = vmatpush.bf16.msra.mxu0 %v5825
    %5988 = vmatpush.bf16.msra.mxu0 %v5823
    %5989 = vmatpush.bf16.msra.mxu0 %v5821
    %5990 = vmatpush.bf16.msra.mxu0 %v5819
    %5991 = vmatpush.bf16.msra.mxu0 %v5817
    %5992 = vmatpush.bf16.msra.mxu0 %v5815
    %5993 = vmatpush.bf16.msra.mxu0 %v5813
    %5994 = vmatmul.bf16.gmra.mxu0 %v5516
    %v5995 = vpop.f32.mrf.mxu0
    %v5996 = vadd.f32 %v5983, %v5995
    %v5997 = vpop.f32.mrf.mxu0
    %5998 = vdwg.mxu0
    %5999 = vmatpush.bf16.msra.mxu0 %v5843
    %6000 = vmatpush.bf16.msra.mxu0 %v5841
    %6001 = vmatpush.bf16.msra.mxu0 %v5839
    %6002 = vmatpush.bf16.msra.mxu0 %v5837
    %6003 = vmatpush.bf16.msra.mxu0 %v5835
    %6004 = vmatpush.bf16.msra.mxu0 %v5833
    %6005 = vmatpush.bf16.msra.mxu0 %v5831
    %6006 = vmatpush.bf16.msra.mxu0 %v5829
    %6007 = vmatmul.bf16.gmra.mxu0 %v5517
    %v6008 = vpop.f32.mrf.mxu0
    %v6009 = vadd.f32 %v5996, %v6008
    %v6010 = vpop.f32.mrf.mxu0
    %6011 = vdwg.mxu0
    %6012 = vst [vmem:[%s7] sm:$0xff] %v5957
    %6013 = vst [vmem:[%s7 + $0x8] sm:$0xff] %v6009
  $region37: #{kernel_learning_forward.1} parent=0 // pred_fallthru
    _
  // Predicated region
  $region38: #{kernel_learning_forward.1} parent=0 // pred_check
    _
  $region39: #{kernel_learning_forward.1} parent=0 // pred_check_branch
    %6015 = sbr.rel (0) target = $region41
  $region40: #{kernel_learning_forward.1} parent=0 // pred_region
    _
  $region41: #{kernel_learning_forward.1} parent=0 // pred_fallthru
    _
  // Predicated region
  $region42: #{kernel_learning_forward.1} parent=0 // pred_check
    _
  $region43: #{kernel_learning_forward.1} parent=0 // pred_check_branch
    %6017 = sbr.rel (0) target = $region45
  $region44: #{kernel_learning_forward.1} parent=0 // pred_region
    _
  $region45: #{kernel_learning_forward.1} parent=0 // pred_fallthru
    _

</llo_original>
